<compile_context>
chip_gen: v7x
topology: tpu7x:2x2x1
jax: 0.10.0
libtpu: 0.0.40
codegen_flags: <defaults>
</compile_context>

<pallas_src>
import numpy as np
import jax
import jax.numpy as jnp
from jax import lax
from jax.experimental import pallas as pl
from jax.experimental.pallas import tpu as pltpu

# --------------------------------------------------------------------------
# config (opt.*)
# --------------------------------------------------------------------------
VOCAB = 50          # opt.vocab_size
D_WORD = 32         # opt.term_size
NFILT = 128         # Conv2d out-channels
N_BINS = 11         # opt.n_bins
MU = (1.0, 0.9, 0.7, 0.5, 0.3, 0.1, -0.1, -0.3, -0.5, -0.7, -0.9)   # opt.mu
SIGMA = (1e-3,) + (0.1,) * 10                                        # opt.sigma
INV2S2 = tuple(1.0 / (2.0 * s * s) for s in SIGMA)                   # 1/(2*sigma^2)


def _batch_tile(b, target):
    """Largest divisor of b that is <= target and keeps >=2 grid steps (megacore)."""
    cap = max(1, min(target, b // 2 if b >= 2 else 1))
    t = cap
    while t > 1 and b % t != 0:
        t -= 1
    return t


# --------------------------------------------------------------------------
# Pallas kernel 1: batch-tiled fused 1/2/3-gram "conv" + ReLU + 1e-9 + L2-norm
# --------------------------------------------------------------------------
def _conv3_kernel(xw_ref, w_ref, b_ref, o_ref):
    # xw_ref: (TB, L, 3D) pre-shifted windows; w_ref: (3D, 3*NFILT) block-zero-padded
    # b_ref: (1, 3*NFILT); o_ref: (TB, 3*L, NFILT) -> rows [(k-1)*L, k*L) = k-gram feats
    TB, L, D3 = xw_ref.shape
    x2d = xw_ref[...].reshape(TB * L, D3)                 # fold batch into MXU M dim
    y2d = jnp.dot(x2d, w_ref[...], preferred_element_type=jnp.float32) + b_ref[...]
    y = y2d.reshape(TB, L, 3 * NFILT)
    pos = lax.broadcasted_iota(jnp.int32, (TB, L, NFILT), 1)
    for k in (1, 2, 3):
        yk = y[:, :, (k - 1) * NFILT:k * NFILT]           # lane-aligned slice
        yk = jnp.maximum(yk, 0.0) + 1e-9                  # ReLU + 1e-09
        nrm = jnp.sqrt(jnp.sum(yk * yk, axis=-1, keepdims=True))
        yk = yk / jnp.maximum(nrm, 1e-10)                 # F.normalize(p=2, eps=1e-10)
        yk = jnp.where(pos < (L - k + 1), yk, 0.0)        # zero invalid n-gram rows
        o_ref[:, (k - 1) * L:k * L, :] = yk


def ngram_conv3(x_emb, w_big, b_big):
    """x_emb: (B, L, D) -> (B, 3*L, NFILT) stacked normalized uni/bi/tri-gram features."""
    bs, L, D = x_emb.shape
    # Pre-build shifted windows in XLA (layout plumbing): xw[:, i] = [x_i, x_{i+1}, x_{i+2}]
    z = jnp.zeros((bs, 2, D), x_emb.dtype)
    xpad = jnp.concatenate([x_emb, z], axis=1)
    xw = jnp.concatenate([x_emb, xpad[:, 1:L + 1, :], xpad[:, 2:L + 2, :]], axis=-1)
    tb = _batch_tile(bs, max(1, 256 // L))                # aim for M = TB*L >= 256
    return pl.pallas_call(
        _conv3_kernel,
        out_shape=jax.ShapeDtypeStruct((bs, 3 * L, NFILT), jnp.float32),
        grid=(bs // tb,),
        in_specs=[
            pl.BlockSpec((tb, L, 3 * D), lambda i: (i, 0, 0)),
            pl.BlockSpec((3 * D, 3 * NFILT), lambda i: (0, 0)),
            pl.BlockSpec((1, 3 * NFILT), lambda i: (0, 0)),
        ],
        out_specs=pl.BlockSpec((tb, 3 * L, NFILT), lambda i: (i, 0, 0)),
        compiler_params=pltpu.CompilerParams(dimension_semantics=("parallel",)),
    )(xw, w_big, b_big)


# --------------------------------------------------------------------------
# Pallas kernel 2: batch-tiled fused KNRM pooling for doc + body (18 pairs at once)
# --------------------------------------------------------------------------
def _pool_kernel(q_ref, dt_ref, qw_ref, md_ref, sel_ref, o_ref):
    # q_ref:  (TB, 3*QL, C)        stacked query n-gram features
    # dt_ref: (TB, C, ND)          pre-transposed doc+body n-gram features, ND=3*DL+3*DBL
    # qw_ref: (TB, 3, 3*QL)        block-diag per-k query masks, pre-scaled by 0.01
    # md_ref: (TB, 1, ND)          concatenated per-k doc+body masks
    # sel_ref:(ND, 6)              doc-segment selector (sum over positions per segment)
    # o_ref:  (TB, 3, 6*N_BINS)    out[b, qk, j*6 + seg]
    TB, QR, _ = q_ref.shape
    ND = dt_ref.shape[2]
    # All 18 (q n-gram, d n-gram) cosine-sim blocks in one batched MXU matmul,
    # doc side pre-transposed -> no in-kernel transposes.
    sim = jnp.einsum("bqc,bcd->bqd", q_ref[...], dt_ref[...],
                     preferred_element_type=jnp.float32)          # (TB, QR, ND)
    sim2 = sim.reshape(TB * QR, ND)                               # lane-dense rows
    md2 = jnp.broadcast_to(md_ref[...], (TB, QR, ND)).reshape(TB * QR, ND)
    sel = sel_ref[...]
    cols = []
    for j in range(N_BINS):                                       # mu/sigma baked in
        diff = sim2 - MU[j]
        pv = jnp.exp(diff * diff * (-INV2S2[j])) * md2            # (TB*QR, ND), masked
        # sum over doc positions per n-gram segment on the (idle) MXU
        cols.append(jnp.dot(pv, sel, preferred_element_type=jnp.float32))  # (TB*QR, 6)
    ps = jnp.concatenate(cols, axis=-1)                           # (TB*QR, 6*NB)
    lp = jnp.log(jnp.maximum(ps, 1e-10)).reshape(TB, QR, 6 * N_BINS)
    # masked sum over query positions per q n-gram (mask*0.01 folded into qw) via MXU
    out = jnp.einsum("bkq,bqf->bkf", qw_ref[...], lp,
                     preferred_element_type=jnp.float32)          # (TB, 3, 66)
    o_ref[...] = out


def knrm_pool(qf, dt, qw, md, sel, *, tb_target=8):
    """qf:(B,3QL,C), dt:(B,C,ND), qw:(B,3,3QL), md:(B,ND), sel:(ND,6) -> (B,3,6*NB)."""
    bs, QR, C = qf.shape
    ND = dt.shape[2]
    tb = _batch_tile(bs, tb_target)
    md3 = md.reshape(bs, 1, ND)
    return pl.pallas_call(
        _pool_kernel,
        out_shape=jax.ShapeDtypeStruct((bs, 3, 6 * N_BINS), jnp.float32),
        grid=(bs // tb,),
        in_specs=[
            pl.BlockSpec((tb, QR, C), lambda i: (i, 0, 0)),
            pl.BlockSpec((tb, C, ND), lambda i: (i, 0, 0)),
            pl.BlockSpec((tb, 3, QR), lambda i: (i, 0, 0)),
            pl.BlockSpec((tb, 1, ND), lambda i: (i, 0, 0)),
            pl.BlockSpec((ND, 6), lambda i: (0, 0)),
        ],
        out_specs=pl.BlockSpec((tb, 3, 6 * N_BINS), lambda i: (i, 0, 0)),
        compiler_params=pltpu.CompilerParams(dimension_semantics=("parallel",)),
    )(qf, dt, qw, md3, sel)


# --------------------------------------------------------------------------
# model glue (embedding gather, masks, tiny dense head kept in plain JAX)
# --------------------------------------------------------------------------
def _pack_conv_params(params):
    """Pack the 3 conv matmul weights into one block-zero-padded (3D, 3*128) matrix."""
    D = D_WORD
    w = jnp.zeros((3 * D, 3 * NFILT), jnp.float32)
    w = w.at[:D, :NFILT].set(params["conv_w1"])
    w = w.at[:2 * D, NFILT:2 * NFILT].set(params["conv_w2"])
    w = w.at[:, 2 * NFILT:].set(params["conv_w3"])
    b = jnp.concatenate(
        [params["conv_b1"], params["conv_b2"], params["conv_b3"]], axis=1)
    return w, b


def _query_weights(mask_q):
    """(B, QL) -> (B, 3, 3*QL) block-diag per-k masks, truncated to L-k+1, *0.01."""
    bs, QL = mask_q.shape
    pos = jnp.arange(QL)
    m = mask_q.astype(jnp.float32)
    mks = [m * (pos < (QL - kk)).astype(jnp.float32) for kk in range(3)]
    z = jnp.zeros((bs, QL), jnp.float32)
    rows = [jnp.concatenate([mks[0], z, z], axis=1),
            jnp.concatenate([z, mks[1], z], axis=1),
            jnp.concatenate([z, z, mks[2]], axis=1)]
    return jnp.stack(rows, axis=1) * 0.01


def _per_k_doc_mask(mask):
    """(B, L) -> (B, 3*L): per-k masks truncated to length L-k+1, concatenated."""
    L = mask.shape[1]
    pos = jnp.arange(L)
    m = mask.astype(jnp.float32)
    return jnp.concatenate(
        [m * (pos < (L - kk)).astype(jnp.float32) for kk in range(3)], axis=1)


def _dseg_selector(seg_lens):
    """Segment-sum selector: (sum(seg_lens), n_seg) one-hot column per segment."""
    nd = sum(seg_lens)
    sel = np.zeros((nd, len(seg_lens)), np.float32)
    off = 0
    for s, ln in enumerate(seg_lens):
        sel[off:off + ln, s] = 1.0
        off += ln
    return jnp.asarray(sel)


def forward(params, inputs_q, inputs_d, inputs_dcq, inputs_dbody,
            masks_q, masks_d, masks_dcq, masks_dbody):
    # inputs_dcq / masks_dcq are unused by the reference forward (signature parity).
    emb = params["emb"]
    embed_q = emb[inputs_q]
    embed_d = emb[inputs_d]
    embed_db = emb[inputs_dbody]
    bs = embed_q.shape[0]
    DL, DBL = embed_d.shape[1], embed_db.shape[1]

    w_big, b_big = _pack_conv_params(params)

    # n-gram features: query computed once and shared by the doc + body pooling.
    q_feats = ngram_conv3(embed_q, w_big, b_big)       # (B, 3*QL, C)
    d_feats = ngram_conv3(embed_d, w_big, b_big)       # (B, 3*DL, C)
    db_feats = ngram_conv3(embed_db, w_big, b_big)     # (B, 3*DBL, C)
    # Wrapper-side transpose (layout plumbing) so the pooling kernel needs no XLU transposes.
    dt_cat = jnp.swapaxes(jnp.concatenate([d_feats, db_feats], axis=1), 1, 2)  # (B,C,ND)

    qw = _query_weights(masks_q)                                        # (B, 3, 3*QL)
    md = jnp.concatenate([_per_k_doc_mask(masks_d),
                          _per_k_doc_mask(masks_dbody)], axis=1)        # (B, ND)
    sel = _dseg_selector([DL, DL, DL, DBL, DBL, DBL])                   # (ND, 6)

    out66 = knrm_pool(q_feats, dt_cat, qw, md, sel)                     # (B, 3, 66)
    # col = bin*6 + seg, seg = doc*3 + dk  ->  reorder to (B, doc, qk, dk, bin)
    outr = out66.reshape(bs, 3, N_BINS, 2, 3)
    outr = jnp.transpose(outr, (0, 3, 1, 4, 2))
    lp = outr.reshape(bs, 2, 9 * N_BINS)
    lp_d, lp_b = lp[:, 0], lp[:, 1]

    qd = jnp.tanh(lp_d @ params["qd_w"] + params["qd_b"])               # (B, 1)
    qb = jnp.tanh(lp_b @ params["qb_w"] + params["qb_b"])               # (B, 1)
    sim = jnp.concatenate([qd, qb], axis=1) @ params["comb_w"] + params["comb_b"]
    return jnp.squeeze(sim)


def init_params(key):
    ks = jax.random.split(key, 12)
    emb = jax.random.normal(ks[0], (VOCAB, D_WORD), jnp.float32) * 0.1
    emb = emb.at[0].set(0.0)                                   # padding_idx = 0
    params = {"emb": emb}
    for idx, k in enumerate((1, 2, 3)):
        w = jax.random.normal(ks[1 + idx], (NFILT, 1, k, D_WORD), jnp.float32)
        w = w * (1.0 / float(k * D_WORD) ** 0.5)
        b = jax.random.normal(ks[4 + idx], (NFILT,), jnp.float32) * 0.01
        # Conv2d weight (128, 1, k, D) -> matmul weight (k*D, 128)
        params[f"conv_w{k}"] = w.reshape(NFILT, k * D_WORD).T
        params[f"conv_b{k}"] = b.reshape(1, NFILT)
    params["qd_w"] = jax.random.normal(ks[7], (9 * N_BINS, 1), jnp.float32) * 0.1
    params["qd_b"] = jnp.zeros((1,), jnp.float32)
    params["qb_w"] = jax.random.normal(ks[8], (9 * N_BINS, 1), jnp.float32) * 0.1
    params["qb_b"] = jnp.zeros((1,), jnp.float32)
    params["comb_w"] = jax.random.normal(ks[9], (2, 1), jnp.float32) * 0.5
    params["comb_b"] = jnp.zeros((1,), jnp.float32)
    return params


if __name__ == "__main__":
    key = jax.random.PRNGKey(0)
    params = init_params(key)

    bs, qlen, dlen, dblen = 2, 8, 16, 16
    k_q, k_d, k_db = jax.random.split(jax.random.PRNGKey(1), 3)
    inputs_q = jax.random.randint(k_q, (bs, qlen), 1, VOCAB)
    inputs_d = jax.random.randint(k_d, (bs, dlen), 1, VOCAB)
    inputs_dbody = jax.random.randint(k_db, (bs, dblen), 1, VOCAB)
    inputs_dcq = jnp.zeros((bs, dlen), jnp.int32)              # unused by forward

    def make_mask(lens, L):
        return (jnp.arange(L)[None, :] < jnp.asarray(lens)[:, None]).astype(jnp.float32)

    masks_q = make_mask([8, 6], qlen)
    masks_d = make_mask([16, 12], dlen)
    masks_dbody = make_mask([14, 16], dblen)
    masks_dcq = jnp.ones((bs, dlen), jnp.float32)              # unused by forward

    fwd = jax.jit(forward)
    out = fwd(params, inputs_q, inputs_d, inputs_dcq, inputs_dbody,
              masks_q, masks_d, masks_dcq, masks_dbody)
    jax.block_until_ready(out)
    assert out.shape == (bs,)
    print("KERNEL_OK")
</pallas_src>

<mosaic_0001>
module attributes {stable_mosaic.version = 11 : i64} {
  func.func @_conv3_kernel(%arg0: i32, %arg1: memref<1x8x96xf32, #tpu.memory_space<vmem>>, %arg2: memref<96x384xf32, #tpu.memory_space<vmem>>, %arg3: memref<1x384xf32, #tpu.memory_space<vmem>>, %arg4: memref<1x24x128xf32, #tpu.memory_space<vmem>>) attributes {dimension_semantics = [#tpu.dimension_semantics<parallel>], iteration_bounds = array<i64: 2>, scalar_prefetch = 0 : i64, scratch_operands = 0 : i64, tpu.core_type = #tpu.core_type<tc>, window_params = [{transform_indices = @transform_0, window_bounds = array<i64: 1, 8, 96>}, {pipeline_mode = #tpu.pipeline_mode<synchronous>, transform_indices = @transform_1, window_bounds = array<i64: 96, 384>}, {pipeline_mode = #tpu.pipeline_mode<synchronous>, transform_indices = @transform_2, window_bounds = array<i64: 1, 384>}, {transform_indices = @transform_3, window_bounds = array<i64: 1, 24, 128>}]} {
    %c0 = arith.constant 0 : index
    %c0_0 = arith.constant 0 : index
    %c0_1 = arith.constant 0 : index
    %0 = vector.load %arg1[%c0, %c0_0, %c0_1] : memref<1x8x96xf32, #tpu.memory_space<vmem>>, vector<1x8x96xf32>
    %1 = vector.shape_cast %0 : vector<1x8x96xf32> to vector<8x96xf32>
    %c0_2 = arith.constant 0 : index
    %c0_3 = arith.constant 0 : index
    %2 = vector.load %arg2[%c0_2, %c0_3] : memref<96x384xf32, #tpu.memory_space<vmem>>, vector<96x384xf32>
    %cst = arith.constant dense<0.000000e+00> : vector<8x384xf32>
    %3 = tpu.matmul %1, %2, %cst {dimension_numbers = #tpu.dot_dimension_numbers<[1], [0], [0], [1], [0, 0, 1, 1], [], []>} : vector<8x96xf32>, vector<96x384xf32>, vector<8x384xf32> -> vector<8x384xf32>
    %c0_4 = arith.constant 0 : index
    %c0_5 = arith.constant 0 : index
    %4 = vector.load %arg3[%c0_4, %c0_5] : memref<1x384xf32, #tpu.memory_space<vmem>>, vector<1x384xf32>
    %5 = vector.broadcast %4 : vector<1x384xf32> to vector<8x384xf32>
    %6 = arith.addf %3, %5 : vector<8x384xf32>
    %7 = vector.shape_cast %6 : vector<8x384xf32> to vector<1x8x384xf32>
    %8 = tpu.iota {dimensions = array<i32: 1>} : vector<1x8x128xi32>
    %9 = vector.extract_strided_slice %7 {offsets = [0, 0, 0], sizes = [1, 8, 128], strides = [1, 1, 1]} : vector<1x8x384xf32> to vector<1x8x128xf32>
    %cst_6 = arith.constant 0.000000e+00 : f32
    %10 = vector.broadcast %cst_6 : f32 to vector<1x8x128xf32>
    %11 = arith.maximumf %9, %10 : vector<1x8x128xf32>
    %cst_7 = arith.constant 9.99999971E-10 : f32
    %12 = vector.broadcast %cst_7 : f32 to vector<1x8x128xf32>
    %13 = arith.addf %11, %12 : vector<1x8x128xf32>
    %14 = arith.mulf %13, %13 : vector<1x8x128xf32>
    %cst_8 = arith.constant dense<0.000000e+00> : vector<1x8xf32>
    %15 = vector.multi_reduction <add>, %14, %cst_8 [2] : vector<1x8x128xf32> to vector<1x8xf32>
    %16 = vector.shape_cast %15 : vector<1x8xf32> to vector<1x8x1xf32>
    %17 = math.sqrt %16 : vector<1x8x1xf32>
    %cst_9 = arith.constant 1.000000e-10 : f32
    %18 = vector.broadcast %cst_9 : f32 to vector<1x8x1xf32>
    %19 = arith.maximumf %17, %18 : vector<1x8x1xf32>
    %20 = vector.broadcast %19 : vector<1x8x1xf32> to vector<1x8x128xf32>
    %21 = arith.divf %13, %20 : vector<1x8x128xf32>
    %c8_i32 = arith.constant 8 : i32
    %22 = vector.broadcast %c8_i32 : i32 to vector<1x8x128xi32>
    %23 = arith.cmpi slt, %8, %22 : vector<1x8x128xi32>
    %cst_10 = arith.constant 0.000000e+00 : f32
    %24 = vector.broadcast %cst_10 : f32 to vector<1x8x128xf32>
    %25 = arith.select %23, %21, %24 : vector<1x8x128xi1>, vector<1x8x128xf32>
    %c0_11 = arith.constant 0 : index
    %c0_12 = arith.constant 0 : index
    %c0_13 = arith.constant 0 : index
    %26 = vector.load %arg4[%c0_11, %c0_12, %c0_13] : memref<1x24x128xf32, #tpu.memory_space<vmem>>, vector<1x8x128xf32>
    tpu.vector_store %arg4[%c0_11, %c0_12, %c0_13], %25 {strides = array<i32>} : memref<1x24x128xf32, #tpu.memory_space<vmem>>, vector<1x8x128xf32>,
    %27 = vector.extract_strided_slice %7 {offsets = [0, 0, 128], sizes = [1, 8, 128], strides = [1, 1, 1]} : vector<1x8x384xf32> to vector<1x8x128xf32>
    %cst_14 = arith.constant 0.000000e+00 : f32
    %28 = vector.broadcast %cst_14 : f32 to vector<1x8x128xf32>
    %29 = arith.maximumf %27, %28 : vector<1x8x128xf32>
    %cst_15 = arith.constant 9.99999971E-10 : f32
    %30 = vector.broadcast %cst_15 : f32 to vector<1x8x128xf32>
    %31 = arith.addf %29, %30 : vector<1x8x128xf32>
    %32 = arith.mulf %31, %31 : vector<1x8x128xf32>
    %cst_16 = arith.constant dense<0.000000e+00> : vector<1x8xf32>
    %33 = vector.multi_reduction <add>, %32, %cst_16 [2] : vector<1x8x128xf32> to vector<1x8xf32>
    %34 = vector.shape_cast %33 : vector<1x8xf32> to vector<1x8x1xf32>
    %35 = math.sqrt %34 : vector<1x8x1xf32>
    %cst_17 = arith.constant 1.000000e-10 : f32
    %36 = vector.broadcast %cst_17 : f32 to vector<1x8x1xf32>
    %37 = arith.maximumf %35, %36 : vector<1x8x1xf32>
    %38 = vector.broadcast %37 : vector<1x8x1xf32> to vector<1x8x128xf32>
    %39 = arith.divf %31, %38 : vector<1x8x128xf32>
    %c7_i32 = arith.constant 7 : i32
    %40 = vector.broadcast %c7_i32 : i32 to vector<1x8x128xi32>
    %41 = arith.cmpi slt, %8, %40 : vector<1x8x128xi32>
    %cst_18 = arith.constant 0.000000e+00 : f32
    %42 = vector.broadcast %cst_18 : f32 to vector<1x8x128xf32>
    %43 = arith.select %41, %39, %42 : vector<1x8x128xi1>, vector<1x8x128xf32>
    %c0_19 = arith.constant 0 : index
    %c8 = arith.constant 8 : index
    %c0_20 = arith.constant 0 : index
    %44 = vector.load %arg4[%c0_19, %c8, %c0_20] : memref<1x24x128xf32, #tpu.memory_space<vmem>>, vector<1x8x128xf32>
    tpu.vector_store %arg4[%c0_19, %c8, %c0_20], %43 {strides = array<i32>} : memref<1x24x128xf32, #tpu.memory_space<vmem>>, vector<1x8x128xf32>,
    %45 = vector.extract_strided_slice %7 {offsets = [0, 0, 256], sizes = [1, 8, 128], strides = [1, 1, 1]} : vector<1x8x384xf32> to vector<1x8x128xf32>
    %cst_21 = arith.constant 0.000000e+00 : f32
    %46 = vector.broadcast %cst_21 : f32 to vector<1x8x128xf32>
    %47 = arith.maximumf %45, %46 : vector<1x8x128xf32>
    %cst_22 = arith.constant 9.99999971E-10 : f32
    %48 = vector.broadcast %cst_22 : f32 to vector<1x8x128xf32>
    %49 = arith.addf %47, %48 : vector<1x8x128xf32>
    %50 = arith.mulf %49, %49 : vector<1x8x128xf32>
    %cst_23 = arith.constant dense<0.000000e+00> : vector<1x8xf32>
    %51 = vector.multi_reduction <add>, %50, %cst_23 [2] : vector<1x8x128xf32> to vector<1x8xf32>
    %52 = vector.shape_cast %51 : vector<1x8xf32> to vector<1x8x1xf32>
    %53 = math.sqrt %52 : vector<1x8x1xf32>
    %cst_24 = arith.constant 1.000000e-10 : f32
    %54 = vector.broadcast %cst_24 : f32 to vector<1x8x1xf32>
    %55 = arith.maximumf %53, %54 : vector<1x8x1xf32>
    %56 = vector.broadcast %55 : vector<1x8x1xf32> to vector<1x8x128xf32>
    %57 = arith.divf %49, %56 : vector<1x8x128xf32>
    %c6_i32 = arith.constant 6 : i32
    %58 = vector.broadcast %c6_i32 : i32 to vector<1x8x128xi32>
    %59 = arith.cmpi slt, %8, %58 : vector<1x8x128xi32>
    %cst_25 = arith.constant 0.000000e+00 : f32
    %60 = vector.broadcast %cst_25 : f32 to vector<1x8x128xf32>
    %61 = arith.select %59, %57, %60 : vector<1x8x128xi1>, vector<1x8x128xf32>
    %c0_26 = arith.constant 0 : index
    %c16 = arith.constant 16 : index
    %c0_27 = arith.constant 0 : index
    %62 = vector.load %arg4[%c0_26, %c16, %c0_27] : memref<1x24x128xf32, #tpu.memory_space<vmem>>, vector<1x8x128xf32>
    tpu.vector_store %arg4[%c0_26, %c16, %c0_27], %61 {strides = array<i32>} : memref<1x24x128xf32, #tpu.memory_space<vmem>>, vector<1x8x128xf32>,
    return
  }
  func.func @transform_0(%arg0: i32) -> (i32, i32, i32) {
    %c0_i32 = arith.constant 0 : i32
    %c0_i32_0 = arith.constant 0 : i32
    %c0_i32_1 = arith.constant 0 : i32
    return %arg0, %c0_i32, %c0_i32_0 : i32, i32, i32
  }
  func.func @transform_1(%arg0: i32) -> (i32, i32) {
    %c0_i32 = arith.constant 0 : i32
    %c0_i32_0 = arith.constant 0 : i32
    %c0_i32_1 = arith.constant 0 : i32
    return %c0_i32, %c0_i32_0 : i32, i32
  }
  func.func @transform_2(%arg0: i32) -> (i32, i32) {
    %c0_i32 = arith.constant 0 : i32
    %c0_i32_0 = arith.constant 0 : i32
    %c0_i32_1 = arith.constant 0 : i32
    return %c0_i32, %c0_i32_0 : i32, i32
  }
  func.func @transform_3(%arg0: i32) -> (i32, i32, i32) {
    %c0_i32 = arith.constant 0 : i32
    %c0_i32_0 = arith.constant 0 : i32
    %c0_i32_1 = arith.constant 0 : i32
    return %arg0, %c0_i32, %c0_i32_0 : i32, i32, i32
  }
}

module attributes {stable_mosaic.version = 11 : i64} {
  func.func @_conv3_kernel(%arg0: i32, %arg1: memref<1x16x96xf32, #tpu.memory_space<vmem>>, %arg2: memref<96x384xf32, #tpu.memory_space<vmem>>, %arg3: memref<1x384xf32, #tpu.memory_space<vmem>>, %arg4: memref<1x48x128xf32, #tpu.memory_space<vmem>>) attributes {dimension_semantics = [#tpu.dimension_semantics<parallel>], iteration_bounds = array<i64: 2>, scalar_prefetch = 0 : i64, scratch_operands = 0 : i64, tpu.core_type = #tpu.core_type<tc>, window_params = [{transform_indices = @transform_0, window_bounds = array<i64: 1, 16, 96>}, {pipeline_mode = #tpu.pipeline_mode<synchronous>, transform_indices = @transform_1, window_bounds = array<i64: 96, 384>}, {pipeline_mode = #tpu.pipeline_mode<synchronous>, transform_indices = @transform_2, window_bounds = array<i64: 1, 384>}, {transform_indices = @transform_3, window_bounds = array<i64: 1, 48, 128>}]} {
    %c0 = arith.constant 0 : index
    %c0_0 = arith.constant 0 : index
    %c0_1 = arith.constant 0 : index
    %0 = vector.load %arg1[%c0, %c0_0, %c0_1] : memref<1x16x96xf32, #tpu.memory_space<vmem>>, vector<1x16x96xf32>
    %1 = vector.shape_cast %0 : vector<1x16x96xf32> to vector<16x96xf32>
    %c0_2 = arith.constant 0 : index
    %c0_3 = arith.constant 0 : index
    %2 = vector.load %arg2[%c0_2, %c0_3] : memref<96x384xf32, #tpu.memory_space<vmem>>, vector<96x384xf32>
    %cst = arith.constant dense<0.000000e+00> : vector<16x384xf32>
    %3 = tpu.matmul %1, %2, %cst {dimension_numbers = #tpu.dot_dimension_numbers<[1], [0], [0], [1], [0, 0, 1, 1], [], []>} : vector<16x96xf32>, vector<96x384xf32>, vector<16x384xf32> -> vector<16x384xf32>
    %c0_4 = arith.constant 0 : index
    %c0_5 = arith.constant 0 : index
    %4 = vector.load %arg3[%c0_4, %c0_5] : memref<1x384xf32, #tpu.memory_space<vmem>>, vector<1x384xf32>
    %5 = vector.broadcast %4 : vector<1x384xf32> to vector<16x384xf32>
    %6 = arith.addf %3, %5 : vector<16x384xf32>
    %7 = vector.shape_cast %6 : vector<16x384xf32> to vector<1x16x384xf32>
    %8 = tpu.iota {dimensions = array<i32: 1>} : vector<1x16x128xi32>
    %9 = vector.extract_strided_slice %7 {offsets = [0, 0, 0], sizes = [1, 16, 128], strides = [1, 1, 1]} : vector<1x16x384xf32> to vector<1x16x128xf32>
    %cst_6 = arith.constant 0.000000e+00 : f32
    %10 = vector.broadcast %cst_6 : f32 to vector<1x16x128xf32>
    %11 = arith.maximumf %9, %10 : vector<1x16x128xf32>
    %cst_7 = arith.constant 9.99999971E-10 : f32
    %12 = vector.broadcast %cst_7 : f32 to vector<1x16x128xf32>
    %13 = arith.addf %11, %12 : vector<1x16x128xf32>
    %14 = arith.mulf %13, %13 : vector<1x16x128xf32>
    %cst_8 = arith.constant dense<0.000000e+00> : vector<1x16xf32>
    %15 = vector.multi_reduction <add>, %14, %cst_8 [2] : vector<1x16x128xf32> to vector<1x16xf32>
    %16 = vector.shape_cast %15 : vector<1x16xf32> to vector<1x16x1xf32>
    %17 = math.sqrt %16 : vector<1x16x1xf32>
    %cst_9 = arith.constant 1.000000e-10 : f32
    %18 = vector.broadcast %cst_9 : f32 to vector<1x16x1xf32>
    %19 = arith.maximumf %17, %18 : vector<1x16x1xf32>
    %20 = vector.broadcast %19 : vector<1x16x1xf32> to vector<1x16x128xf32>
    %21 = arith.divf %13, %20 : vector<1x16x128xf32>
    %c16_i32 = arith.constant 16 : i32
    %22 = vector.broadcast %c16_i32 : i32 to vector<1x16x128xi32>
    %23 = arith.cmpi slt, %8, %22 : vector<1x16x128xi32>
    %cst_10 = arith.constant 0.000000e+00 : f32
    %24 = vector.broadcast %cst_10 : f32 to vector<1x16x128xf32>
    %25 = arith.select %23, %21, %24 : vector<1x16x128xi1>, vector<1x16x128xf32>
    %c0_11 = arith.constant 0 : index
    %c0_12 = arith.constant 0 : index
    %c0_13 = arith.constant 0 : index
    %26 = vector.load %arg4[%c0_11, %c0_12, %c0_13] : memref<1x48x128xf32, #tpu.memory_space<vmem>>, vector<1x16x128xf32>
    tpu.vector_store %arg4[%c0_11, %c0_12, %c0_13], %25 {strides = array<i32>} : memref<1x48x128xf32, #tpu.memory_space<vmem>>, vector<1x16x128xf32>,
    %27 = vector.extract_strided_slice %7 {offsets = [0, 0, 128], sizes = [1, 16, 128], strides = [1, 1, 1]} : vector<1x16x384xf32> to vector<1x16x128xf32>
    %cst_14 = arith.constant 0.000000e+00 : f32
    %28 = vector.broadcast %cst_14 : f32 to vector<1x16x128xf32>
    %29 = arith.maximumf %27, %28 : vector<1x16x128xf32>
    %cst_15 = arith.constant 9.99999971E-10 : f32
    %30 = vector.broadcast %cst_15 : f32 to vector<1x16x128xf32>
    %31 = arith.addf %29, %30 : vector<1x16x128xf32>
    %32 = arith.mulf %31, %31 : vector<1x16x128xf32>
    %cst_16 = arith.constant dense<0.000000e+00> : vector<1x16xf32>
    %33 = vector.multi_reduction <add>, %32, %cst_16 [2] : vector<1x16x128xf32> to vector<1x16xf32>
    %34 = vector.shape_cast %33 : vector<1x16xf32> to vector<1x16x1xf32>
    %35 = math.sqrt %34 : vector<1x16x1xf32>
    %cst_17 = arith.constant 1.000000e-10 : f32
    %36 = vector.broadcast %cst_17 : f32 to vector<1x16x1xf32>
    %37 = arith.maximumf %35, %36 : vector<1x16x1xf32>
    %38 = vector.broadcast %37 : vector<1x16x1xf32> to vector<1x16x128xf32>
    %39 = arith.divf %31, %38 : vector<1x16x128xf32>
    %c15_i32 = arith.constant 15 : i32
    %40 = vector.broadcast %c15_i32 : i32 to vector<1x16x128xi32>
    %41 = arith.cmpi slt, %8, %40 : vector<1x16x128xi32>
    %cst_18 = arith.constant 0.000000e+00 : f32
    %42 = vector.broadcast %cst_18 : f32 to vector<1x16x128xf32>
    %43 = arith.select %41, %39, %42 : vector<1x16x128xi1>, vector<1x16x128xf32>
    %c0_19 = arith.constant 0 : index
    %c16 = arith.constant 16 : index
    %c0_20 = arith.constant 0 : index
    %44 = vector.load %arg4[%c0_19, %c16, %c0_20] : memref<1x48x128xf32, #tpu.memory_space<vmem>>, vector<1x16x128xf32>
    tpu.vector_store %arg4[%c0_19, %c16, %c0_20], %43 {strides = array<i32>} : memref<1x48x128xf32, #tpu.memory_space<vmem>>, vector<1x16x128xf32>,
    %45 = vector.extract_strided_slice %7 {offsets = [0, 0, 256], sizes = [1, 16, 128], strides = [1, 1, 1]} : vector<1x16x384xf32> to vector<1x16x128xf32>
    %cst_21 = arith.constant 0.000000e+00 : f32
    %46 = vector.broadcast %cst_21 : f32 to vector<1x16x128xf32>
    %47 = arith.maximumf %45, %46 : vector<1x16x128xf32>
    %cst_22 = arith.constant 9.99999971E-10 : f32
    %48 = vector.broadcast %cst_22 : f32 to vector<1x16x128xf32>
    %49 = arith.addf %47, %48 : vector<1x16x128xf32>
    %50 = arith.mulf %49, %49 : vector<1x16x128xf32>
    %cst_23 = arith.constant dense<0.000000e+00> : vector<1x16xf32>
    %51 = vector.multi_reduction <add>, %50, %cst_23 [2] : vector<1x16x128xf32> to vector<1x16xf32>
    %52 = vector.shape_cast %51 : vector<1x16xf32> to vector<1x16x1xf32>
    %53 = math.sqrt %52 : vector<1x16x1xf32>
    %cst_24 = arith.constant 1.000000e-10 : f32
    %54 = vector.broadcast %cst_24 : f32 to vector<1x16x1xf32>
    %55 = arith.maximumf %53, %54 : vector<1x16x1xf32>
    %56 = vector.broadcast %55 : vector<1x16x1xf32> to vector<1x16x128xf32>
    %57 = arith.divf %49, %56 : vector<1x16x128xf32>
    %c14_i32 = arith.constant 14 : i32
    %58 = vector.broadcast %c14_i32 : i32 to vector<1x16x128xi32>
    %59 = arith.cmpi slt, %8, %58 : vector<1x16x128xi32>
    %cst_25 = arith.constant 0.000000e+00 : f32
    %60 = vector.broadcast %cst_25 : f32 to vector<1x16x128xf32>
    %61 = arith.select %59, %57, %60 : vector<1x16x128xi1>, vector<1x16x128xf32>
    %c0_26 = arith.constant 0 : index
    %c32 = arith.constant 32 : index
    %c0_27 = arith.constant 0 : index
    %62 = vector.load %arg4[%c0_26, %c32, %c0_27] : memref<1x48x128xf32, #tpu.memory_space<vmem>>, vector<1x16x128xf32>
    tpu.vector_store %arg4[%c0_26, %c32, %c0_27], %61 {strides = array<i32>} : memref<1x48x128xf32, #tpu.memory_space<vmem>>, vector<1x16x128xf32>,
    return
  }
  func.func @transform_0(%arg0: i32) -> (i32, i32, i32) {
    %c0_i32 = arith.constant 0 : i32
    %c0_i32_0 = arith.constant 0 : i32
    %c0_i32_1 = arith.constant 0 : i32
    return %arg0, %c0_i32, %c0_i32_0 : i32, i32, i32
  }
  func.func @transform_1(%arg0: i32) -> (i32, i32) {
    %c0_i32 = arith.constant 0 : i32
    %c0_i32_0 = arith.constant 0 : i32
    %c0_i32_1 = arith.constant 0 : i32
    return %c0_i32, %c0_i32_0 : i32, i32
  }
  func.func @transform_2(%arg0: i32) -> (i32, i32) {
    %c0_i32 = arith.constant 0 : i32
    %c0_i32_0 = arith.constant 0 : i32
    %c0_i32_1 = arith.constant 0 : i32
    return %c0_i32, %c0_i32_0 : i32, i32
  }
  func.func @transform_3(%arg0: i32) -> (i32, i32, i32) {
    %c0_i32 = arith.constant 0 : i32
    %c0_i32_0 = arith.constant 0 : i32
    %c0_i32_1 = arith.constant 0 : i32
    return %arg0, %c0_i32, %c0_i32_0 : i32, i32, i32
  }
}

module attributes {stable_mosaic.version = 11 : i64} {
  func.func @_pool_kernel(%arg0: i32, %arg1: memref<1x24x128xf32, #tpu.memory_space<vmem>>, %arg2: memref<1x128x96xf32, #tpu.memory_space<vmem>>, %arg3: memref<1x3x24xf32, #tpu.memory_space<vmem>>, %arg4: memref<1x1x96xf32, #tpu.memory_space<vmem>>, %arg5: memref<96x6xf32, #tpu.memory_space<vmem>>, %arg6: memref<1x3x66xf32, #tpu.memory_space<vmem>>) attributes {dimension_semantics = [#tpu.dimension_semantics<parallel>], iteration_bounds = array<i64: 2>, scalar_prefetch = 0 : i64, scratch_operands = 0 : i64, tpu.core_type = #tpu.core_type<tc>, window_params = [{transform_indices = @transform_0, window_bounds = array<i64: 1, 24, 128>}, {transform_indices = @transform_1, window_bounds = array<i64: 1, 128, 96>}, {transform_indices = @transform_2, window_bounds = array<i64: 1, 3, 24>}, {transform_indices = @transform_3, window_bounds = array<i64: 1, 1, 96>}, {pipeline_mode = #tpu.pipeline_mode<synchronous>, transform_indices = @transform_4, window_bounds = array<i64: 96, 6>}, {transform_indices = @transform_5, window_bounds = array<i64: 1, 3, 66>}]} {
    %c0 = arith.constant 0 : index
    %c0_0 = arith.constant 0 : index
    %c0_1 = arith.constant 0 : index
    %0 = vector.load %arg1[%c0, %c0_0, %c0_1] : memref<1x24x128xf32, #tpu.memory_space<vmem>>, vector<1x24x128xf32>
    %c0_2 = arith.constant 0 : index
    %c0_3 = arith.constant 0 : index
    %c0_4 = arith.constant 0 : index
    %1 = vector.load %arg2[%c0_2, %c0_3, %c0_4] : memref<1x128x96xf32, #tpu.memory_space<vmem>>, vector<1x128x96xf32>
    "tpu.trace_start"() <{level = 10 : i32, message = "bqc,bcd->bqd"}> : () -> ()
    %cst = arith.constant dense<0.000000e+00> : vector<1x24x96xf32>
    %2 = tpu.matmul %0, %1, %cst {dimension_numbers = #tpu.dot_dimension_numbers<[2], [1], [1], [2], [0, 0, 0, 1, 1, 2], [0], [0]>} : vector<1x24x128xf32>, vector<1x128x96xf32>, vector<1x24x96xf32> -> vector<1x24x96xf32>
    "tpu.trace_stop"() : () -> ()
    %3 = vector.shape_cast %2 : vector<1x24x96xf32> to vector<24x96xf32>
    %c0_5 = arith.constant 0 : index
    %c0_6 = arith.constant 0 : index
    %c0_7 = arith.constant 0 : index
    %4 = vector.load %arg4[%c0_5, %c0_6, %c0_7] : memref<1x1x96xf32, #tpu.memory_space<vmem>>, vector<1x1x96xf32>
    %5 = vector.shape_cast %4 : vector<1x1x96xf32> to vector<1x1x96xf32>
    %6 = vector.broadcast %5 : vector<1x1x96xf32> to vector<1x24x96xf32>
    %7 = vector.shape_cast %6 : vector<1x24x96xf32> to vector<24x96xf32>
    %c0_8 = arith.constant 0 : index
    %c0_9 = arith.constant 0 : index
    %8 = vector.load %arg5[%c0_8, %c0_9] : memref<96x6xf32, #tpu.memory_space<vmem>>, vector<96x6xf32>
    %cst_10 = arith.constant 1.000000e+00 : f32
    %9 = vector.broadcast %cst_10 : f32 to vector<24x96xf32>
    %10 = arith.subf %3, %9 : vector<24x96xf32>
    %11 = arith.mulf %10, %10 : vector<24x96xf32>
    %cst_11 = arith.constant -5.000000e+05 : f32
    %12 = vector.broadcast %cst_11 : f32 to vector<24x96xf32>
    %13 = arith.mulf %11, %12 : vector<24x96xf32>
    %14 = math.exp %13 : vector<24x96xf32>
    %15 = arith.mulf %14, %7 : vector<24x96xf32>
    %cst_12 = arith.constant dense<0.000000e+00> : vector<24x6xf32>
    %16 = tpu.matmul %15, %8, %cst_12 {dimension_numbers = #tpu.dot_dimension_numbers<[1], [0], [0], [1], [0, 0, 1, 1], [], []>} : vector<24x96xf32>, vector<96x6xf32>, vector<24x6xf32> -> vector<24x6xf32>
    %cst_13 = arith.constant 0.899999976 : f32
    %17 = vector.broadcast %cst_13 : f32 to vector<24x96xf32>
    %18 = arith.subf %3, %17 : vector<24x96xf32>
    %19 = arith.mulf %18, %18 : vector<24x96xf32>
    %cst_14 = arith.constant -5.000000e+01 : f32
    %20 = vector.broadcast %cst_14 : f32 to vector<24x96xf32>
    %21 = arith.mulf %19, %20 : vector<24x96xf32>
    %22 = math.exp %21 : vector<24x96xf32>
    %23 = arith.mulf %22, %7 : vector<24x96xf32>
    %cst_15 = arith.constant dense<0.000000e+00> : vector<24x6xf32>
    %24 = tpu.matmul %23, %8, %cst_15 {dimension_numbers = #tpu.dot_dimension_numbers<[1], [0], [0], [1], [0, 0, 1, 1], [], []>} : vector<24x96xf32>, vector<96x6xf32>, vector<24x6xf32> -> vector<24x6xf32>
    %cst_16 = arith.constant 0.699999988 : f32
    %25 = vector.broadcast %cst_16 : f32 to vector<24x96xf32>
    %26 = arith.subf %3, %25 : vector<24x96xf32>
    %27 = arith.mulf %26, %26 : vector<24x96xf32>
    %cst_17 = arith.constant -5.000000e+01 : f32
    %28 = vector.broadcast %cst_17 : f32 to vector<24x96xf32>
    %29 = arith.mulf %27, %28 : vector<24x96xf32>
    %30 = math.exp %29 : vector<24x96xf32>
    %31 = arith.mulf %30, %7 : vector<24x96xf32>
    %cst_18 = arith.constant dense<0.000000e+00> : vector<24x6xf32>
    %32 = tpu.matmul %31, %8, %cst_18 {dimension_numbers = #tpu.dot_dimension_numbers<[1], [0], [0], [1], [0, 0, 1, 1], [], []>} : vector<24x96xf32>, vector<96x6xf32>, vector<24x6xf32> -> vector<24x6xf32>
    %cst_19 = arith.constant 5.000000e-01 : f32
    %33 = vector.broadcast %cst_19 : f32 to vector<24x96xf32>
    %34 = arith.subf %3, %33 : vector<24x96xf32>
    %35 = arith.mulf %34, %34 : vector<24x96xf32>
    %cst_20 = arith.constant -5.000000e+01 : f32
    %36 = vector.broadcast %cst_20 : f32 to vector<24x96xf32>
    %37 = arith.mulf %35, %36 : vector<24x96xf32>
    %38 = math.exp %37 : vector<24x96xf32>
    %39 = arith.mulf %38, %7 : vector<24x96xf32>
    %cst_21 = arith.constant dense<0.000000e+00> : vector<24x6xf32>
    %40 = tpu.matmul %39, %8, %cst_21 {dimension_numbers = #tpu.dot_dimension_numbers<[1], [0], [0], [1], [0, 0, 1, 1], [], []>} : vector<24x96xf32>, vector<96x6xf32>, vector<24x6xf32> -> vector<24x6xf32>
    %cst_22 = arith.constant 3.000000e-01 : f32
    %41 = vector.broadcast %cst_22 : f32 to vector<24x96xf32>
    %42 = arith.subf %3, %41 : vector<24x96xf32>
    %43 = arith.mulf %42, %42 : vector<24x96xf32>
    %cst_23 = arith.constant -5.000000e+01 : f32
    %44 = vector.broadcast %cst_23 : f32 to vector<24x96xf32>
    %45 = arith.mulf %43, %44 : vector<24x96xf32>
    %46 = math.exp %45 : vector<24x96xf32>
    %47 = arith.mulf %46, %7 : vector<24x96xf32>
    %cst_24 = arith.constant dense<0.000000e+00> : vector<24x6xf32>
    %48 = tpu.matmul %47, %8, %cst_24 {dimension_numbers = #tpu.dot_dimension_numbers<[1], [0], [0], [1], [0, 0, 1, 1], [], []>} : vector<24x96xf32>, vector<96x6xf32>, vector<24x6xf32> -> vector<24x6xf32>
    %cst_25 = arith.constant 1.000000e-01 : f32
    %49 = vector.broadcast %cst_25 : f32 to vector<24x96xf32>
    %50 = arith.subf %3, %49 : vector<24x96xf32>
    %51 = arith.mulf %50, %50 : vector<24x96xf32>
    %cst_26 = arith.constant -5.000000e+01 : f32
    %52 = vector.broadcast %cst_26 : f32 to vector<24x96xf32>
    %53 = arith.mulf %51, %52 : vector<24x96xf32>
    %54 = math.exp %53 : vector<24x96xf32>
    %55 = arith.mulf %54, %7 : vector<24x96xf32>
    %cst_27 = arith.constant dense<0.000000e+00> : vector<24x6xf32>
    %56 = tpu.matmul %55, %8, %cst_27 {dimension_numbers = #tpu.dot_dimension_numbers<[1], [0], [0], [1], [0, 0, 1, 1], [], []>} : vector<24x96xf32>, vector<96x6xf32>, vector<24x6xf32> -> vector<24x6xf32>
    %cst_28 = arith.constant -1.000000e-01 : f32
    %57 = vector.broadcast %cst_28 : f32 to vector<24x96xf32>
    %58 = arith.subf %3, %57 : vector<24x96xf32>
    %59 = arith.mulf %58, %58 : vector<24x96xf32>
    %cst_29 = arith.constant -5.000000e+01 : f32
    %60 = vector.broadcast %cst_29 : f32 to vector<24x96xf32>
    %61 = arith.mulf %59, %60 : vector<24x96xf32>
    %62 = math.exp %61 : vector<24x96xf32>
    %63 = arith.mulf %62, %7 : vector<24x96xf32>
    %cst_30 = arith.constant dense<0.000000e+00> : vector<24x6xf32>
    %64 = tpu.matmul %63, %8, %cst_30 {dimension_numbers = #tpu.dot_dimension_numbers<[1], [0], [0], [1], [0, 0, 1, 1], [], []>} : vector<24x96xf32>, vector<96x6xf32>, vector<24x6xf32> -> vector<24x6xf32>
    %cst_31 = arith.constant -3.000000e-01 : f32
    %65 = vector.broadcast %cst_31 : f32 to vector<24x96xf32>
    %66 = arith.subf %3, %65 : vector<24x96xf32>
    %67 = arith.mulf %66, %66 : vector<24x96xf32>
    %cst_32 = arith.constant -5.000000e+01 : f32
    %68 = vector.broadcast %cst_32 : f32 to vector<24x96xf32>
    %69 = arith.mulf %67, %68 : vector<24x96xf32>
    %70 = math.exp %69 : vector<24x96xf32>
    %71 = arith.mulf %70, %7 : vector<24x96xf32>
    %cst_33 = arith.constant dense<0.000000e+00> : vector<24x6xf32>
    %72 = tpu.matmul %71, %8, %cst_33 {dimension_numbers = #tpu.dot_dimension_numbers<[1], [0], [0], [1], [0, 0, 1, 1], [], []>} : vector<24x96xf32>, vector<96x6xf32>, vector<24x6xf32> -> vector<24x6xf32>
    %cst_34 = arith.constant -5.000000e-01 : f32
    %73 = vector.broadcast %cst_34 : f32 to vector<24x96xf32>
    %74 = arith.subf %3, %73 : vector<24x96xf32>
    %75 = arith.mulf %74, %74 : vector<24x96xf32>
    %cst_35 = arith.constant -5.000000e+01 : f32
    %76 = vector.broadcast %cst_35 : f32 to vector<24x96xf32>
    %77 = arith.mulf %75, %76 : vector<24x96xf32>
    %78 = math.exp %77 : vector<24x96xf32>
    %79 = arith.mulf %78, %7 : vector<24x96xf32>
    %cst_36 = arith.constant dense<0.000000e+00> : vector<24x6xf32>
    %80 = tpu.matmul %79, %8, %cst_36 {dimension_numbers = #tpu.dot_dimension_numbers<[1], [0], [0], [1], [0, 0, 1, 1], [], []>} : vector<24x96xf32>, vector<96x6xf32>, vector<24x6xf32> -> vector<24x6xf32>
    %cst_37 = arith.constant -0.699999988 : f32
    %81 = vector.broadcast %cst_37 : f32 to vector<24x96xf32>
    %82 = arith.subf %3, %81 : vector<24x96xf32>
    %83 = arith.mulf %82, %82 : vector<24x96xf32>
    %cst_38 = arith.constant -5.000000e+01 : f32
    %84 = vector.broadcast %cst_38 : f32 to vector<24x96xf32>
    %85 = arith.mulf %83, %84 : vector<24x96xf32>
    %86 = math.exp %85 : vector<24x96xf32>
    %87 = arith.mulf %86, %7 : vector<24x96xf32>
    %cst_39 = arith.constant dense<0.000000e+00> : vector<24x6xf32>
    %88 = tpu.matmul %87, %8, %cst_39 {dimension_numbers = #tpu.dot_dimension_numbers<[1], [0], [0], [1], [0, 0, 1, 1], [], []>} : vector<24x96xf32>, vector<96x6xf32>, vector<24x6xf32> -> vector<24x6xf32>
    %cst_40 = arith.constant -0.899999976 : f32
    %89 = vector.broadcast %cst_40 : f32 to vector<24x96xf32>
    %90 = arith.subf %3, %89 : vector<24x96xf32>
    %91 = arith.mulf %90, %90 : vector<24x96xf32>
    %cst_41 = arith.constant -5.000000e+01 : f32
    %92 = vector.broadcast %cst_41 : f32 to vector<24x96xf32>
    %93 = arith.mulf %91, %92 : vector<24x96xf32>
    %94 = math.exp %93 : vector<24x96xf32>
    %95 = arith.mulf %94, %7 : vector<24x96xf32>
    %cst_42 = arith.constant dense<0.000000e+00> : vector<24x6xf32>
    %96 = tpu.matmul %95, %8, %cst_42 {dimension_numbers = #tpu.dot_dimension_numbers<[1], [0], [0], [1], [0, 0, 1, 1], [], []>} : vector<24x96xf32>, vector<96x6xf32>, vector<24x6xf32> -> vector<24x6xf32>
    %97 = tpu.concatenate %16, %24, %32, %40, %48, %56, %64, %72, %80, %88, %96 in 1 : vector<24x6xf32>, vector<24x6xf32>, vector<24x6xf32>, vector<24x6xf32>, vector<24x6xf32>, vector<24x6xf32>, vector<24x6xf32>, vector<24x6xf32>, vector<24x6xf32>, vector<24x6xf32>, vector<24x6xf32> -> vector<24x66xf32>
    %cst_43 = arith.constant 1.000000e-10 : f32
    %98 = vector.broadcast %cst_43 : f32 to vector<24x66xf32>
    %99 = arith.maximumf %97, %98 : vector<24x66xf32>
    %100 = math.log %99 : vector<24x66xf32>
    %101 = vector.shape_cast %100 : vector<24x66xf32> to vector<1x24x66xf32>
    %c0_44 = arith.constant 0 : index
    %c0_45 = arith.constant 0 : index
    %c0_46 = arith.constant 0 : index
    %102 = vector.load %arg3[%c0_44, %c0_45, %c0_46] : memref<1x3x24xf32, #tpu.memory_space<vmem>>, vector<1x3x24xf32>
    "tpu.trace_start"() <{level = 10 : i32, message = "bkq,bqf->bkf"}> : () -> ()
    %cst_47 = arith.constant dense<0.000000e+00> : vector<1x3x66xf32>
    %103 = tpu.matmul %102, %101, %cst_47 {dimension_numbers = #tpu.dot_dimension_numbers<[2], [1], [1], [2], [0, 0, 0, 1, 1, 2], [0], [0]>} : vector<1x3x24xf32>, vector<1x24x66xf32>, vector<1x3x66xf32> -> vector<1x3x66xf32>
    "tpu.trace_stop"() : () -> ()
    %c0_48 = arith.constant 0 : index
    %c0_49 = arith.constant 0 : index
    %c0_50 = arith.constant 0 : index
    %104 = vector.load %arg6[%c0_48, %c0_49, %c0_50] : memref<1x3x66xf32, #tpu.memory_space<vmem>>, vector<1x3x66xf32>
    tpu.vector_store %arg6[%c0_48, %c0_49, %c0_50], %103 {strides = array<i32>} : memref<1x3x66xf32, #tpu.memory_space<vmem>>, vector<1x3x66xf32>,
    return
  }
  func.func @transform_0(%arg0: i32) -> (i32, i32, i32) {
    %c0_i32 = arith.constant 0 : i32
    %c0_i32_0 = arith.constant 0 : i32
    %c0_i32_1 = arith.constant 0 : i32
    return %arg0, %c0_i32, %c0_i32_0 : i32, i32, i32
  }
  func.func @transform_1(%arg0: i32) -> (i32, i32, i32) {
    %c0_i32 = arith.constant 0 : i32
    %c0_i32_0 = arith.constant 0 : i32
    %c0_i32_1 = arith.constant 0 : i32
    return %arg0, %c0_i32, %c0_i32_0 : i32, i32, i32
  }
  func.func @transform_2(%arg0: i32) -> (i32, i32, i32) {
    %c0_i32 = arith.constant 0 : i32
    %c0_i32_0 = arith.constant 0 : i32
    %c0_i32_1 = arith.constant 0 : i32
    return %arg0, %c0_i32, %c0_i32_0 : i32, i32, i32
  }
  func.func @transform_3(%arg0: i32) -> (i32, i32, i32) {
    %c0_i32 = arith.constant 0 : i32
    %c0_i32_0 = arith.constant 0 : i32
    %c0_i32_1 = arith.constant 0 : i32
    return %arg0, %c0_i32, %c0_i32_0 : i32, i32, i32
  }
  func.func @transform_4(%arg0: i32) -> (i32, i32) {
    %c0_i32 = arith.constant 0 : i32
    %c0_i32_0 = arith.constant 0 : i32
    %c0_i32_1 = arith.constant 0 : i32
    return %c0_i32, %c0_i32_0 : i32, i32
  }
  func.func @transform_5(%arg0: i32) -> (i32, i32, i32) {
    %c0_i32 = arith.constant 0 : i32
    %c0_i32_0 = arith.constant 0 : i32
    %c0_i32_1 = arith.constant 0 : i32
    return %arg0, %c0_i32, %c0_i32_0 : i32, i32, i32
  }
}

</mosaic_0001>

<llo_original>
// kernel: forward.6
$region0: #{forward.6}
  #allocation0 [shape = 'u32[]', space=smem, size = 0x4, offset = 0x4, fixed_abs, tag = 'smem constant byte address 0x4 - core index']
  #allocation1 [shape = 'u32[144,128]{1,0:T(1,128)}', space=vmem, size = 0x12000, scoped, tag = 'internal scratch']
  %s0 = inlined_call_operand.vmem [shape: f32[2,16,96], index: 0, kind: input, shape index: {}]
  %s1 = inlined_call_operand.vmem [shape: f32[96,384], index: 1, kind: input, shape index: {}]
  %s2 = inlined_call_operand.vmem [shape: f32[1,384], index: 2, kind: input, shape index: {}]
  %s3 = inlined_call_operand.vmem [shape: f32[2,48,128], index: 3, kind: output, shape index: {}]
  %s4 = sld [smem:[#allocation0]]
  $region45: #{forward.6} parent=0
    _
  %s6 = ssub.s32 1, %s4
  %s7 = scalar_select 0, %s6, %s4
  loop: start=0, step=1, limit=4
  $region2: #{forward.6} parent=0 // loop_pre_header
    _
  $region3: #{forward.6} parent=0 // loop_header
    %s9 = sphi 0, %s13
    %p10 = scmp.ge.s32.totalorder %s9, 4
    %s19 = sphi 0, %s21
    %s22 = sphi 0, %s19
    %s23 = sphi 0, %s22
    %s39 = sphi 0, %s23
    %s43 = sphi 0, %s43
    %s45 = sphi 0, %s43
    %s46 = sphi 0, %s45
    %s60 = sphi 0, %s46
    %s64 = sphi 0, %s64
    %s66 = sphi 0, %s64
    %s67 = sphi 0, %s66
    %s81 = sphi 0, %s67
    %s87 = sphi 0, %s89
    %s90 = sphi 0, %s87
    %s91 = sphi 0, %s90
    %s107 = sphi 0, %s91
  $region4: #{forward.6} parent=0 // loop_header_branch
    %12 = sbr.rel (%p10) target = $region8
  $region5: #{forward.6} parent=0 // loop_body
    %s14 = ssub.s32 %s9, 1
    %s15 = ssub.s32 %s9, 2
    %s16 = sadd.s32 %s9, 1
    %s17 = ssub.s32 %s9, %s16
    %p18 = scmp.eq.s32.totalorder %s17, 0
    %s20 = sadd.s32 %s19, 1
    %s21 = scalar_select %p18, %s19, %s20
    %p24 = pneg %p18
    %p25 = scmp.eq.s32.totalorder %s9, 1
    %p26 = por %p24, %p25
    %p27 = scmp.ne.s32.totalorder %s19, %s22
    %p28 = scmp.eq.s32.totalorder %s9, 0
    %p29 = por %p27, %p28
    %p30 = scmp.ne.s32.totalorder %s19, %s22
    %p31 = scmp.eq.s32.totalorder %s14, 1
    %p32 = por %p30, %p31
    %p33 = scmp.ne.s32.totalorder %s22, %s23
    %p34 = scmp.eq.s32.totalorder %s14, 0
    %p35 = por %p33, %p34
    %p36 = scmp.ne.s32.totalorder %s22, %s23
    %p37 = scmp.eq.s32.totalorder %s15, 1
    %p38 = por %p36, %p37
    %p40 = scmp.ne.s32.totalorder %s23, %s39
    %p41 = scmp.eq.s32.totalorder %s15, 0
    %p42 = por %p40, %p41
    %s44 = sadd.s32 %s43, 1
    %p47 = scmp.eq.s32.totalorder %s9, 1
    %p48 = scmp.ne.s32.totalorder %s43, %s45
    %p49 = scmp.eq.s32.totalorder %s9, 0
    %p50 = por %p48, %p49
    %p51 = scmp.ne.s32.totalorder %s43, %s45
    %p52 = scmp.eq.s32.totalorder %s14, 1
    %p53 = por %p51, %p52
    %p54 = scmp.ne.s32.totalorder %s45, %s46
    %p55 = scmp.eq.s32.totalorder %s14, 0
    %p56 = por %p54, %p55
    %p57 = scmp.ne.s32.totalorder %s45, %s46
    %p58 = scmp.eq.s32.totalorder %s15, 1
    %p59 = por %p57, %p58
    %p61 = scmp.ne.s32.totalorder %s46, %s60
    %p62 = scmp.eq.s32.totalorder %s15, 0
    %p63 = por %p61, %p62
    %s65 = sadd.s32 %s64, 1
    %p68 = scmp.eq.s32.totalorder %s9, 1
    %p69 = scmp.ne.s32.totalorder %s64, %s66
    %p70 = scmp.eq.s32.totalorder %s9, 0
    %p71 = por %p69, %p70
    %p72 = scmp.ne.s32.totalorder %s64, %s66
    %p73 = scmp.eq.s32.totalorder %s14, 1
    %p74 = por %p72, %p73
    %p75 = scmp.ne.s32.totalorder %s66, %s67
    %p76 = scmp.eq.s32.totalorder %s14, 0
    %p77 = por %p75, %p76
    %p78 = scmp.ne.s32.totalorder %s66, %s67
    %p79 = scmp.eq.s32.totalorder %s15, 1
    %p80 = por %p78, %p79
    %p82 = scmp.ne.s32.totalorder %s67, %s81
    %p83 = scmp.eq.s32.totalorder %s15, 0
    %p84 = por %p82, %p83
    %s85 = ssub.s32 %s9, %s16
    %p86 = scmp.eq.s32.totalorder %s85, 0
    %s88 = sadd.s32 %s87, 1
    %s89 = scalar_select %p86, %s87, %s88
    %p92 = pneg %p86
    %p93 = scmp.eq.s32.totalorder %s9, 1
    %p94 = por %p92, %p93
    %p95 = scmp.ne.s32.totalorder %s87, %s90
    %p96 = scmp.eq.s32.totalorder %s9, 0
    %p97 = por %p95, %p96
    %p98 = scmp.ne.s32.totalorder %s87, %s90
    %p99 = scmp.eq.s32.totalorder %s14, 1
    %p100 = por %p98, %p99
    %p101 = scmp.ne.s32.totalorder %s90, %s91
    %p102 = scmp.eq.s32.totalorder %s14, 0
    %p103 = por %p101, %p102
    %p104 = scmp.ne.s32.totalorder %s90, %s91
    %p105 = scmp.eq.s32.totalorder %s15, 1
    %p106 = por %p104, %p105
    %p108 = scmp.ne.s32.totalorder %s91, %s107
    %p109 = scmp.eq.s32.totalorder %s15, 0
    %p110 = por %p108, %p109
    %p111 = scmp.le.s32.totalorder 1, %s9
    %p112 = scmp.lt.s32.totalorder %s9, 3
    %p113 = pnand %p111, %p112
    %p114 = pneg %p113
    // Predicated region
    $region9: #{forward.6} parent=5 // pred_check
      _
    $region10: #{forward.6} parent=5 // pred_check_branch
      %116 = sbr.rel (%p113) target = $region12
    $region11: #{forward.6} parent=5 // pred_region
      %s117 = ssub.s32 %s9, 1
      // Predicated region
      $region13: #{forward.6} parent=11 // pred_check
        %p118 = pneg %p56
      $region14: #{forward.6} parent=11 // pred_check_branch
        %120 = sbr.rel (%p118) target = $region16
      $region15: #{forward.6} parent=11 // pred_region
        _
      $region16: #{forward.6} parent=11 // pred_fallthru
        _
      // Predicated region
      $region17: #{forward.6} parent=11 // pred_check
        %p121 = pneg %p77
      $region18: #{forward.6} parent=11 // pred_check_branch
        %123 = sbr.rel (%p121) target = $region20
      $region19: #{forward.6} parent=11 // pred_region
        _
      $region20: #{forward.6} parent=11 // pred_fallthru
        _
    $region12: #{forward.6} parent=5 // pred_fallthru
      _
    %p124 = scmp.lt.s32.totalorder %s9, 2
    // Predicated region
    $region21: #{forward.6} parent=5 // pred_check
      %p125 = pneg %p124
    $region22: #{forward.6} parent=5 // pred_check_branch
      %127 = sbr.rel (%p125) target = $region24
    $region23: #{forward.6} parent=5 // pred_region
      // Predicated region
      $region25: #{forward.6} parent=23 // pred_check
        %p128 = pneg %p29
      $region26: #{forward.6} parent=23 // pred_check_branch
        %130 = sbr.rel (%p128) target = $region28
      $region27: #{forward.6} parent=23 // pred_region
        %p131 = scmp.lt.s32.totalorder %s9, 1
        %s132 = scalar_select %p131, %s9, 1
        %s133 = smul.addr %s132, 2
        %s134 = smul.addr %s133, 8
        %s135 = scalar_lea.vmem %s0, %s134
      $region28: #{forward.6} parent=23 // pred_fallthru
        _
    $region24: #{forward.6} parent=5 // pred_fallthru
      _
    %p136 = scmp.le.s32.totalorder 1, %s9
    %p137 = scmp.lt.s32.totalorder %s9, 3
    %p138 = pnand %p136, %p137
    %p139 = pneg %p138
    // Predicated region
    $region29: #{forward.6} parent=5 // pred_check
      _
    $region30: #{forward.6} parent=5 // pred_check_branch
      %141 = sbr.rel (%p138) target = $region32
    $region31: #{forward.6} parent=5 // pred_region
      %s142 = ssub.s32 %s9, 1
      %p143 = scmp.lt.s32.totalorder %s14, 1
      %s144 = scalar_select %p143, %s14, 1
      %s145 = smul.addr %s144, 2
      %s146 = smul.addr %s145, 8
      %s147 = scalar_lea.vmem %s0, %s146
      %p148 = pneg %p35
      %p149 = pneg %p32
      %p150 = pneg %p56
      %p151 = pneg %p53
      %p152 = pneg %p77
      %p153 = pneg %p74
      %p154 = pneg %p103
      %p155 = pneg %p100
      %p156 = scmp.lt.s32.totalorder %s14, 1
      %s157 = scalar_select %p156, %s14, 1
      %s158 = smul.addr %s157, 6
      %s159 = smul.addr %s158, 8
      %s160 = scalar_lea.vmem %s3, %s159
      %p161 = scmp.lt.s32.totalorder %s14, 1
      %s162 = scalar_select %p161, %s14, 1
      %s163 = smul.addr %s162, 2
      %s164 = smul.addr %s163, 8
      %s165 = scalar_lea.vmem %s0, %s164
      %p166 = scmp.lt.s32.totalorder %s14, 1
      %s167 = scalar_select %p166, %s14, 1
      %s168 = smul.addr %s167, 6
      %s169 = smul.addr %s168, 8
      %s170 = scalar_lea.vmem %s3, %s169
      %v171 = vld [vmem:[%s165] sm:$0xff]
      %v172 = vld [vmem:[%s165 + $0x8] sm:$0xff]
      %v173 = vld [vmem:[%s1] sm:$0xff]
      %v174 = vld [vmem:[%s1 + $0x8] sm:$0xff]
      %v175 = vld [vmem:[%s1 + $0x10] sm:$0xff]
      %v176 = vld [vmem:[%s1 + $0x18] sm:$0xff]
      %v177 = vld [vmem:[%s1 + $0x20] sm:$0xff]
      %v178 = vld [vmem:[%s1 + $0x28] sm:$0xff]
      %v179 = vld [vmem:[%s1 + $0x30] sm:$0xff]
      %v180 = vld [vmem:[%s1 + $0x38] sm:$0xff]
      %v181 = vld [vmem:[%s1 + $0x40] sm:$0xff]
      %v182 = vld [vmem:[%s1 + $0x48] sm:$0xff]
      %v183 = vld [vmem:[%s1 + $0x50] sm:$0xff]
      %v184 = vld [vmem:[%s1 + $0x58] sm:$0xff]
      %v185 = vld [vmem:[%s1 + $0x60] sm:$0xff]
      %v186 = vld [vmem:[%s1 + $0x68] sm:$0xff]
      %v187 = vld [vmem:[%s1 + $0x70] sm:$0xff]
      %v188 = vld [vmem:[%s1 + $0x78] sm:$0xff]
      %v189 = vld [vmem:[%s1 + $0x80] sm:$0xff]
      %v190 = vld [vmem:[%s1 + $0x88] sm:$0xff]
      %v191 = vld [vmem:[%s1 + $0x90] sm:$0xff]
      %v192 = vld [vmem:[%s1 + $0x98] sm:$0xff]
      %v193 = vld [vmem:[%s1 + $0xa0] sm:$0xff]
      %v194 = vld [vmem:[%s1 + $0xa8] sm:$0xff]
      %v195 = vld [vmem:[%s1 + $0xb0] sm:$0xff]
      %v196 = vld [vmem:[%s1 + $0xb8] sm:$0xff]
      %v197 = vld [vmem:[%s1 + $0xc0] sm:$0xff]
      %v198 = vld [vmem:[%s1 + $0xc8] sm:$0xff]
      %v199 = vld [vmem:[%s1 + $0xd0] sm:$0xff]
      %v200 = vld [vmem:[%s1 + $0xd8] sm:$0xff]
      %v201 = vld [vmem:[%s1 + $0xe0] sm:$0xff]
      %v202 = vld [vmem:[%s1 + $0xe8] sm:$0xff]
      %v203 = vld [vmem:[%s1 + $0xf0] sm:$0xff]
      %v204 = vld [vmem:[%s1 + $0xf8] sm:$0xff]
      %v205 = vld [vmem:[%s1 + $0x100] sm:$0xff]
      %v206 = vld [vmem:[%s1 + $0x108] sm:$0xff]
      %v207 = vld [vmem:[%s1 + $0x110] sm:$0xff]
      %v208 = vld [vmem:[%s1 + $0x118] sm:$0xff]
      %v209 = vld [vmem:[%s2] sm:$0x7]
      %v211 = vlaneseq
      %v212 = vshrl.u32 %v211, 7
      %v213 = vsub.s32 0, %v212
      %v214 = vrot.slane %v209, %v213
      %v215 = vlaneseq
      %v216 = vshrl.u32 %v215, 7
      %v217 = vsub.s32 1, %v216
      %v218 = vrot.slane %v209, %v217
      %v219 = vlaneseq
      %v220 = vshrl.u32 %v219, 7
      %v221 = vsub.s32 2, %v220
      %v222 = vrot.slane %v209, %v221
      %vm226 = vcmask 785408
      %v228 = vsel %vm226, %v171, 0
      %v231 = vsel %vm226, %v172, 0
      %233 = vmatprep.subr.mxu0 %v174
      %234 = vmatpush1.msra.mxu0 %v173
      %235 = vmatprep.subr.mxu0 %v177
      %236 = vmatpush1.msra.mxu0 %v176
      %237 = vmatprep.subr.mxu0 %v180
      %238 = vmatpush1.msra.mxu0 %v179
      %239 = vmatprep.subr.mxu0 %v183
      %240 = vmatpush1.msra.mxu0 %v182
      %241 = vmatprep.subr.mxu0 %v186
      %242 = vmatpush1.msra.mxu0 %v185
      %243 = vmatprep.subr.mxu0 %v189
      %244 = vmatpush1.msra.mxu0 %v188
      %245 = vmatprep.subr.mxu0 %v192
      %246 = vmatpush1.msra.mxu0 %v191
      %247 = vmatprep.subr.mxu0 %v195
      %248 = vmatpush1.msra.mxu0 %v194
      %249 = vmatprep.subr.mxu0 %v198
      %250 = vmatpush1.msra.mxu0 %v197
      %251 = vmatprep.subr.mxu0 %v201
      %252 = vmatpush1.msra.mxu0 %v200
      %253 = vmatprep.subr.mxu0 %v204
      %254 = vmatpush1.msra.mxu0 %v203
      %255 = vmatprep.subr.mxu0 %v207
      %256 = vmatpush1.msra.mxu0 %v206
      %257 = vmatprep.subr.mxu0 0.0
      %258 = vmatpush1.msra.mxu0 0.0
      %259 = vmatprep.subr.mxu0 0.0
      %260 = vmatpush1.msra.mxu0 0.0
      %261 = vmatprep.subr.mxu0 0.0
      %262 = vmatpush1.msra.mxu0 0.0
      %263 = vmatprep.subr.mxu0 0.0
      %264 = vmatpush1.msra.mxu0 0.0
      %265 = vmatprep.subr.mxu0 0.0
      %266 = vmatpush1.msra.mxu0 0.0
      %267 = vmatprep.subr.mxu0 0.0
      %268 = vmatpush1.msra.mxu0 0.0
      %269 = vmatprep.subr.mxu0 0.0
      %270 = vmatpush1.msra.mxu0 0.0
      %271 = vmatprep.subr.mxu0 0.0
      %272 = vmatpush1.msra.mxu0 0.0
      %273 = vmatprep.subr.mxu0 0.0
      %274 = vmatpush1.msra.mxu0 0.0
      %275 = vmatprep.subr.mxu0 0.0
      %276 = vmatpush1.msra.mxu0 0.0
      %277 = vmatprep.subr.mxu0 0.0
      %278 = vmatpush1.msra.mxu0 0.0
      %279 = vmatprep.subr.mxu0 0.0
      %280 = vmatpush1.msra.mxu0 0.0
      %281 = vmatprep.subr.mxu0 0.0
      %282 = vmatpush1.msra.mxu0 0.0
      %283 = vmatprep.subr.mxu0 0.0
      %284 = vmatpush1.msra.mxu0 0.0
      %285 = vmatprep.subr.mxu0 0.0
      %286 = vmatpush1.msra.mxu0 0.0
      %287 = vmatprep.subr.mxu0 0.0
      %288 = vmatpush1.msra.mxu0 0.0
      %289 = vmatprep.subr.mxu0 0.0
      %290 = vmatpush1.msra.mxu0 0.0
      %291 = vmatprep.subr.mxu0 0.0
      %292 = vmatpush1.msra.mxu0 0.0
      %293 = vmatprep.subr.mxu0 0.0
      %294 = vmatpush1.msra.mxu0 0.0
      %295 = vmatprep.subr.mxu0 0.0
      %296 = vmatpush1.msra.mxu0 0.0
      %297 = vmatprep.mubr.f32.mxu0 0.0
      %298 = vmatmul.mubr.f32.gmra.mrb[0].mxu0 %v228
      %v299 = vpop.f32.mrb[0].mxu0
      %v300 = vadd.f32 %v214, %v299
      %v301 = vpop.f32.mrb[0].mxu0
      %v302 = vadd.f32 %v218, %v301
      %303 = vmatprep.mubr.f32.mxu0 0.0
      %304 = vmatmul.mubr.f32.gmra.mrb[0].mxu0 %v231
      %v305 = vpop.f32.mrb[0].mxu0
      %v306 = vadd.f32 %v214, %v305
      %v307 = vpop.f32.mrb[0].mxu0
      %v308 = vadd.f32 %v218, %v307
      %309 = vdwg.mxu0
      %310 = vmatprep.subr.mxu0 0.0
      %311 = vmatpush1.msra.mxu0 %v175
      %312 = vmatprep.subr.mxu0 0.0
      %313 = vmatpush1.msra.mxu0 %v178
      %314 = vmatprep.subr.mxu0 0.0
      %315 = vmatpush1.msra.mxu0 %v181
      %316 = vmatprep.subr.mxu0 0.0
      %317 = vmatpush1.msra.mxu0 %v184
      %318 = vmatprep.subr.mxu0 0.0
      %319 = vmatpush1.msra.mxu0 %v187
      %320 = vmatprep.subr.mxu0 0.0
      %321 = vmatpush1.msra.mxu0 %v190
      %322 = vmatprep.subr.mxu0 0.0
      %323 = vmatpush1.msra.mxu0 %v193
      %324 = vmatprep.subr.mxu0 0.0
      %325 = vmatpush1.msra.mxu0 %v196
      %326 = vmatprep.subr.mxu0 0.0
      %327 = vmatpush1.msra.mxu0 %v199
      %328 = vmatprep.subr.mxu0 0.0
      %329 = vmatpush1.msra.mxu0 %v202
      %330 = vmatprep.subr.mxu0 0.0
      %331 = vmatpush1.msra.mxu0 %v205
      %332 = vmatprep.subr.mxu0 0.0
      %333 = vmatpush1.msra.mxu0 %v208
      %334 = vmatprep.subr.mxu0 0.0
      %335 = vmatpush1.msra.mxu0 0.0
      %336 = vmatprep.subr.mxu0 0.0
      %337 = vmatpush1.msra.mxu0 0.0
      %338 = vmatprep.subr.mxu0 0.0
      %339 = vmatpush1.msra.mxu0 0.0
      %340 = vmatprep.subr.mxu0 0.0
      %341 = vmatpush1.msra.mxu0 0.0
      %342 = vmatprep.subr.mxu0 0.0
      %343 = vmatpush1.msra.mxu0 0.0
      %344 = vmatprep.subr.mxu0 0.0
      %345 = vmatpush1.msra.mxu0 0.0
      %346 = vmatprep.subr.mxu0 0.0
      %347 = vmatpush1.msra.mxu0 0.0
      %348 = vmatprep.subr.mxu0 0.0
      %349 = vmatpush1.msra.mxu0 0.0
      %350 = vmatprep.subr.mxu0 0.0
      %351 = vmatpush1.msra.mxu0 0.0
      %352 = vmatprep.subr.mxu0 0.0
      %353 = vmatpush1.msra.mxu0 0.0
      %354 = vmatprep.subr.mxu0 0.0
      %355 = vmatpush1.msra.mxu0 0.0
      %356 = vmatprep.subr.mxu0 0.0
      %357 = vmatpush1.msra.mxu0 0.0
      %358 = vmatprep.subr.mxu0 0.0
      %359 = vmatpush1.msra.mxu0 0.0
      %360 = vmatprep.subr.mxu0 0.0
      %361 = vmatpush1.msra.mxu0 0.0
      %362 = vmatprep.subr.mxu0 0.0
      %363 = vmatpush1.msra.mxu0 0.0
      %364 = vmatprep.subr.mxu0 0.0
      %365 = vmatpush1.msra.mxu0 0.0
      %366 = vmatprep.subr.mxu0 0.0
      %367 = vmatpush1.msra.mxu0 0.0
      %368 = vmatprep.subr.mxu0 0.0
      %369 = vmatpush1.msra.mxu0 0.0
      %370 = vmatprep.subr.mxu0 0.0
      %371 = vmatpush1.msra.mxu0 0.0
      %372 = vmatprep.subr.mxu0 0.0
      %373 = vmatpush1.msra.mxu0 0.0
      %374 = vmatprep.mubr.f32.mxu0 0.0
      %375 = vmatmul.mubr.f32.gmra.mrb[0].mxu0 %v228
      %v376 = vpop.f32.mrb[0].mxu0
      %v377 = vadd.f32 %v222, %v376
      %v378 = vpop.f32.mrb[0].mxu0
      %379 = vmatprep.mubr.f32.mxu0 0.0
      %380 = vmatmul.mubr.f32.gmra.mrb[0].mxu0 %v231
      %v381 = vpop.f32.mrb[0].mxu0
      %v382 = vadd.f32 %v222, %v381
      %v383 = vpop.f32.mrb[0].mxu0
      %384 = vdwg.mxu0
      %v385 = vlaneseq
      %v386 = vshrl.u32 %v385, 7
      %v387 = vadd.s32 %v386, 8
      %v388 = vmax.f32 %v300, 0.0
      %v389 = vmax.f32 %v306, 0.0
      %v390 = vadd.f32 %v388, 1e-09
      %v391 = vadd.f32 %v389, 1e-09
      %v392 = vmul.f32 %v390, %v390
      %v393 = vmul.f32 %v391, %v391
      %394 = vadd.xlane.f32.xlu0 %v392
      %v395 = vpop.xlane.xlu0 %394
      %396 = vadd.xlane.f32.xlu0 %v393
      %v397 = vpop.xlane.xlu0 %396
      %v398 = vrsqrt.pop %v395
      %v399 = vmul.f32 %v395, %v398
      %vm400 = vcmp.eq.f32.partialorder %v395, inf
      %v401 = vsel %vm400, %v395, %v399
      %vm402 = vcmp.eq.f32.partialorder %v395, 0.0
      %v403 = vand.u32 %v395, 2147483648
      %v404 = vsel %vm402, %v403, %v401
      %v405 = vrsqrt.pop %v397
      %v406 = vmul.f32 %v397, %v405
      %vm407 = vcmp.eq.f32.partialorder %v397, inf
      %v408 = vsel %vm407, %v397, %v406
      %vm409 = vcmp.eq.f32.partialorder %v397, 0.0
      %v410 = vand.u32 %v397, 2147483648
      %v411 = vsel %vm409, %v410, %v408
      %v412 = vmax.f32 %v404, 1e-10
      %v413 = vmax.f32 %v411, 1e-10
      %v414 = vrcp.pop %v412
      %v415 = vmul.f32 %v390, %v414
      %v416 = vrcp.pop %v413
      %v417 = vmul.f32 %v391, %v416
      %vm418 = vcmp.lt.s32.totalorder %v386, 16
      %vm419 = vcmp.lt.s32.totalorder %v387, 16
      %v420 = vsel %vm418, %v415, 0.0
      %v421 = vsel %vm419, %v417, 0.0
      %422 = vst [vmem:[%s170] sm:$0xff] %v420
      %423 = vst [vmem:[%s170 + $0x8] sm:$0xff] %v421
      %v424 = vmax.f32 %v302, 0.0
      %v425 = vmax.f32 %v308, 0.0
      %v426 = vadd.f32 %v424, 1e-09
      %v427 = vadd.f32 %v425, 1e-09
      %v428 = vmul.f32 %v426, %v426
      %v429 = vmul.f32 %v427, %v427
      %430 = vadd.xlane.f32.xlu0 %v428
      %v431 = vpop.xlane.xlu0 %430
      %432 = vadd.xlane.f32.xlu0 %v429
      %v433 = vpop.xlane.xlu0 %432
      %v434 = vrsqrt.pop %v431
      %v435 = vmul.f32 %v431, %v434
      %vm436 = vcmp.eq.f32.partialorder %v431, inf
      %v437 = vsel %vm436, %v431, %v435
      %vm438 = vcmp.eq.f32.partialorder %v431, 0.0
      %v439 = vand.u32 %v431, 2147483648
      %v440 = vsel %vm438, %v439, %v437
      %v441 = vrsqrt.pop %v433
      %v442 = vmul.f32 %v433, %v441
      %vm443 = vcmp.eq.f32.partialorder %v433, inf
      %v444 = vsel %vm443, %v433, %v442
      %vm445 = vcmp.eq.f32.partialorder %v433, 0.0
      %v446 = vand.u32 %v433, 2147483648
      %v447 = vsel %vm445, %v446, %v444
      %v448 = vmax.f32 %v440, 1e-10
      %v449 = vmax.f32 %v447, 1e-10
      %v450 = vrcp.pop %v448
      %v451 = vmul.f32 %v426, %v450
      %v452 = vrcp.pop %v449
      %v453 = vmul.f32 %v427, %v452
      %vm454 = vcmp.lt.s32.totalorder %v386, 15
      %vm455 = vcmp.lt.s32.totalorder %v387, 15
      %v456 = vsel %vm454, %v451, 0.0
      %v457 = vsel %vm455, %v453, 0.0
      %458 = vst [vmem:[%s170 + $0x10] sm:$0xff] %v456
      %459 = vst [vmem:[%s170 + $0x18] sm:$0xff] %v457
      %v460 = vmax.f32 %v377, 0.0
      %v461 = vmax.f32 %v382, 0.0
      %v462 = vadd.f32 %v460, 1e-09
      %v463 = vadd.f32 %v461, 1e-09
      %v464 = vmul.f32 %v462, %v462
      %v465 = vmul.f32 %v463, %v463
      %466 = vadd.xlane.f32.xlu0 %v464
      %v467 = vpop.xlane.xlu0 %466
      %468 = vadd.xlane.f32.xlu0 %v465
      %v469 = vpop.xlane.xlu0 %468
      %v470 = vrsqrt.pop %v467
      %v471 = vmul.f32 %v467, %v470
      %vm472 = vcmp.eq.f32.partialorder %v467, inf
      %v473 = vsel %vm472, %v467, %v471
      %vm474 = vcmp.eq.f32.partialorder %v467, 0.0
      %v475 = vand.u32 %v467, 2147483648
      %v476 = vsel %vm474, %v475, %v473
      %v477 = vrsqrt.pop %v469
      %v478 = vmul.f32 %v469, %v477
      %vm479 = vcmp.eq.f32.partialorder %v469, inf
      %v480 = vsel %vm479, %v469, %v478
      %vm481 = vcmp.eq.f32.partialorder %v469, 0.0
      %v482 = vand.u32 %v469, 2147483648
      %v483 = vsel %vm481, %v482, %v480
      %v484 = vmax.f32 %v476, 1e-10
      %v485 = vmax.f32 %v483, 1e-10
      %v486 = vrcp.pop %v484
      %v487 = vmul.f32 %v462, %v486
      %v488 = vrcp.pop %v485
      %v489 = vmul.f32 %v463, %v488
      %vm490 = vcmp.lt.s32.totalorder %v386, 14
      %vm491 = vcmp.lt.s32.totalorder %v387, 14
      %v492 = vsel %vm490, %v487, 0.0
      %v493 = vsel %vm491, %v489, 0.0
      %494 = vst [vmem:[%s170 + $0x20] sm:$0xff] %v492
      %495 = vst [vmem:[%s170 + $0x28] sm:$0xff] %v493
      %p496 = scmp.lt.s32.totalorder %s14, 1
      %s497 = scalar_select %p496, %s14, 1
      %s498 = smul.addr %s497, 6
      %s499 = smul.addr %s498, 8
      %s500 = scalar_lea.vmem %s3, %s499
      // Predicated region
      $region33: #{forward.6} parent=31 // pred_check
        %p501 = pneg %p100
      $region34: #{forward.6} parent=31 // pred_check_branch
        %503 = sbr.rel (%p501) target = $region36
      $region35: #{forward.6} parent=31 // pred_region
        _
      $region36: #{forward.6} parent=31 // pred_fallthru
        _
    $region32: #{forward.6} parent=5 // pred_fallthru
      _
    %p504 = scmp.le.s32.totalorder 2, %s9
    // Predicated region
    $region37: #{forward.6} parent=5 // pred_check
      %p505 = pneg %p504
    $region38: #{forward.6} parent=5 // pred_check_branch
      %507 = sbr.rel (%p505) target = $region40
    $region39: #{forward.6} parent=5 // pred_region
      %s508 = ssub.s32 %s9, 2
      // Predicated region
      $region41: #{forward.6} parent=39 // pred_check
        %p509 = pneg %p106
      $region42: #{forward.6} parent=39 // pred_check_branch
        %511 = sbr.rel (%p509) target = $region44
      $region43: #{forward.6} parent=39 // pred_region
        %p512 = scmp.lt.s32.totalorder %s15, 1
        %s513 = scalar_select %p512, %s15, 1
        %s514 = smul.addr %s513, 6
        %s515 = smul.addr %s514, 8
        %s516 = scalar_lea.vmem %s3, %s515
      $region44: #{forward.6} parent=39 // pred_fallthru
        _
    $region40: #{forward.6} parent=5 // pred_fallthru
      _
  $region6: #{forward.6} parent=0 // loop_footer
    %s13 = sadd.s32 1, %s9
  $region7: #{forward.6} parent=0 // loop_footer_branch
    %8 = sbr.rel target = $region3
  $region8: #{forward.6} parent=0 // loop_exit
    _

// kernel: forward.4
$region0: #{forward.4}
  #allocation0 [shape = 'u32[]', space=smem, size = 0x4, offset = 0x4, fixed_abs, tag = 'smem constant byte address 0x4 - core index']
  #allocation1 [shape = 'u32[144,128]{1,0:T(1,128)}', space=vmem, size = 0x12000, scoped, tag = 'internal scratch']
  %s0 = inlined_call_operand.vmem [shape: f32[2,8,96], index: 0, kind: input, shape index: {}]
  %s1 = inlined_call_operand.vmem [shape: f32[96,384], index: 1, kind: input, shape index: {}]
  %s2 = inlined_call_operand.vmem [shape: f32[1,384], index: 2, kind: input, shape index: {}]
  %s3 = inlined_call_operand.vmem [shape: f32[2,24,128], index: 3, kind: output, shape index: {}]
  %s4 = sld [smem:[#allocation0]]
  $region45: #{forward.4} parent=0
    _
  %s6 = ssub.s32 1, %s4
  %s7 = scalar_select 0, %s6, %s4
  loop: start=0, step=1, limit=4
  $region2: #{forward.4} parent=0 // loop_pre_header
    _
  $region3: #{forward.4} parent=0 // loop_header
    %s9 = sphi 0, %s13
    %p10 = scmp.ge.s32.totalorder %s9, 4
    %s19 = sphi 0, %s21
    %s22 = sphi 0, %s19
    %s23 = sphi 0, %s22
    %s39 = sphi 0, %s23
    %s43 = sphi 0, %s43
    %s45 = sphi 0, %s43
    %s46 = sphi 0, %s45
    %s60 = sphi 0, %s46
    %s64 = sphi 0, %s64
    %s66 = sphi 0, %s64
    %s67 = sphi 0, %s66
    %s81 = sphi 0, %s67
    %s87 = sphi 0, %s89
    %s90 = sphi 0, %s87
    %s91 = sphi 0, %s90
    %s107 = sphi 0, %s91
  $region4: #{forward.4} parent=0 // loop_header_branch
    %12 = sbr.rel (%p10) target = $region8
  $region5: #{forward.4} parent=0 // loop_body
    %s14 = ssub.s32 %s9, 1
    %s15 = ssub.s32 %s9, 2
    %s16 = sadd.s32 %s9, 1
    %s17 = ssub.s32 %s9, %s16
    %p18 = scmp.eq.s32.totalorder %s17, 0
    %s20 = sadd.s32 %s19, 1
    %s21 = scalar_select %p18, %s19, %s20
    %p24 = pneg %p18
    %p25 = scmp.eq.s32.totalorder %s9, 1
    %p26 = por %p24, %p25
    %p27 = scmp.ne.s32.totalorder %s19, %s22
    %p28 = scmp.eq.s32.totalorder %s9, 0
    %p29 = por %p27, %p28
    %p30 = scmp.ne.s32.totalorder %s19, %s22
    %p31 = scmp.eq.s32.totalorder %s14, 1
    %p32 = por %p30, %p31
    %p33 = scmp.ne.s32.totalorder %s22, %s23
    %p34 = scmp.eq.s32.totalorder %s14, 0
    %p35 = por %p33, %p34
    %p36 = scmp.ne.s32.totalorder %s22, %s23
    %p37 = scmp.eq.s32.totalorder %s15, 1
    %p38 = por %p36, %p37
    %p40 = scmp.ne.s32.totalorder %s23, %s39
    %p41 = scmp.eq.s32.totalorder %s15, 0
    %p42 = por %p40, %p41
    %s44 = sadd.s32 %s43, 1
    %p47 = scmp.eq.s32.totalorder %s9, 1
    %p48 = scmp.ne.s32.totalorder %s43, %s45
    %p49 = scmp.eq.s32.totalorder %s9, 0
    %p50 = por %p48, %p49
    %p51 = scmp.ne.s32.totalorder %s43, %s45
    %p52 = scmp.eq.s32.totalorder %s14, 1
    %p53 = por %p51, %p52
    %p54 = scmp.ne.s32.totalorder %s45, %s46
    %p55 = scmp.eq.s32.totalorder %s14, 0
    %p56 = por %p54, %p55
    %p57 = scmp.ne.s32.totalorder %s45, %s46
    %p58 = scmp.eq.s32.totalorder %s15, 1
    %p59 = por %p57, %p58
    %p61 = scmp.ne.s32.totalorder %s46, %s60
    %p62 = scmp.eq.s32.totalorder %s15, 0
    %p63 = por %p61, %p62
    %s65 = sadd.s32 %s64, 1
    %p68 = scmp.eq.s32.totalorder %s9, 1
    %p69 = scmp.ne.s32.totalorder %s64, %s66
    %p70 = scmp.eq.s32.totalorder %s9, 0
    %p71 = por %p69, %p70
    %p72 = scmp.ne.s32.totalorder %s64, %s66
    %p73 = scmp.eq.s32.totalorder %s14, 1
    %p74 = por %p72, %p73
    %p75 = scmp.ne.s32.totalorder %s66, %s67
    %p76 = scmp.eq.s32.totalorder %s14, 0
    %p77 = por %p75, %p76
    %p78 = scmp.ne.s32.totalorder %s66, %s67
    %p79 = scmp.eq.s32.totalorder %s15, 1
    %p80 = por %p78, %p79
    %p82 = scmp.ne.s32.totalorder %s67, %s81
    %p83 = scmp.eq.s32.totalorder %s15, 0
    %p84 = por %p82, %p83
    %s85 = ssub.s32 %s9, %s16
    %p86 = scmp.eq.s32.totalorder %s85, 0
    %s88 = sadd.s32 %s87, 1
    %s89 = scalar_select %p86, %s87, %s88
    %p92 = pneg %p86
    %p93 = scmp.eq.s32.totalorder %s9, 1
    %p94 = por %p92, %p93
    %p95 = scmp.ne.s32.totalorder %s87, %s90
    %p96 = scmp.eq.s32.totalorder %s9, 0
    %p97 = por %p95, %p96
    %p98 = scmp.ne.s32.totalorder %s87, %s90
    %p99 = scmp.eq.s32.totalorder %s14, 1
    %p100 = por %p98, %p99
    %p101 = scmp.ne.s32.totalorder %s90, %s91
    %p102 = scmp.eq.s32.totalorder %s14, 0
    %p103 = por %p101, %p102
    %p104 = scmp.ne.s32.totalorder %s90, %s91
    %p105 = scmp.eq.s32.totalorder %s15, 1
    %p106 = por %p104, %p105
    %p108 = scmp.ne.s32.totalorder %s91, %s107
    %p109 = scmp.eq.s32.totalorder %s15, 0
    %p110 = por %p108, %p109
    %p111 = scmp.le.s32.totalorder 1, %s9
    %p112 = scmp.lt.s32.totalorder %s9, 3
    %p113 = pnand %p111, %p112
    %p114 = pneg %p113
    // Predicated region
    $region9: #{forward.4} parent=5 // pred_check
      _
    $region10: #{forward.4} parent=5 // pred_check_branch
      %116 = sbr.rel (%p113) target = $region12
    $region11: #{forward.4} parent=5 // pred_region
      %s117 = ssub.s32 %s9, 1
      // Predicated region
      $region13: #{forward.4} parent=11 // pred_check
        %p118 = pneg %p56
      $region14: #{forward.4} parent=11 // pred_check_branch
        %120 = sbr.rel (%p118) target = $region16
      $region15: #{forward.4} parent=11 // pred_region
        _
      $region16: #{forward.4} parent=11 // pred_fallthru
        _
      // Predicated region
      $region17: #{forward.4} parent=11 // pred_check
        %p121 = pneg %p77
      $region18: #{forward.4} parent=11 // pred_check_branch
        %123 = sbr.rel (%p121) target = $region20
      $region19: #{forward.4} parent=11 // pred_region
        _
      $region20: #{forward.4} parent=11 // pred_fallthru
        _
    $region12: #{forward.4} parent=5 // pred_fallthru
      _
    %p124 = scmp.lt.s32.totalorder %s9, 2
    // Predicated region
    $region21: #{forward.4} parent=5 // pred_check
      %p125 = pneg %p124
    $region22: #{forward.4} parent=5 // pred_check_branch
      %127 = sbr.rel (%p125) target = $region24
    $region23: #{forward.4} parent=5 // pred_region
      // Predicated region
      $region25: #{forward.4} parent=23 // pred_check
        %p128 = pneg %p29
      $region26: #{forward.4} parent=23 // pred_check_branch
        %130 = sbr.rel (%p128) target = $region28
      $region27: #{forward.4} parent=23 // pred_region
        %p131 = scmp.lt.s32.totalorder %s9, 1
        %s132 = scalar_select %p131, %s9, 1
        %s133 = smul.addr %s132, 8
        %s134 = scalar_lea.vmem %s0, %s133
      $region28: #{forward.4} parent=23 // pred_fallthru
        _
    $region24: #{forward.4} parent=5 // pred_fallthru
      _
    %p135 = scmp.le.s32.totalorder 1, %s9
    %p136 = scmp.lt.s32.totalorder %s9, 3
    %p137 = pnand %p135, %p136
    %p138 = pneg %p137
    // Predicated region
    $region29: #{forward.4} parent=5 // pred_check
      _
    $region30: #{forward.4} parent=5 // pred_check_branch
      %140 = sbr.rel (%p137) target = $region32
    $region31: #{forward.4} parent=5 // pred_region
      %s141 = ssub.s32 %s9, 1
      %p142 = scmp.lt.s32.totalorder %s14, 1
      %s143 = scalar_select %p142, %s14, 1
      %s144 = smul.addr %s143, 8
      %s145 = scalar_lea.vmem %s0, %s144
      %p146 = pneg %p35
      %p147 = pneg %p32
      %p148 = pneg %p56
      %p149 = pneg %p53
      %p150 = pneg %p77
      %p151 = pneg %p74
      %p152 = pneg %p103
      %p153 = pneg %p100
      %p154 = scmp.lt.s32.totalorder %s14, 1
      %s155 = scalar_select %p154, %s14, 1
      %s156 = smul.addr %s155, 3
      %s157 = smul.addr %s156, 8
      %s158 = scalar_lea.vmem %s3, %s157
      %p159 = scmp.lt.s32.totalorder %s14, 1
      %s160 = scalar_select %p159, %s14, 1
      %s161 = smul.addr %s160, 8
      %s162 = scalar_lea.vmem %s0, %s161
      %p163 = scmp.lt.s32.totalorder %s14, 1
      %s164 = scalar_select %p163, %s14, 1
      %s165 = smul.addr %s164, 3
      %s166 = smul.addr %s165, 8
      %s167 = scalar_lea.vmem %s3, %s166
      %v168 = vld [vmem:[%s162] sm:$0xff]
      %v169 = vld [vmem:[%s1] sm:$0xff]
      %v170 = vld [vmem:[%s1 + $0x8] sm:$0xff]
      %v171 = vld [vmem:[%s1 + $0x10] sm:$0xff]
      %v172 = vld [vmem:[%s1 + $0x18] sm:$0xff]
      %v173 = vld [vmem:[%s1 + $0x20] sm:$0xff]
      %v174 = vld [vmem:[%s1 + $0x28] sm:$0xff]
      %v175 = vld [vmem:[%s1 + $0x30] sm:$0xff]
      %v176 = vld [vmem:[%s1 + $0x38] sm:$0xff]
      %v177 = vld [vmem:[%s1 + $0x40] sm:$0xff]
      %v178 = vld [vmem:[%s1 + $0x48] sm:$0xff]
      %v179 = vld [vmem:[%s1 + $0x50] sm:$0xff]
      %v180 = vld [vmem:[%s1 + $0x58] sm:$0xff]
      %v181 = vld [vmem:[%s1 + $0x60] sm:$0xff]
      %v182 = vld [vmem:[%s1 + $0x68] sm:$0xff]
      %v183 = vld [vmem:[%s1 + $0x70] sm:$0xff]
      %v184 = vld [vmem:[%s1 + $0x78] sm:$0xff]
      %v185 = vld [vmem:[%s1 + $0x80] sm:$0xff]
      %v186 = vld [vmem:[%s1 + $0x88] sm:$0xff]
      %v187 = vld [vmem:[%s1 + $0x90] sm:$0xff]
      %v188 = vld [vmem:[%s1 + $0x98] sm:$0xff]
      %v189 = vld [vmem:[%s1 + $0xa0] sm:$0xff]
      %v190 = vld [vmem:[%s1 + $0xa8] sm:$0xff]
      %v191 = vld [vmem:[%s1 + $0xb0] sm:$0xff]
      %v192 = vld [vmem:[%s1 + $0xb8] sm:$0xff]
      %v193 = vld [vmem:[%s1 + $0xc0] sm:$0xff]
      %v194 = vld [vmem:[%s1 + $0xc8] sm:$0xff]
      %v195 = vld [vmem:[%s1 + $0xd0] sm:$0xff]
      %v196 = vld [vmem:[%s1 + $0xd8] sm:$0xff]
      %v197 = vld [vmem:[%s1 + $0xe0] sm:$0xff]
      %v198 = vld [vmem:[%s1 + $0xe8] sm:$0xff]
      %v199 = vld [vmem:[%s1 + $0xf0] sm:$0xff]
      %v200 = vld [vmem:[%s1 + $0xf8] sm:$0xff]
      %v201 = vld [vmem:[%s1 + $0x100] sm:$0xff]
      %v202 = vld [vmem:[%s1 + $0x108] sm:$0xff]
      %v203 = vld [vmem:[%s1 + $0x110] sm:$0xff]
      %v204 = vld [vmem:[%s1 + $0x118] sm:$0xff]
      %v205 = vld [vmem:[%s2] sm:$0x7]
      %v207 = vlaneseq
      %v208 = vshrl.u32 %v207, 7
      %v209 = vsub.s32 0, %v208
      %v210 = vrot.slane %v205, %v209
      %v211 = vlaneseq
      %v212 = vshrl.u32 %v211, 7
      %v213 = vsub.s32 1, %v212
      %v214 = vrot.slane %v205, %v213
      %v215 = vlaneseq
      %v216 = vshrl.u32 %v215, 7
      %v217 = vsub.s32 2, %v216
      %v218 = vrot.slane %v205, %v217
      %vm222 = vcmask 785408
      %v224 = vsel %vm222, %v168, 0
      %226 = vmatprep.subr.mxu0 %v170
      %227 = vmatpush1.msra.mxu0 %v169
      %228 = vmatprep.subr.mxu0 %v173
      %229 = vmatpush1.msra.mxu0 %v172
      %230 = vmatprep.subr.mxu0 %v176
      %231 = vmatpush1.msra.mxu0 %v175
      %232 = vmatprep.subr.mxu0 %v179
      %233 = vmatpush1.msra.mxu0 %v178
      %234 = vmatprep.subr.mxu0 %v182
      %235 = vmatpush1.msra.mxu0 %v181
      %236 = vmatprep.subr.mxu0 %v185
      %237 = vmatpush1.msra.mxu0 %v184
      %238 = vmatprep.subr.mxu0 %v188
      %239 = vmatpush1.msra.mxu0 %v187
      %240 = vmatprep.subr.mxu0 %v191
      %241 = vmatpush1.msra.mxu0 %v190
      %242 = vmatprep.subr.mxu0 %v194
      %243 = vmatpush1.msra.mxu0 %v193
      %244 = vmatprep.subr.mxu0 %v197
      %245 = vmatpush1.msra.mxu0 %v196
      %246 = vmatprep.subr.mxu0 %v200
      %247 = vmatpush1.msra.mxu0 %v199
      %248 = vmatprep.subr.mxu0 %v203
      %249 = vmatpush1.msra.mxu0 %v202
      %250 = vmatprep.subr.mxu0 0.0
      %251 = vmatpush1.msra.mxu0 0.0
      %252 = vmatprep.subr.mxu0 0.0
      %253 = vmatpush1.msra.mxu0 0.0
      %254 = vmatprep.subr.mxu0 0.0
      %255 = vmatpush1.msra.mxu0 0.0
      %256 = vmatprep.subr.mxu0 0.0
      %257 = vmatpush1.msra.mxu0 0.0
      %258 = vmatprep.subr.mxu0 0.0
      %259 = vmatpush1.msra.mxu0 0.0
      %260 = vmatprep.subr.mxu0 0.0
      %261 = vmatpush1.msra.mxu0 0.0
      %262 = vmatprep.subr.mxu0 0.0
      %263 = vmatpush1.msra.mxu0 0.0
      %264 = vmatprep.subr.mxu0 0.0
      %265 = vmatpush1.msra.mxu0 0.0
      %266 = vmatprep.subr.mxu0 0.0
      %267 = vmatpush1.msra.mxu0 0.0
      %268 = vmatprep.subr.mxu0 0.0
      %269 = vmatpush1.msra.mxu0 0.0
      %270 = vmatprep.subr.mxu0 0.0
      %271 = vmatpush1.msra.mxu0 0.0
      %272 = vmatprep.subr.mxu0 0.0
      %273 = vmatpush1.msra.mxu0 0.0
      %274 = vmatprep.subr.mxu0 0.0
      %275 = vmatpush1.msra.mxu0 0.0
      %276 = vmatprep.subr.mxu0 0.0
      %277 = vmatpush1.msra.mxu0 0.0
      %278 = vmatprep.subr.mxu0 0.0
      %279 = vmatpush1.msra.mxu0 0.0
      %280 = vmatprep.subr.mxu0 0.0
      %281 = vmatpush1.msra.mxu0 0.0
      %282 = vmatprep.subr.mxu0 0.0
      %283 = vmatpush1.msra.mxu0 0.0
      %284 = vmatprep.subr.mxu0 0.0
      %285 = vmatpush1.msra.mxu0 0.0
      %286 = vmatprep.subr.mxu0 0.0
      %287 = vmatpush1.msra.mxu0 0.0
      %288 = vmatprep.subr.mxu0 0.0
      %289 = vmatpush1.msra.mxu0 0.0
      %290 = vmatprep.mubr.f32.mxu0 0.0
      %291 = vmatmul.mubr.f32.gmra.mrb[0].mxu0 %v224
      %v292 = vpop.f32.mrb[0].mxu0
      %v293 = vadd.f32 %v210, %v292
      %v294 = vpop.f32.mrb[0].mxu0
      %v295 = vadd.f32 %v214, %v294
      %296 = vdwg.mxu0
      %297 = vmatprep.subr.mxu0 0.0
      %298 = vmatpush1.msra.mxu0 %v171
      %299 = vmatprep.subr.mxu0 0.0
      %300 = vmatpush1.msra.mxu0 %v174
      %301 = vmatprep.subr.mxu0 0.0
      %302 = vmatpush1.msra.mxu0 %v177
      %303 = vmatprep.subr.mxu0 0.0
      %304 = vmatpush1.msra.mxu0 %v180
      %305 = vmatprep.subr.mxu0 0.0
      %306 = vmatpush1.msra.mxu0 %v183
      %307 = vmatprep.subr.mxu0 0.0
      %308 = vmatpush1.msra.mxu0 %v186
      %309 = vmatprep.subr.mxu0 0.0
      %310 = vmatpush1.msra.mxu0 %v189
      %311 = vmatprep.subr.mxu0 0.0
      %312 = vmatpush1.msra.mxu0 %v192
      %313 = vmatprep.subr.mxu0 0.0
      %314 = vmatpush1.msra.mxu0 %v195
      %315 = vmatprep.subr.mxu0 0.0
      %316 = vmatpush1.msra.mxu0 %v198
      %317 = vmatprep.subr.mxu0 0.0
      %318 = vmatpush1.msra.mxu0 %v201
      %319 = vmatprep.subr.mxu0 0.0
      %320 = vmatpush1.msra.mxu0 %v204
      %321 = vmatprep.subr.mxu0 0.0
      %322 = vmatpush1.msra.mxu0 0.0
      %323 = vmatprep.subr.mxu0 0.0
      %324 = vmatpush1.msra.mxu0 0.0
      %325 = vmatprep.subr.mxu0 0.0
      %326 = vmatpush1.msra.mxu0 0.0
      %327 = vmatprep.subr.mxu0 0.0
      %328 = vmatpush1.msra.mxu0 0.0
      %329 = vmatprep.subr.mxu0 0.0
      %330 = vmatpush1.msra.mxu0 0.0
      %331 = vmatprep.subr.mxu0 0.0
      %332 = vmatpush1.msra.mxu0 0.0
      %333 = vmatprep.subr.mxu0 0.0
      %334 = vmatpush1.msra.mxu0 0.0
      %335 = vmatprep.subr.mxu0 0.0
      %336 = vmatpush1.msra.mxu0 0.0
      %337 = vmatprep.subr.mxu0 0.0
      %338 = vmatpush1.msra.mxu0 0.0
      %339 = vmatprep.subr.mxu0 0.0
      %340 = vmatpush1.msra.mxu0 0.0
      %341 = vmatprep.subr.mxu0 0.0
      %342 = vmatpush1.msra.mxu0 0.0
      %343 = vmatprep.subr.mxu0 0.0
      %344 = vmatpush1.msra.mxu0 0.0
      %345 = vmatprep.subr.mxu0 0.0
      %346 = vmatpush1.msra.mxu0 0.0
      %347 = vmatprep.subr.mxu0 0.0
      %348 = vmatpush1.msra.mxu0 0.0
      %349 = vmatprep.subr.mxu0 0.0
      %350 = vmatpush1.msra.mxu0 0.0
      %351 = vmatprep.subr.mxu0 0.0
      %352 = vmatpush1.msra.mxu0 0.0
      %353 = vmatprep.subr.mxu0 0.0
      %354 = vmatpush1.msra.mxu0 0.0
      %355 = vmatprep.subr.mxu0 0.0
      %356 = vmatpush1.msra.mxu0 0.0
      %357 = vmatprep.subr.mxu0 0.0
      %358 = vmatpush1.msra.mxu0 0.0
      %359 = vmatprep.subr.mxu0 0.0
      %360 = vmatpush1.msra.mxu0 0.0
      %361 = vmatprep.mubr.f32.mxu0 0.0
      %362 = vmatmul.mubr.f32.gmra.mrb[0].mxu0 %v224
      %v363 = vpop.f32.mrb[0].mxu0
      %v364 = vadd.f32 %v218, %v363
      %v365 = vpop.f32.mrb[0].mxu0
      %366 = vdwg.mxu0
      %v367 = vlaneseq
      %v368 = vshrl.u32 %v367, 7
      %v369 = vmax.f32 %v293, 0.0
      %v370 = vadd.f32 %v369, 1e-09
      %v371 = vmul.f32 %v370, %v370
      %372 = vadd.xlane.f32.xlu0 %v371
      %v373 = vpop.xlane.xlu0 %372
      %v374 = vrsqrt.pop %v373
      %v375 = vmul.f32 %v373, %v374
      %vm376 = vcmp.eq.f32.partialorder %v373, inf
      %v377 = vsel %vm376, %v373, %v375
      %vm378 = vcmp.eq.f32.partialorder %v373, 0.0
      %v379 = vand.u32 %v373, 2147483648
      %v380 = vsel %vm378, %v379, %v377
      %v381 = vmax.f32 %v380, 1e-10
      %v382 = vrcp.pop %v381
      %v383 = vmul.f32 %v370, %v382
      %vm384 = vcmp.lt.s32.totalorder %v368, 8
      %v385 = vsel %vm384, %v383, 0.0
      %386 = vst [vmem:[%s167] sm:$0xff] %v385
      %v387 = vmax.f32 %v295, 0.0
      %v388 = vadd.f32 %v387, 1e-09
      %v389 = vmul.f32 %v388, %v388
      %390 = vadd.xlane.f32.xlu0 %v389
      %v391 = vpop.xlane.xlu0 %390
      %v392 = vrsqrt.pop %v391
      %v393 = vmul.f32 %v391, %v392
      %vm394 = vcmp.eq.f32.partialorder %v391, inf
      %v395 = vsel %vm394, %v391, %v393
      %vm396 = vcmp.eq.f32.partialorder %v391, 0.0
      %v397 = vand.u32 %v391, 2147483648
      %v398 = vsel %vm396, %v397, %v395
      %v399 = vmax.f32 %v398, 1e-10
      %v400 = vrcp.pop %v399
      %v401 = vmul.f32 %v388, %v400
      %vm402 = vcmp.lt.s32.totalorder %v368, 7
      %v403 = vsel %vm402, %v401, 0.0
      %404 = vst [vmem:[%s167 + $0x8] sm:$0xff] %v403
      %v405 = vmax.f32 %v364, 0.0
      %v406 = vadd.f32 %v405, 1e-09
      %v407 = vmul.f32 %v406, %v406
      %408 = vadd.xlane.f32.xlu0 %v407
      %v409 = vpop.xlane.xlu0 %408
      %v410 = vrsqrt.pop %v409
      %v411 = vmul.f32 %v409, %v410
      %vm412 = vcmp.eq.f32.partialorder %v409, inf
      %v413 = vsel %vm412, %v409, %v411
      %vm414 = vcmp.eq.f32.partialorder %v409, 0.0
      %v415 = vand.u32 %v409, 2147483648
      %v416 = vsel %vm414, %v415, %v413
      %v417 = vmax.f32 %v416, 1e-10
      %v418 = vrcp.pop %v417
      %v419 = vmul.f32 %v406, %v418
      %vm420 = vcmp.lt.s32.totalorder %v368, 6
      %v421 = vsel %vm420, %v419, 0.0
      %422 = vst [vmem:[%s167 + $0x10] sm:$0xff] %v421
      %p423 = scmp.lt.s32.totalorder %s14, 1
      %s424 = scalar_select %p423, %s14, 1
      %s425 = smul.addr %s424, 3
      %s426 = smul.addr %s425, 8
      %s427 = scalar_lea.vmem %s3, %s426
      // Predicated region
      $region33: #{forward.4} parent=31 // pred_check
        %p428 = pneg %p100
      $region34: #{forward.4} parent=31 // pred_check_branch
        %430 = sbr.rel (%p428) target = $region36
      $region35: #{forward.4} parent=31 // pred_region
        _
      $region36: #{forward.4} parent=31 // pred_fallthru
        _
    $region32: #{forward.4} parent=5 // pred_fallthru
      _
    %p431 = scmp.le.s32.totalorder 2, %s9
    // Predicated region
    $region37: #{forward.4} parent=5 // pred_check
      %p432 = pneg %p431
    $region38: #{forward.4} parent=5 // pred_check_branch
      %434 = sbr.rel (%p432) target = $region40
    $region39: #{forward.4} parent=5 // pred_region
      %s435 = ssub.s32 %s9, 2
      // Predicated region
      $region41: #{forward.4} parent=39 // pred_check
        %p436 = pneg %p106
      $region42: #{forward.4} parent=39 // pred_check_branch
        %438 = sbr.rel (%p436) target = $region44
      $region43: #{forward.4} parent=39 // pred_region
        %p439 = scmp.lt.s32.totalorder %s15, 1
        %s440 = scalar_select %p439, %s15, 1
        %s441 = smul.addr %s440, 3
        %s442 = smul.addr %s441, 8
        %s443 = scalar_lea.vmem %s3, %s442
      $region44: #{forward.4} parent=39 // pred_fallthru
        _
    $region40: #{forward.4} parent=5 // pred_fallthru
      _
  $region6: #{forward.4} parent=0 // loop_footer
    %s13 = sadd.s32 1, %s9
  $region7: #{forward.4} parent=0 // loop_footer_branch
    %8 = sbr.rel target = $region3
  $region8: #{forward.4} parent=0 // loop_exit
    _

// kernel: forward.7
$region0: #{forward.7}
  #allocation0 [shape = 'u32[]', space=smem, size = 0x4, offset = 0x4, fixed_abs, tag = 'smem constant byte address 0x4 - core index']
  #allocation1 [shape = 'u32[144,128]{1,0:T(1,128)}', space=vmem, size = 0x12000, scoped, tag = 'internal scratch']
  %s0 = inlined_call_operand.vmem [shape: f32[2,24,128], index: 0, kind: input, shape index: {}]
  %s1 = inlined_call_operand.vmem [shape: f32[2,128,96], index: 1, kind: input, shape index: {}]
  %s2 = inlined_call_operand.vmem [shape: f32[2,3,24], index: 2, kind: input, shape index: {}]
  %s3 = inlined_call_operand.vmem [shape: f32[2,1,96], index: 3, kind: input, shape index: {}]
  %s4 = inlined_call_operand.vmem [shape: f32[96,6], index: 4, kind: input, shape index: {}]
  %s5 = inlined_call_operand.vmem [shape: f32[2,3,66], index: 5, kind: output, shape index: {}]
  %s6 = sld [smem:[#allocation0]]
  $region53: #{forward.7} parent=0
    _
  %s8 = ssub.s32 1, %s6
  %s9 = scalar_select 0, %s8, %s6
  loop: start=0, step=1, limit=4
  $region2: #{forward.7} parent=0 // loop_pre_header
    _
  $region3: #{forward.7} parent=0 // loop_header
    %s11 = sphi 0, %s15
    %p12 = scmp.ge.s32.totalorder %s11, 4
    %s21 = sphi 0, %s23
    %s24 = sphi 0, %s21
    %s25 = sphi 0, %s24
    %s41 = sphi 0, %s25
    %s47 = sphi 0, %s49
    %s50 = sphi 0, %s47
    %s51 = sphi 0, %s50
    %s67 = sphi 0, %s51
    %s73 = sphi 0, %s75
    %s76 = sphi 0, %s73
    %s77 = sphi 0, %s76
    %s93 = sphi 0, %s77
    %s99 = sphi 0, %s101
    %s102 = sphi 0, %s99
    %s103 = sphi 0, %s102
    %s119 = sphi 0, %s103
    %s123 = sphi 0, %s123
    %s125 = sphi 0, %s123
    %s126 = sphi 0, %s125
    %s140 = sphi 0, %s126
    %s146 = sphi 0, %s148
    %s149 = sphi 0, %s146
    %s150 = sphi 0, %s149
    %s166 = sphi 0, %s150
  $region4: #{forward.7} parent=0 // loop_header_branch
    %14 = sbr.rel (%p12) target = $region8
  $region5: #{forward.7} parent=0 // loop_body
    %s16 = ssub.s32 %s11, 1
    %s17 = ssub.s32 %s11, 2
    %s18 = sadd.s32 %s11, 1
    %s19 = ssub.s32 %s11, %s18
    %p20 = scmp.eq.s32.totalorder %s19, 0
    %s22 = sadd.s32 %s21, 1
    %s23 = scalar_select %p20, %s21, %s22
    %p26 = pneg %p20
    %p27 = scmp.eq.s32.totalorder %s11, 1
    %p28 = por %p26, %p27
    %p29 = scmp.ne.s32.totalorder %s21, %s24
    %p30 = scmp.eq.s32.totalorder %s11, 0
    %p31 = por %p29, %p30
    %p32 = scmp.ne.s32.totalorder %s21, %s24
    %p33 = scmp.eq.s32.totalorder %s16, 1
    %p34 = por %p32, %p33
    %p35 = scmp.ne.s32.totalorder %s24, %s25
    %p36 = scmp.eq.s32.totalorder %s16, 0
    %p37 = por %p35, %p36
    %p38 = scmp.ne.s32.totalorder %s24, %s25
    %p39 = scmp.eq.s32.totalorder %s17, 1
    %p40 = por %p38, %p39
    %p42 = scmp.ne.s32.totalorder %s25, %s41
    %p43 = scmp.eq.s32.totalorder %s17, 0
    %p44 = por %p42, %p43
    %s45 = ssub.s32 %s11, %s18
    %p46 = scmp.eq.s32.totalorder %s45, 0
    %s48 = sadd.s32 %s47, 1
    %s49 = scalar_select %p46, %s47, %s48
    %p52 = pneg %p46
    %p53 = scmp.eq.s32.totalorder %s11, 1
    %p54 = por %p52, %p53
    %p55 = scmp.ne.s32.totalorder %s47, %s50
    %p56 = scmp.eq.s32.totalorder %s11, 0
    %p57 = por %p55, %p56
    %p58 = scmp.ne.s32.totalorder %s47, %s50
    %p59 = scmp.eq.s32.totalorder %s16, 1
    %p60 = por %p58, %p59
    %p61 = scmp.ne.s32.totalorder %s50, %s51
    %p62 = scmp.eq.s32.totalorder %s16, 0
    %p63 = por %p61, %p62
    %p64 = scmp.ne.s32.totalorder %s50, %s51
    %p65 = scmp.eq.s32.totalorder %s17, 1
    %p66 = por %p64, %p65
    %p68 = scmp.ne.s32.totalorder %s51, %s67
    %p69 = scmp.eq.s32.totalorder %s17, 0
    %p70 = por %p68, %p69
    %s71 = ssub.s32 %s11, %s18
    %p72 = scmp.eq.s32.totalorder %s71, 0
    %s74 = sadd.s32 %s73, 1
    %s75 = scalar_select %p72, %s73, %s74
    %p78 = pneg %p72
    %p79 = scmp.eq.s32.totalorder %s11, 1
    %p80 = por %p78, %p79
    %p81 = scmp.ne.s32.totalorder %s73, %s76
    %p82 = scmp.eq.s32.totalorder %s11, 0
    %p83 = por %p81, %p82
    %p84 = scmp.ne.s32.totalorder %s73, %s76
    %p85 = scmp.eq.s32.totalorder %s16, 1
    %p86 = por %p84, %p85
    %p87 = scmp.ne.s32.totalorder %s76, %s77
    %p88 = scmp.eq.s32.totalorder %s16, 0
    %p89 = por %p87, %p88
    %p90 = scmp.ne.s32.totalorder %s76, %s77
    %p91 = scmp.eq.s32.totalorder %s17, 1
    %p92 = por %p90, %p91
    %p94 = scmp.ne.s32.totalorder %s77, %s93
    %p95 = scmp.eq.s32.totalorder %s17, 0
    %p96 = por %p94, %p95
    %s97 = ssub.s32 %s11, %s18
    %p98 = scmp.eq.s32.totalorder %s97, 0
    %s100 = sadd.s32 %s99, 1
    %s101 = scalar_select %p98, %s99, %s100
    %p104 = pneg %p98
    %p105 = scmp.eq.s32.totalorder %s11, 1
    %p106 = por %p104, %p105
    %p107 = scmp.ne.s32.totalorder %s99, %s102
    %p108 = scmp.eq.s32.totalorder %s11, 0
    %p109 = por %p107, %p108
    %p110 = scmp.ne.s32.totalorder %s99, %s102
    %p111 = scmp.eq.s32.totalorder %s16, 1
    %p112 = por %p110, %p111
    %p113 = scmp.ne.s32.totalorder %s102, %s103
    %p114 = scmp.eq.s32.totalorder %s16, 0
    %p115 = por %p113, %p114
    %p116 = scmp.ne.s32.totalorder %s102, %s103
    %p117 = scmp.eq.s32.totalorder %s17, 1
    %p118 = por %p116, %p117
    %p120 = scmp.ne.s32.totalorder %s103, %s119
    %p121 = scmp.eq.s32.totalorder %s17, 0
    %p122 = por %p120, %p121
    %s124 = sadd.s32 %s123, 1
    %p127 = scmp.eq.s32.totalorder %s11, 1
    %p128 = scmp.ne.s32.totalorder %s123, %s125
    %p129 = scmp.eq.s32.totalorder %s11, 0
    %p130 = por %p128, %p129
    %p131 = scmp.ne.s32.totalorder %s123, %s125
    %p132 = scmp.eq.s32.totalorder %s16, 1
    %p133 = por %p131, %p132
    %p134 = scmp.ne.s32.totalorder %s125, %s126
    %p135 = scmp.eq.s32.totalorder %s16, 0
    %p136 = por %p134, %p135
    %p137 = scmp.ne.s32.totalorder %s125, %s126
    %p138 = scmp.eq.s32.totalorder %s17, 1
    %p139 = por %p137, %p138
    %p141 = scmp.ne.s32.totalorder %s126, %s140
    %p142 = scmp.eq.s32.totalorder %s17, 0
    %p143 = por %p141, %p142
    %s144 = ssub.s32 %s11, %s18
    %p145 = scmp.eq.s32.totalorder %s144, 0
    %s147 = sadd.s32 %s146, 1
    %s148 = scalar_select %p145, %s146, %s147
    %p151 = pneg %p145
    %p152 = scmp.eq.s32.totalorder %s11, 1
    %p153 = por %p151, %p152
    %p154 = scmp.ne.s32.totalorder %s146, %s149
    %p155 = scmp.eq.s32.totalorder %s11, 0
    %p156 = por %p154, %p155
    %p157 = scmp.ne.s32.totalorder %s146, %s149
    %p158 = scmp.eq.s32.totalorder %s16, 1
    %p159 = por %p157, %p158
    %p160 = scmp.ne.s32.totalorder %s149, %s150
    %p161 = scmp.eq.s32.totalorder %s16, 0
    %p162 = por %p160, %p161
    %p163 = scmp.ne.s32.totalorder %s149, %s150
    %p164 = scmp.eq.s32.totalorder %s17, 1
    %p165 = por %p163, %p164
    %p167 = scmp.ne.s32.totalorder %s150, %s166
    %p168 = scmp.eq.s32.totalorder %s17, 0
    %p169 = por %p167, %p168
    %p170 = scmp.le.s32.totalorder 1, %s11
    %p171 = scmp.lt.s32.totalorder %s11, 3
    %p172 = pnand %p170, %p171
    %p173 = pneg %p172
    // Predicated region
    $region9: #{forward.7} parent=5 // pred_check
      _
    $region10: #{forward.7} parent=5 // pred_check_branch
      %175 = sbr.rel (%p172) target = $region12
    $region11: #{forward.7} parent=5 // pred_region
      %s176 = ssub.s32 %s11, 1
      // Predicated region
      $region13: #{forward.7} parent=11 // pred_check
        %p177 = pneg %p136
      $region14: #{forward.7} parent=11 // pred_check_branch
        %179 = sbr.rel (%p177) target = $region16
      $region15: #{forward.7} parent=11 // pred_region
        _
      $region16: #{forward.7} parent=11 // pred_fallthru
        _
    $region12: #{forward.7} parent=5 // pred_fallthru
      _
    %p180 = scmp.lt.s32.totalorder %s11, 2
    // Predicated region
    $region17: #{forward.7} parent=5 // pred_check
      %p181 = pneg %p180
    $region18: #{forward.7} parent=5 // pred_check_branch
      %183 = sbr.rel (%p181) target = $region20
    $region19: #{forward.7} parent=5 // pred_region
      // Predicated region
      $region21: #{forward.7} parent=19 // pred_check
        %p184 = pneg %p31
      $region22: #{forward.7} parent=19 // pred_check_branch
        %186 = sbr.rel (%p184) target = $region24
      $region23: #{forward.7} parent=19 // pred_region
        %p187 = scmp.lt.s32.totalorder %s11, 1
        %s188 = scalar_select %p187, %s11, 1
        %s189 = smul.addr %s188, 3
        %s190 = smul.addr %s189, 8
        %s191 = scalar_lea.vmem %s0, %s190
      $region24: #{forward.7} parent=19 // pred_fallthru
        _
      // Predicated region
      $region25: #{forward.7} parent=19 // pred_check
        %p192 = pneg %p57
      $region26: #{forward.7} parent=19 // pred_check_branch
        %194 = sbr.rel (%p192) target = $region28
      $region27: #{forward.7} parent=19 // pred_region
        %p195 = scmp.lt.s32.totalorder %s11, 1
        %s196 = scalar_select %p195, %s11, 1
        %s197 = smul.addr %s196, 16
        %s198 = smul.addr %s197, 8
        %s199 = scalar_lea.vmem %s1, %s198
      $region28: #{forward.7} parent=19 // pred_fallthru
        _
      // Predicated region
      $region29: #{forward.7} parent=19 // pred_check
        %p200 = pneg %p83
      $region30: #{forward.7} parent=19 // pred_check_branch
        %202 = sbr.rel (%p200) target = $region32
      $region31: #{forward.7} parent=19 // pred_region
        %p203 = scmp.lt.s32.totalorder %s11, 1
        %s204 = scalar_select %p203, %s11, 1
        %s205 = smul.addr %s204, 4
        %s206 = scalar_lea.vmem %s2, %s205
      $region32: #{forward.7} parent=19 // pred_fallthru
        _
      // Predicated region
      $region33: #{forward.7} parent=19 // pred_check
        %p207 = pneg %p109
      $region34: #{forward.7} parent=19 // pred_check_branch
        %209 = sbr.rel (%p207) target = $region36
      $region35: #{forward.7} parent=19 // pred_region
        %p210 = scmp.lt.s32.totalorder %s11, 1
        %s211 = scalar_select %p210, %s11, 1
        %s212 = scalar_lea.vmem %s3, %s211
      $region36: #{forward.7} parent=19 // pred_fallthru
        _
    $region20: #{forward.7} parent=5 // pred_fallthru
      _
    %p213 = scmp.le.s32.totalorder 1, %s11
    %p214 = scmp.lt.s32.totalorder %s11, 3
    %p215 = pnand %p213, %p214
    %p216 = pneg %p215
    // Predicated region
    $region37: #{forward.7} parent=5 // pred_check
      _
    $region38: #{forward.7} parent=5 // pred_check_branch
      %218 = sbr.rel (%p215) target = $region40
    $region39: #{forward.7} parent=5 // pred_region
      %s219 = ssub.s32 %s11, 1
      %p220 = scmp.lt.s32.totalorder %s16, 1
      %s221 = scalar_select %p220, %s16, 1
      %s222 = smul.addr %s221, 3
      %s223 = smul.addr %s222, 8
      %s224 = scalar_lea.vmem %s0, %s223
      %p225 = pneg %p37
      %p226 = pneg %p34
      %p227 = scmp.lt.s32.totalorder %s16, 1
      %s228 = scalar_select %p227, %s16, 1
      %s229 = smul.addr %s228, 16
      %s230 = smul.addr %s229, 8
      %s231 = scalar_lea.vmem %s1, %s230
      %p232 = pneg %p63
      %p233 = pneg %p60
      %p234 = scmp.lt.s32.totalorder %s16, 1
      %s235 = scalar_select %p234, %s16, 1
      %s236 = smul.addr %s235, 4
      %s237 = scalar_lea.vmem %s2, %s236
      %p238 = pneg %p89
      %p239 = pneg %p86
      %p240 = scmp.lt.s32.totalorder %s16, 1
      %s241 = scalar_select %p240, %s16, 1
      %s242 = scalar_lea.vmem %s3, %s241
      %p243 = pneg %p115
      %p244 = pneg %p112
      %p245 = pneg %p136
      %p246 = pneg %p133
      %p247 = pneg %p162
      %p248 = pneg %p159
      %p249 = scmp.lt.s32.totalorder %s16, 1
      %s250 = scalar_select %p249, %s16, 1
      %s251 = smul.addr %s250, 4
      %s252 = scalar_lea.vmem %s5, %s251
      %p253 = scmp.lt.s32.totalorder %s16, 1
      %s254 = scalar_select %p253, %s16, 1
      %s255 = smul.addr %s254, 3
      %s256 = smul.addr %s255, 8
      %s257 = scalar_lea.vmem %s0, %s256
      %p258 = scmp.lt.s32.totalorder %s16, 1
      %s259 = scalar_select %p258, %s16, 1
      %s260 = smul.addr %s259, 16
      %s261 = smul.addr %s260, 8
      %s262 = scalar_lea.vmem %s1, %s261
      %p263 = scmp.lt.s32.totalorder %s16, 1
      %s264 = scalar_select %p263, %s16, 1
      %s265 = smul.addr %s264, 4
      %s266 = scalar_lea.vmem %s2, %s265
      %p267 = scmp.lt.s32.totalorder %s16, 1
      %s268 = scalar_select %p267, %s16, 1
      %s269 = scalar_lea.vmem %s3, %s268
      %p270 = scmp.lt.s32.totalorder %s16, 1
      %s271 = scalar_select %p270, %s16, 1
      %s272 = smul.addr %s271, 4
      %s273 = scalar_lea.vmem %s5, %s272
      %v274 = vld [vmem:[%s257] sm:$0xff]
      %v275 = vld [vmem:[%s257 + $0x8] sm:$0xff]
      %v276 = vld [vmem:[%s257 + $0x10] sm:$0xff]
      %v277 = vld [vmem:[%s262] sm:$0xff]
      %v278 = vld [vmem:[%s262 + $0x8] sm:$0xff]
      %v279 = vld [vmem:[%s262 + $0x10] sm:$0xff]
      %v280 = vld [vmem:[%s262 + $0x18] sm:$0xff]
      %v281 = vld [vmem:[%s262 + $0x20] sm:$0xff]
      %v282 = vld [vmem:[%s262 + $0x28] sm:$0xff]
      %v283 = vld [vmem:[%s262 + $0x30] sm:$0xff]
      %v284 = vld [vmem:[%s262 + $0x38] sm:$0xff]
      %v285 = vld [vmem:[%s262 + $0x40] sm:$0xff]
      %v286 = vld [vmem:[%s262 + $0x48] sm:$0xff]
      %v287 = vld [vmem:[%s262 + $0x50] sm:$0xff]
      %v288 = vld [vmem:[%s262 + $0x58] sm:$0xff]
      %v289 = vld [vmem:[%s262 + $0x60] sm:$0xff]
      %v290 = vld [vmem:[%s262 + $0x68] sm:$0xff]
      %v291 = vld [vmem:[%s262 + $0x70] sm:$0xff]
      %v292 = vld [vmem:[%s262 + $0x78] sm:$0xff]
      %293 = vmatprep.subr.mxu0 0.0
      %294 = vmatpush1.msra.mxu0 %v277
      %295 = vmatprep.subr.mxu0 0.0
      %296 = vmatpush1.msra.mxu0 %v278
      %297 = vmatprep.subr.mxu0 0.0
      %298 = vmatpush1.msra.mxu0 %v279
      %299 = vmatprep.subr.mxu0 0.0
      %300 = vmatpush1.msra.mxu0 %v280
      %301 = vmatprep.subr.mxu0 0.0
      %302 = vmatpush1.msra.mxu0 %v281
      %303 = vmatprep.subr.mxu0 0.0
      %304 = vmatpush1.msra.mxu0 %v282
      %305 = vmatprep.subr.mxu0 0.0
      %306 = vmatpush1.msra.mxu0 %v283
      %307 = vmatprep.subr.mxu0 0.0
      %308 = vmatpush1.msra.mxu0 %v284
      %309 = vmatprep.subr.mxu0 0.0
      %310 = vmatpush1.msra.mxu0 %v285
      %311 = vmatprep.subr.mxu0 0.0
      %312 = vmatpush1.msra.mxu0 %v286
      %313 = vmatprep.subr.mxu0 0.0
      %314 = vmatpush1.msra.mxu0 %v287
      %315 = vmatprep.subr.mxu0 0.0
      %316 = vmatpush1.msra.mxu0 %v288
      %317 = vmatprep.subr.mxu0 0.0
      %318 = vmatpush1.msra.mxu0 %v289
      %319 = vmatprep.subr.mxu0 0.0
      %320 = vmatpush1.msra.mxu0 %v290
      %321 = vmatprep.subr.mxu0 0.0
      %322 = vmatpush1.msra.mxu0 %v291
      %323 = vmatprep.subr.mxu0 0.0
      %324 = vmatpush1.msra.mxu0 %v292
      %325 = vmatprep.subr.mxu0 0.0
      %326 = vmatpush1.msra.mxu0 0.0
      %327 = vmatprep.subr.mxu0 0.0
      %328 = vmatpush1.msra.mxu0 0.0
      %329 = vmatprep.subr.mxu0 0.0
      %330 = vmatpush1.msra.mxu0 0.0
      %331 = vmatprep.subr.mxu0 0.0
      %332 = vmatpush1.msra.mxu0 0.0
      %333 = vmatprep.subr.mxu0 0.0
      %334 = vmatpush1.msra.mxu0 0.0
      %335 = vmatprep.subr.mxu0 0.0
      %336 = vmatpush1.msra.mxu0 0.0
      %337 = vmatprep.subr.mxu0 0.0
      %338 = vmatpush1.msra.mxu0 0.0
      %339 = vmatprep.subr.mxu0 0.0
      %340 = vmatpush1.msra.mxu0 0.0
      %341 = vmatprep.subr.mxu0 0.0
      %342 = vmatpush1.msra.mxu0 0.0
      %343 = vmatprep.subr.mxu0 0.0
      %344 = vmatpush1.msra.mxu0 0.0
      %345 = vmatprep.subr.mxu0 0.0
      %346 = vmatpush1.msra.mxu0 0.0
      %347 = vmatprep.subr.mxu0 0.0
      %348 = vmatpush1.msra.mxu0 0.0
      %349 = vmatprep.subr.mxu0 0.0
      %350 = vmatpush1.msra.mxu0 0.0
      %351 = vmatprep.subr.mxu0 0.0
      %352 = vmatpush1.msra.mxu0 0.0
      %353 = vmatprep.subr.mxu0 0.0
      %354 = vmatpush1.msra.mxu0 0.0
      %355 = vmatprep.subr.mxu0 0.0
      %356 = vmatpush1.msra.mxu0 0.0
      %357 = vmatprep.mubr.f32.mxu0 0.0
      %358 = vmatmul.mubr.f32.gmra.mrb[0].mxu0 %v274
      %v359 = vpop.f32.mrb[0].mxu0
      %v360 = vadd.f32 0.0, %v359
      %v361 = vpop.f32.mrb[0].mxu0
      %362 = vmatprep.mubr.f32.mxu0 0.0
      %363 = vmatmul.mubr.f32.gmra.mrb[0].mxu0 %v275
      %v364 = vpop.f32.mrb[0].mxu0
      %v365 = vadd.f32 0.0, %v364
      %v366 = vpop.f32.mrb[0].mxu0
      %367 = vmatprep.mubr.f32.mxu0 0.0
      %368 = vmatmul.mubr.f32.gmra.mrb[0].mxu0 %v276
      %v369 = vpop.f32.mrb[0].mxu0
      %v370 = vadd.f32 0.0, %v369
      %v371 = vpop.f32.mrb[0].mxu0
      %372 = vdwg.mxu0
      %v373 = vld [vmem:[%s269] sm:$0x1]
      %v375 = vlaneseq
      %v376 = vshrl.u32 %v375, 7
      %v377 = vsub.s32 0, %v376
      %v378 = vrot.slane %v373, %v377
      %v380 = vld [vmem:[%s4] sm:$0xff]
      %v381 = vld [vmem:[%s4 + $0x8] sm:$0xff]
      %v382 = vld [vmem:[%s4 + $0x10] sm:$0xff]
      %v383 = vld [vmem:[%s4 + $0x18] sm:$0xff]
      %v384 = vld [vmem:[%s4 + $0x20] sm:$0xff]
      %v385 = vld [vmem:[%s4 + $0x28] sm:$0xff]
      %v386 = vld [vmem:[%s4 + $0x30] sm:$0xff]
      %v387 = vld [vmem:[%s4 + $0x38] sm:$0xff]
      %v388 = vld [vmem:[%s4 + $0x40] sm:$0xff]
      %v389 = vld [vmem:[%s4 + $0x48] sm:$0xff]
      %v390 = vld [vmem:[%s4 + $0x50] sm:$0xff]
      %v391 = vld [vmem:[%s4 + $0x58] sm:$0xff]
      %v392 = vsub.f32 %v360, 1.0
      %v393 = vsub.f32 %v365, 1.0
      %v394 = vsub.f32 %v370, 1.0
      %v395 = vmul.f32 %v392, %v392
      %v396 = vmul.f32 %v393, %v393
      %v397 = vmul.f32 %v394, %v394
      %v398 = vmul.f32 %v395, -500000.0
      %v399 = vmul.f32 %v396, -500000.0
      %v400 = vmul.f32 %v397, -500000.0
      %v401 = vmul.f32 %v398, 1.442695
      %v402 = vpow.pop %v401
      %v403 = vmul.f32 %v399, 1.442695
      %v404 = vpow.pop %v403
      %v405 = vmul.f32 %v400, 1.442695
      %v406 = vpow.pop %v405
      %v407 = vmul.f32 %v402, %v378
      %v408 = vmul.f32 %v404, %v378
      %v409 = vmul.f32 %v406, %v378
      %vm410 = vcmask 785408
      %v412 = vsel %vm410, %v407, 0
      %v415 = vsel %vm410, %v408, 0
      %v418 = vsel %vm410, %v409, 0
      %420 = vmatprep.subr.mxu0 0.0
      %421 = vmatpush1.msra.mxu0 %v380
      %422 = vmatprep.subr.mxu0 0.0
      %423 = vmatpush1.msra.mxu0 %v381
      %424 = vmatprep.subr.mxu0 0.0
      %425 = vmatpush1.msra.mxu0 %v382
      %426 = vmatprep.subr.mxu0 0.0
      %427 = vmatpush1.msra.mxu0 %v383
      %428 = vmatprep.subr.mxu0 0.0
      %429 = vmatpush1.msra.mxu0 %v384
      %430 = vmatprep.subr.mxu0 0.0
      %431 = vmatpush1.msra.mxu0 %v385
      %432 = vmatprep.subr.mxu0 0.0
      %433 = vmatpush1.msra.mxu0 %v386
      %434 = vmatprep.subr.mxu0 0.0
      %435 = vmatpush1.msra.mxu0 %v387
      %436 = vmatprep.subr.mxu0 0.0
      %437 = vmatpush1.msra.mxu0 %v388
      %438 = vmatprep.subr.mxu0 0.0
      %439 = vmatpush1.msra.mxu0 %v389
      %440 = vmatprep.subr.mxu0 0.0
      %441 = vmatpush1.msra.mxu0 %v390
      %442 = vmatprep.subr.mxu0 0.0
      %443 = vmatpush1.msra.mxu0 %v391
      %444 = vmatprep.subr.mxu0 0.0
      %445 = vmatpush1.msra.mxu0 0.0
      %446 = vmatprep.subr.mxu0 0.0
      %447 = vmatpush1.msra.mxu0 0.0
      %448 = vmatprep.subr.mxu0 0.0
      %449 = vmatpush1.msra.mxu0 0.0
      %450 = vmatprep.subr.mxu0 0.0
      %451 = vmatpush1.msra.mxu0 0.0
      %452 = vmatprep.subr.mxu0 0.0
      %453 = vmatpush1.msra.mxu0 0.0
      %454 = vmatprep.subr.mxu0 0.0
      %455 = vmatpush1.msra.mxu0 0.0
      %456 = vmatprep.subr.mxu0 0.0
      %457 = vmatpush1.msra.mxu0 0.0
      %458 = vmatprep.subr.mxu0 0.0
      %459 = vmatpush1.msra.mxu0 0.0
      %460 = vmatprep.subr.mxu0 0.0
      %461 = vmatpush1.msra.mxu0 0.0
      %462 = vmatprep.subr.mxu0 0.0
      %463 = vmatpush1.msra.mxu0 0.0
      %464 = vmatprep.subr.mxu0 0.0
      %465 = vmatpush1.msra.mxu0 0.0
      %466 = vmatprep.subr.mxu0 0.0
      %467 = vmatpush1.msra.mxu0 0.0
      %468 = vmatprep.subr.mxu0 0.0
      %469 = vmatpush1.msra.mxu0 0.0
      %470 = vmatprep.subr.mxu0 0.0
      %471 = vmatpush1.msra.mxu0 0.0
      %472 = vmatprep.subr.mxu0 0.0
      %473 = vmatpush1.msra.mxu0 0.0
      %474 = vmatprep.subr.mxu0 0.0
      %475 = vmatpush1.msra.mxu0 0.0
      %476 = vmatprep.subr.mxu0 0.0
      %477 = vmatpush1.msra.mxu0 0.0
      %478 = vmatprep.subr.mxu0 0.0
      %479 = vmatpush1.msra.mxu0 0.0
      %480 = vmatprep.subr.mxu0 0.0
      %481 = vmatpush1.msra.mxu0 0.0
      %482 = vmatprep.subr.mxu0 0.0
      %483 = vmatpush1.msra.mxu0 0.0
      %484 = vmatprep.mubr.f32.mxu0 0.0
      %485 = vmatmul.mubr.f32.gmra.mrb[0].mxu0 %v412
      %v486 = vpop.f32.mrb[0].mxu0
      %v487 = vadd.f32 0.0, %v486
      %v488 = vpop.f32.mrb[0].mxu0
      %489 = vmatprep.mubr.f32.mxu0 0.0
      %490 = vmatmul.mubr.f32.gmra.mrb[0].mxu0 %v415
      %v491 = vpop.f32.mrb[0].mxu0
      %v492 = vadd.f32 0.0, %v491
      %v493 = vpop.f32.mrb[0].mxu0
      %494 = vmatprep.mubr.f32.mxu0 0.0
      %495 = vmatmul.mubr.f32.gmra.mrb[0].mxu0 %v418
      %v496 = vpop.f32.mrb[0].mxu0
      %v497 = vadd.f32 0.0, %v496
      %v498 = vpop.f32.mrb[0].mxu0
      %499 = vdwg.mxu0
      %v500 = vsub.f32 %v360, 0.9
      %v501 = vsub.f32 %v365, 0.9
      %v502 = vsub.f32 %v370, 0.9
      %v503 = vmul.f32 %v500, %v500
      %v504 = vmul.f32 %v501, %v501
      %v505 = vmul.f32 %v502, %v502
      %v506 = vmul.f32 %v503, -50.0
      %v507 = vmul.f32 %v504, -50.0
      %v508 = vmul.f32 %v505, -50.0
      %v509 = vmul.f32 %v506, 1.442695
      %v510 = vpow.pop %v509
      %v511 = vmul.f32 %v507, 1.442695
      %v512 = vpow.pop %v511
      %v513 = vmul.f32 %v508, 1.442695
      %v514 = vpow.pop %v513
      %v515 = vmul.f32 %v510, %v378
      %v516 = vmul.f32 %v512, %v378
      %v517 = vmul.f32 %v514, %v378
      %v519 = vsel %vm410, %v515, 0
      %v522 = vsel %vm410, %v516, 0
      %v525 = vsel %vm410, %v517, 0
      %527 = vmatprep.subr.mxu0 0.0
      %528 = vmatpush1.msra.mxu0 %v380
      %529 = vmatprep.subr.mxu0 0.0
      %530 = vmatpush1.msra.mxu0 %v381
      %531 = vmatprep.subr.mxu0 0.0
      %532 = vmatpush1.msra.mxu0 %v382
      %533 = vmatprep.subr.mxu0 0.0
      %534 = vmatpush1.msra.mxu0 %v383
      %535 = vmatprep.subr.mxu0 0.0
      %536 = vmatpush1.msra.mxu0 %v384
      %537 = vmatprep.subr.mxu0 0.0
      %538 = vmatpush1.msra.mxu0 %v385
      %539 = vmatprep.subr.mxu0 0.0
      %540 = vmatpush1.msra.mxu0 %v386
      %541 = vmatprep.subr.mxu0 0.0
      %542 = vmatpush1.msra.mxu0 %v387
      %543 = vmatprep.subr.mxu0 0.0
      %544 = vmatpush1.msra.mxu0 %v388
      %545 = vmatprep.subr.mxu0 0.0
      %546 = vmatpush1.msra.mxu0 %v389
      %547 = vmatprep.subr.mxu0 0.0
      %548 = vmatpush1.msra.mxu0 %v390
      %549 = vmatprep.subr.mxu0 0.0
      %550 = vmatpush1.msra.mxu0 %v391
      %551 = vmatprep.subr.mxu0 0.0
      %552 = vmatpush1.msra.mxu0 0.0
      %553 = vmatprep.subr.mxu0 0.0
      %554 = vmatpush1.msra.mxu0 0.0
      %555 = vmatprep.subr.mxu0 0.0
      %556 = vmatpush1.msra.mxu0 0.0
      %557 = vmatprep.subr.mxu0 0.0
      %558 = vmatpush1.msra.mxu0 0.0
      %559 = vmatprep.subr.mxu0 0.0
      %560 = vmatpush1.msra.mxu0 0.0
      %561 = vmatprep.subr.mxu0 0.0
      %562 = vmatpush1.msra.mxu0 0.0
      %563 = vmatprep.subr.mxu0 0.0
      %564 = vmatpush1.msra.mxu0 0.0
      %565 = vmatprep.subr.mxu0 0.0
      %566 = vmatpush1.msra.mxu0 0.0
      %567 = vmatprep.subr.mxu0 0.0
      %568 = vmatpush1.msra.mxu0 0.0
      %569 = vmatprep.subr.mxu0 0.0
      %570 = vmatpush1.msra.mxu0 0.0
      %571 = vmatprep.subr.mxu0 0.0
      %572 = vmatpush1.msra.mxu0 0.0
      %573 = vmatprep.subr.mxu0 0.0
      %574 = vmatpush1.msra.mxu0 0.0
      %575 = vmatprep.subr.mxu0 0.0
      %576 = vmatpush1.msra.mxu0 0.0
      %577 = vmatprep.subr.mxu0 0.0
      %578 = vmatpush1.msra.mxu0 0.0
      %579 = vmatprep.subr.mxu0 0.0
      %580 = vmatpush1.msra.mxu0 0.0
      %581 = vmatprep.subr.mxu0 0.0
      %582 = vmatpush1.msra.mxu0 0.0
      %583 = vmatprep.subr.mxu0 0.0
      %584 = vmatpush1.msra.mxu0 0.0
      %585 = vmatprep.subr.mxu0 0.0
      %586 = vmatpush1.msra.mxu0 0.0
      %587 = vmatprep.subr.mxu0 0.0
      %588 = vmatpush1.msra.mxu0 0.0
      %589 = vmatprep.subr.mxu0 0.0
      %590 = vmatpush1.msra.mxu0 0.0
      %591 = vmatprep.mubr.f32.mxu0 0.0
      %592 = vmatmul.mubr.f32.gmra.mrb[0].mxu0 %v519
      %v593 = vpop.f32.mrb[0].mxu0
      %v594 = vadd.f32 0.0, %v593
      %v595 = vpop.f32.mrb[0].mxu0
      %596 = vmatprep.mubr.f32.mxu0 0.0
      %597 = vmatmul.mubr.f32.gmra.mrb[0].mxu0 %v522
      %v598 = vpop.f32.mrb[0].mxu0
      %v599 = vadd.f32 0.0, %v598
      %v600 = vpop.f32.mrb[0].mxu0
      %601 = vmatprep.mubr.f32.mxu0 0.0
      %602 = vmatmul.mubr.f32.gmra.mrb[0].mxu0 %v525
      %v603 = vpop.f32.mrb[0].mxu0
      %v604 = vadd.f32 0.0, %v603
      %v605 = vpop.f32.mrb[0].mxu0
      %606 = vdwg.mxu0
      %v607 = vsub.f32 %v360, 0.7
      %v608 = vsub.f32 %v365, 0.7
      %v609 = vsub.f32 %v370, 0.7
      %v610 = vmul.f32 %v607, %v607
      %v611 = vmul.f32 %v608, %v608
      %v612 = vmul.f32 %v609, %v609
      %v613 = vmul.f32 %v610, -50.0
      %v614 = vmul.f32 %v611, -50.0
      %v615 = vmul.f32 %v612, -50.0
      %v616 = vmul.f32 %v613, 1.442695
      %v617 = vpow.pop %v616
      %v618 = vmul.f32 %v614, 1.442695
      %v619 = vpow.pop %v618
      %v620 = vmul.f32 %v615, 1.442695
      %v621 = vpow.pop %v620
      %v622 = vmul.f32 %v617, %v378
      %v623 = vmul.f32 %v619, %v378
      %v624 = vmul.f32 %v621, %v378
      %v626 = vsel %vm410, %v622, 0
      %v629 = vsel %vm410, %v623, 0
      %v632 = vsel %vm410, %v624, 0
      %634 = vmatprep.subr.mxu0 0.0
      %635 = vmatpush1.msra.mxu0 %v380
      %636 = vmatprep.subr.mxu0 0.0
      %637 = vmatpush1.msra.mxu0 %v381
      %638 = vmatprep.subr.mxu0 0.0
      %639 = vmatpush1.msra.mxu0 %v382
      %640 = vmatprep.subr.mxu0 0.0
      %641 = vmatpush1.msra.mxu0 %v383
      %642 = vmatprep.subr.mxu0 0.0
      %643 = vmatpush1.msra.mxu0 %v384
      %644 = vmatprep.subr.mxu0 0.0
      %645 = vmatpush1.msra.mxu0 %v385
      %646 = vmatprep.subr.mxu0 0.0
      %647 = vmatpush1.msra.mxu0 %v386
      %648 = vmatprep.subr.mxu0 0.0
      %649 = vmatpush1.msra.mxu0 %v387
      %650 = vmatprep.subr.mxu0 0.0
      %651 = vmatpush1.msra.mxu0 %v388
      %652 = vmatprep.subr.mxu0 0.0
      %653 = vmatpush1.msra.mxu0 %v389
      %654 = vmatprep.subr.mxu0 0.0
      %655 = vmatpush1.msra.mxu0 %v390
      %656 = vmatprep.subr.mxu0 0.0
      %657 = vmatpush1.msra.mxu0 %v391
      %658 = vmatprep.subr.mxu0 0.0
      %659 = vmatpush1.msra.mxu0 0.0
      %660 = vmatprep.subr.mxu0 0.0
      %661 = vmatpush1.msra.mxu0 0.0
      %662 = vmatprep.subr.mxu0 0.0
      %663 = vmatpush1.msra.mxu0 0.0
      %664 = vmatprep.subr.mxu0 0.0
      %665 = vmatpush1.msra.mxu0 0.0
      %666 = vmatprep.subr.mxu0 0.0
      %667 = vmatpush1.msra.mxu0 0.0
      %668 = vmatprep.subr.mxu0 0.0
      %669 = vmatpush1.msra.mxu0 0.0
      %670 = vmatprep.subr.mxu0 0.0
      %671 = vmatpush1.msra.mxu0 0.0
      %672 = vmatprep.subr.mxu0 0.0
      %673 = vmatpush1.msra.mxu0 0.0
      %674 = vmatprep.subr.mxu0 0.0
      %675 = vmatpush1.msra.mxu0 0.0
      %676 = vmatprep.subr.mxu0 0.0
      %677 = vmatpush1.msra.mxu0 0.0
      %678 = vmatprep.subr.mxu0 0.0
      %679 = vmatpush1.msra.mxu0 0.0
      %680 = vmatprep.subr.mxu0 0.0
      %681 = vmatpush1.msra.mxu0 0.0
      %682 = vmatprep.subr.mxu0 0.0
      %683 = vmatpush1.msra.mxu0 0.0
      %684 = vmatprep.subr.mxu0 0.0
      %685 = vmatpush1.msra.mxu0 0.0
      %686 = vmatprep.subr.mxu0 0.0
      %687 = vmatpush1.msra.mxu0 0.0
      %688 = vmatprep.subr.mxu0 0.0
      %689 = vmatpush1.msra.mxu0 0.0
      %690 = vmatprep.subr.mxu0 0.0
      %691 = vmatpush1.msra.mxu0 0.0
      %692 = vmatprep.subr.mxu0 0.0
      %693 = vmatpush1.msra.mxu0 0.0
      %694 = vmatprep.subr.mxu0 0.0
      %695 = vmatpush1.msra.mxu0 0.0
      %696 = vmatprep.subr.mxu0 0.0
      %697 = vmatpush1.msra.mxu0 0.0
      %698 = vmatprep.mubr.f32.mxu0 0.0
      %699 = vmatmul.mubr.f32.gmra.mrb[0].mxu0 %v626
      %v700 = vpop.f32.mrb[0].mxu0
      %v701 = vadd.f32 0.0, %v700
      %v702 = vpop.f32.mrb[0].mxu0
      %703 = vmatprep.mubr.f32.mxu0 0.0
      %704 = vmatmul.mubr.f32.gmra.mrb[0].mxu0 %v629
      %v705 = vpop.f32.mrb[0].mxu0
      %v706 = vadd.f32 0.0, %v705
      %v707 = vpop.f32.mrb[0].mxu0
      %708 = vmatprep.mubr.f32.mxu0 0.0
      %709 = vmatmul.mubr.f32.gmra.mrb[0].mxu0 %v632
      %v710 = vpop.f32.mrb[0].mxu0
      %v711 = vadd.f32 0.0, %v710
      %v712 = vpop.f32.mrb[0].mxu0
      %713 = vdwg.mxu0
      %v714 = vsub.f32 %v360, 0.5
      %v715 = vsub.f32 %v365, 0.5
      %v716 = vsub.f32 %v370, 0.5
      %v717 = vmul.f32 %v714, %v714
      %v718 = vmul.f32 %v715, %v715
      %v719 = vmul.f32 %v716, %v716
      %v720 = vmul.f32 %v717, -50.0
      %v721 = vmul.f32 %v718, -50.0
      %v722 = vmul.f32 %v719, -50.0
      %v723 = vmul.f32 %v720, 1.442695
      %v724 = vpow.pop %v723
      %v725 = vmul.f32 %v721, 1.442695
      %v726 = vpow.pop %v725
      %v727 = vmul.f32 %v722, 1.442695
      %v728 = vpow.pop %v727
      %v729 = vmul.f32 %v724, %v378
      %v730 = vmul.f32 %v726, %v378
      %v731 = vmul.f32 %v728, %v378
      %v733 = vsel %vm410, %v729, 0
      %v736 = vsel %vm410, %v730, 0
      %v739 = vsel %vm410, %v731, 0
      %741 = vmatprep.subr.mxu0 0.0
      %742 = vmatpush1.msra.mxu0 %v380
      %743 = vmatprep.subr.mxu0 0.0
      %744 = vmatpush1.msra.mxu0 %v381
      %745 = vmatprep.subr.mxu0 0.0
      %746 = vmatpush1.msra.mxu0 %v382
      %747 = vmatprep.subr.mxu0 0.0
      %748 = vmatpush1.msra.mxu0 %v383
      %749 = vmatprep.subr.mxu0 0.0
      %750 = vmatpush1.msra.mxu0 %v384
      %751 = vmatprep.subr.mxu0 0.0
      %752 = vmatpush1.msra.mxu0 %v385
      %753 = vmatprep.subr.mxu0 0.0
      %754 = vmatpush1.msra.mxu0 %v386
      %755 = vmatprep.subr.mxu0 0.0
      %756 = vmatpush1.msra.mxu0 %v387
      %757 = vmatprep.subr.mxu0 0.0
      %758 = vmatpush1.msra.mxu0 %v388
      %759 = vmatprep.subr.mxu0 0.0
      %760 = vmatpush1.msra.mxu0 %v389
      %761 = vmatprep.subr.mxu0 0.0
      %762 = vmatpush1.msra.mxu0 %v390
      %763 = vmatprep.subr.mxu0 0.0
      %764 = vmatpush1.msra.mxu0 %v391
      %765 = vmatprep.subr.mxu0 0.0
      %766 = vmatpush1.msra.mxu0 0.0
      %767 = vmatprep.subr.mxu0 0.0
      %768 = vmatpush1.msra.mxu0 0.0
      %769 = vmatprep.subr.mxu0 0.0
      %770 = vmatpush1.msra.mxu0 0.0
      %771 = vmatprep.subr.mxu0 0.0
      %772 = vmatpush1.msra.mxu0 0.0
      %773 = vmatprep.subr.mxu0 0.0
      %774 = vmatpush1.msra.mxu0 0.0
      %775 = vmatprep.subr.mxu0 0.0
      %776 = vmatpush1.msra.mxu0 0.0
      %777 = vmatprep.subr.mxu0 0.0
      %778 = vmatpush1.msra.mxu0 0.0
      %779 = vmatprep.subr.mxu0 0.0
      %780 = vmatpush1.msra.mxu0 0.0
      %781 = vmatprep.subr.mxu0 0.0
      %782 = vmatpush1.msra.mxu0 0.0
      %783 = vmatprep.subr.mxu0 0.0
      %784 = vmatpush1.msra.mxu0 0.0
      %785 = vmatprep.subr.mxu0 0.0
      %786 = vmatpush1.msra.mxu0 0.0
      %787 = vmatprep.subr.mxu0 0.0
      %788 = vmatpush1.msra.mxu0 0.0
      %789 = vmatprep.subr.mxu0 0.0
      %790 = vmatpush1.msra.mxu0 0.0
      %791 = vmatprep.subr.mxu0 0.0
      %792 = vmatpush1.msra.mxu0 0.0
      %793 = vmatprep.subr.mxu0 0.0
      %794 = vmatpush1.msra.mxu0 0.0
      %795 = vmatprep.subr.mxu0 0.0
      %796 = vmatpush1.msra.mxu0 0.0
      %797 = vmatprep.subr.mxu0 0.0
      %798 = vmatpush1.msra.mxu0 0.0
      %799 = vmatprep.subr.mxu0 0.0
      %800 = vmatpush1.msra.mxu0 0.0
      %801 = vmatprep.subr.mxu0 0.0
      %802 = vmatpush1.msra.mxu0 0.0
      %803 = vmatprep.subr.mxu0 0.0
      %804 = vmatpush1.msra.mxu0 0.0
      %805 = vmatprep.mubr.f32.mxu0 0.0
      %806 = vmatmul.mubr.f32.gmra.mrb[0].mxu0 %v733
      %v807 = vpop.f32.mrb[0].mxu0
      %v808 = vadd.f32 0.0, %v807
      %v809 = vpop.f32.mrb[0].mxu0
      %810 = vmatprep.mubr.f32.mxu0 0.0
      %811 = vmatmul.mubr.f32.gmra.mrb[0].mxu0 %v736
      %v812 = vpop.f32.mrb[0].mxu0
      %v813 = vadd.f32 0.0, %v812
      %v814 = vpop.f32.mrb[0].mxu0
      %815 = vmatprep.mubr.f32.mxu0 0.0
      %816 = vmatmul.mubr.f32.gmra.mrb[0].mxu0 %v739
      %v817 = vpop.f32.mrb[0].mxu0
      %v818 = vadd.f32 0.0, %v817
      %v819 = vpop.f32.mrb[0].mxu0
      %820 = vdwg.mxu0
      %v821 = vsub.f32 %v360, 0.3
      %v822 = vsub.f32 %v365, 0.3
      %v823 = vsub.f32 %v370, 0.3
      %v824 = vmul.f32 %v821, %v821
      %v825 = vmul.f32 %v822, %v822
      %v826 = vmul.f32 %v823, %v823
      %v827 = vmul.f32 %v824, -50.0
      %v828 = vmul.f32 %v825, -50.0
      %v829 = vmul.f32 %v826, -50.0
      %v830 = vmul.f32 %v827, 1.442695
      %v831 = vpow.pop %v830
      %v832 = vmul.f32 %v828, 1.442695
      %v833 = vpow.pop %v832
      %v834 = vmul.f32 %v829, 1.442695
      %v835 = vpow.pop %v834
      %v836 = vmul.f32 %v831, %v378
      %v837 = vmul.f32 %v833, %v378
      %v838 = vmul.f32 %v835, %v378
      %v840 = vsel %vm410, %v836, 0
      %v843 = vsel %vm410, %v837, 0
      %v846 = vsel %vm410, %v838, 0
      %848 = vmatprep.subr.mxu0 0.0
      %849 = vmatpush1.msra.mxu0 %v380
      %850 = vmatprep.subr.mxu0 0.0
      %851 = vmatpush1.msra.mxu0 %v381
      %852 = vmatprep.subr.mxu0 0.0
      %853 = vmatpush1.msra.mxu0 %v382
      %854 = vmatprep.subr.mxu0 0.0
      %855 = vmatpush1.msra.mxu0 %v383
      %856 = vmatprep.subr.mxu0 0.0
      %857 = vmatpush1.msra.mxu0 %v384
      %858 = vmatprep.subr.mxu0 0.0
      %859 = vmatpush1.msra.mxu0 %v385
      %860 = vmatprep.subr.mxu0 0.0
      %861 = vmatpush1.msra.mxu0 %v386
      %862 = vmatprep.subr.mxu0 0.0
      %863 = vmatpush1.msra.mxu0 %v387
      %864 = vmatprep.subr.mxu0 0.0
      %865 = vmatpush1.msra.mxu0 %v388
      %866 = vmatprep.subr.mxu0 0.0
      %867 = vmatpush1.msra.mxu0 %v389
      %868 = vmatprep.subr.mxu0 0.0
      %869 = vmatpush1.msra.mxu0 %v390
      %870 = vmatprep.subr.mxu0 0.0
      %871 = vmatpush1.msra.mxu0 %v391
      %872 = vmatprep.subr.mxu0 0.0
      %873 = vmatpush1.msra.mxu0 0.0
      %874 = vmatprep.subr.mxu0 0.0
      %875 = vmatpush1.msra.mxu0 0.0
      %876 = vmatprep.subr.mxu0 0.0
      %877 = vmatpush1.msra.mxu0 0.0
      %878 = vmatprep.subr.mxu0 0.0
      %879 = vmatpush1.msra.mxu0 0.0
      %880 = vmatprep.subr.mxu0 0.0
      %881 = vmatpush1.msra.mxu0 0.0
      %882 = vmatprep.subr.mxu0 0.0
      %883 = vmatpush1.msra.mxu0 0.0
      %884 = vmatprep.subr.mxu0 0.0
      %885 = vmatpush1.msra.mxu0 0.0
      %886 = vmatprep.subr.mxu0 0.0
      %887 = vmatpush1.msra.mxu0 0.0
      %888 = vmatprep.subr.mxu0 0.0
      %889 = vmatpush1.msra.mxu0 0.0
      %890 = vmatprep.subr.mxu0 0.0
      %891 = vmatpush1.msra.mxu0 0.0
      %892 = vmatprep.subr.mxu0 0.0
      %893 = vmatpush1.msra.mxu0 0.0
      %894 = vmatprep.subr.mxu0 0.0
      %895 = vmatpush1.msra.mxu0 0.0
      %896 = vmatprep.subr.mxu0 0.0
      %897 = vmatpush1.msra.mxu0 0.0
      %898 = vmatprep.subr.mxu0 0.0
      %899 = vmatpush1.msra.mxu0 0.0
      %900 = vmatprep.subr.mxu0 0.0
      %901 = vmatpush1.msra.mxu0 0.0
      %902 = vmatprep.subr.mxu0 0.0
      %903 = vmatpush1.msra.mxu0 0.0
      %904 = vmatprep.subr.mxu0 0.0
      %905 = vmatpush1.msra.mxu0 0.0
      %906 = vmatprep.subr.mxu0 0.0
      %907 = vmatpush1.msra.mxu0 0.0
      %908 = vmatprep.subr.mxu0 0.0
      %909 = vmatpush1.msra.mxu0 0.0
      %910 = vmatprep.subr.mxu0 0.0
      %911 = vmatpush1.msra.mxu0 0.0
      %912 = vmatprep.mubr.f32.mxu0 0.0
      %913 = vmatmul.mubr.f32.gmra.mrb[0].mxu0 %v840
      %v914 = vpop.f32.mrb[0].mxu0
      %v915 = vadd.f32 0.0, %v914
      %v916 = vpop.f32.mrb[0].mxu0
      %917 = vmatprep.mubr.f32.mxu0 0.0
      %918 = vmatmul.mubr.f32.gmra.mrb[0].mxu0 %v843
      %v919 = vpop.f32.mrb[0].mxu0
      %v920 = vadd.f32 0.0, %v919
      %v921 = vpop.f32.mrb[0].mxu0
      %922 = vmatprep.mubr.f32.mxu0 0.0
      %923 = vmatmul.mubr.f32.gmra.mrb[0].mxu0 %v846
      %v924 = vpop.f32.mrb[0].mxu0
      %v925 = vadd.f32 0.0, %v924
      %v926 = vpop.f32.mrb[0].mxu0
      %927 = vdwg.mxu0
      %v928 = vsub.f32 %v360, 0.1
      %v929 = vsub.f32 %v365, 0.1
      %v930 = vsub.f32 %v370, 0.1
      %v931 = vmul.f32 %v928, %v928
      %v932 = vmul.f32 %v929, %v929
      %v933 = vmul.f32 %v930, %v930
      %v934 = vmul.f32 %v931, -50.0
      %v935 = vmul.f32 %v932, -50.0
      %v936 = vmul.f32 %v933, -50.0
      %v937 = vmul.f32 %v934, 1.442695
      %v938 = vpow.pop %v937
      %v939 = vmul.f32 %v935, 1.442695
      %v940 = vpow.pop %v939
      %v941 = vmul.f32 %v936, 1.442695
      %v942 = vpow.pop %v941
      %v943 = vmul.f32 %v938, %v378
      %v944 = vmul.f32 %v940, %v378
      %v945 = vmul.f32 %v942, %v378
      %v947 = vsel %vm410, %v943, 0
      %v950 = vsel %vm410, %v944, 0
      %v953 = vsel %vm410, %v945, 0
      %955 = vmatprep.subr.mxu0 0.0
      %956 = vmatpush1.msra.mxu0 %v380
      %957 = vmatprep.subr.mxu0 0.0
      %958 = vmatpush1.msra.mxu0 %v381
      %959 = vmatprep.subr.mxu0 0.0
      %960 = vmatpush1.msra.mxu0 %v382
      %961 = vmatprep.subr.mxu0 0.0
      %962 = vmatpush1.msra.mxu0 %v383
      %963 = vmatprep.subr.mxu0 0.0
      %964 = vmatpush1.msra.mxu0 %v384
      %965 = vmatprep.subr.mxu0 0.0
      %966 = vmatpush1.msra.mxu0 %v385
      %967 = vmatprep.subr.mxu0 0.0
      %968 = vmatpush1.msra.mxu0 %v386
      %969 = vmatprep.subr.mxu0 0.0
      %970 = vmatpush1.msra.mxu0 %v387
      %971 = vmatprep.subr.mxu0 0.0
      %972 = vmatpush1.msra.mxu0 %v388
      %973 = vmatprep.subr.mxu0 0.0
      %974 = vmatpush1.msra.mxu0 %v389
      %975 = vmatprep.subr.mxu0 0.0
      %976 = vmatpush1.msra.mxu0 %v390
      %977 = vmatprep.subr.mxu0 0.0
      %978 = vmatpush1.msra.mxu0 %v391
      %979 = vmatprep.subr.mxu0 0.0
      %980 = vmatpush1.msra.mxu0 0.0
      %981 = vmatprep.subr.mxu0 0.0
      %982 = vmatpush1.msra.mxu0 0.0
      %983 = vmatprep.subr.mxu0 0.0
      %984 = vmatpush1.msra.mxu0 0.0
      %985 = vmatprep.subr.mxu0 0.0
      %986 = vmatpush1.msra.mxu0 0.0
      %987 = vmatprep.subr.mxu0 0.0
      %988 = vmatpush1.msra.mxu0 0.0
      %989 = vmatprep.subr.mxu0 0.0
      %990 = vmatpush1.msra.mxu0 0.0
      %991 = vmatprep.subr.mxu0 0.0
      %992 = vmatpush1.msra.mxu0 0.0
      %993 = vmatprep.subr.mxu0 0.0
      %994 = vmatpush1.msra.mxu0 0.0
      %995 = vmatprep.subr.mxu0 0.0
      %996 = vmatpush1.msra.mxu0 0.0
      %997 = vmatprep.subr.mxu0 0.0
      %998 = vmatpush1.msra.mxu0 0.0
      %999 = vmatprep.subr.mxu0 0.0
      %1000 = vmatpush1.msra.mxu0 0.0
      %1001 = vmatprep.subr.mxu0 0.0
      %1002 = vmatpush1.msra.mxu0 0.0
      %1003 = vmatprep.subr.mxu0 0.0
      %1004 = vmatpush1.msra.mxu0 0.0
      %1005 = vmatprep.subr.mxu0 0.0
      %1006 = vmatpush1.msra.mxu0 0.0
      %1007 = vmatprep.subr.mxu0 0.0
      %1008 = vmatpush1.msra.mxu0 0.0
      %1009 = vmatprep.subr.mxu0 0.0
      %1010 = vmatpush1.msra.mxu0 0.0
      %1011 = vmatprep.subr.mxu0 0.0
      %1012 = vmatpush1.msra.mxu0 0.0
      %1013 = vmatprep.subr.mxu0 0.0
      %1014 = vmatpush1.msra.mxu0 0.0
      %1015 = vmatprep.subr.mxu0 0.0
      %1016 = vmatpush1.msra.mxu0 0.0
      %1017 = vmatprep.subr.mxu0 0.0
      %1018 = vmatpush1.msra.mxu0 0.0
      %1019 = vmatprep.mubr.f32.mxu0 0.0
      %1020 = vmatmul.mubr.f32.gmra.mrb[0].mxu0 %v947
      %v1021 = vpop.f32.mrb[0].mxu0
      %v1022 = vadd.f32 0.0, %v1021
      %v1023 = vpop.f32.mrb[0].mxu0
      %1024 = vmatprep.mubr.f32.mxu0 0.0
      %1025 = vmatmul.mubr.f32.gmra.mrb[0].mxu0 %v950
      %v1026 = vpop.f32.mrb[0].mxu0
      %v1027 = vadd.f32 0.0, %v1026
      %v1028 = vpop.f32.mrb[0].mxu0
      %1029 = vmatprep.mubr.f32.mxu0 0.0
      %1030 = vmatmul.mubr.f32.gmra.mrb[0].mxu0 %v953
      %v1031 = vpop.f32.mrb[0].mxu0
      %v1032 = vadd.f32 0.0, %v1031
      %v1033 = vpop.f32.mrb[0].mxu0
      %1034 = vdwg.mxu0
      %v1035 = vsub.f32 %v360, -0.1
      %v1036 = vsub.f32 %v365, -0.1
      %v1037 = vsub.f32 %v370, -0.1
      %v1038 = vmul.f32 %v1035, %v1035
      %v1039 = vmul.f32 %v1036, %v1036
      %v1040 = vmul.f32 %v1037, %v1037
      %v1041 = vmul.f32 %v1038, -50.0
      %v1042 = vmul.f32 %v1039, -50.0
      %v1043 = vmul.f32 %v1040, -50.0
      %v1044 = vmul.f32 %v1041, 1.442695
      %v1045 = vpow.pop %v1044
      %v1046 = vmul.f32 %v1042, 1.442695
      %v1047 = vpow.pop %v1046
      %v1048 = vmul.f32 %v1043, 1.442695
      %v1049 = vpow.pop %v1048
      %v1050 = vmul.f32 %v1045, %v378
      %v1051 = vmul.f32 %v1047, %v378
      %v1052 = vmul.f32 %v1049, %v378
      %v1054 = vsel %vm410, %v1050, 0
      %v1057 = vsel %vm410, %v1051, 0
      %v1060 = vsel %vm410, %v1052, 0
      %1062 = vmatprep.subr.mxu0 0.0
      %1063 = vmatpush1.msra.mxu0 %v380
      %1064 = vmatprep.subr.mxu0 0.0
      %1065 = vmatpush1.msra.mxu0 %v381
      %1066 = vmatprep.subr.mxu0 0.0
      %1067 = vmatpush1.msra.mxu0 %v382
      %1068 = vmatprep.subr.mxu0 0.0
      %1069 = vmatpush1.msra.mxu0 %v383
      %1070 = vmatprep.subr.mxu0 0.0
      %1071 = vmatpush1.msra.mxu0 %v384
      %1072 = vmatprep.subr.mxu0 0.0
      %1073 = vmatpush1.msra.mxu0 %v385
      %1074 = vmatprep.subr.mxu0 0.0
      %1075 = vmatpush1.msra.mxu0 %v386
      %1076 = vmatprep.subr.mxu0 0.0
      %1077 = vmatpush1.msra.mxu0 %v387
      %1078 = vmatprep.subr.mxu0 0.0
      %1079 = vmatpush1.msra.mxu0 %v388
      %1080 = vmatprep.subr.mxu0 0.0
      %1081 = vmatpush1.msra.mxu0 %v389
      %1082 = vmatprep.subr.mxu0 0.0
      %1083 = vmatpush1.msra.mxu0 %v390
      %1084 = vmatprep.subr.mxu0 0.0
      %1085 = vmatpush1.msra.mxu0 %v391
      %1086 = vmatprep.subr.mxu0 0.0
      %1087 = vmatpush1.msra.mxu0 0.0
      %1088 = vmatprep.subr.mxu0 0.0
      %1089 = vmatpush1.msra.mxu0 0.0
      %1090 = vmatprep.subr.mxu0 0.0
      %1091 = vmatpush1.msra.mxu0 0.0
      %1092 = vmatprep.subr.mxu0 0.0
      %1093 = vmatpush1.msra.mxu0 0.0
      %1094 = vmatprep.subr.mxu0 0.0
      %1095 = vmatpush1.msra.mxu0 0.0
      %1096 = vmatprep.subr.mxu0 0.0
      %1097 = vmatpush1.msra.mxu0 0.0
      %1098 = vmatprep.subr.mxu0 0.0
      %1099 = vmatpush1.msra.mxu0 0.0
      %1100 = vmatprep.subr.mxu0 0.0
      %1101 = vmatpush1.msra.mxu0 0.0
      %1102 = vmatprep.subr.mxu0 0.0
      %1103 = vmatpush1.msra.mxu0 0.0
      %1104 = vmatprep.subr.mxu0 0.0
      %1105 = vmatpush1.msra.mxu0 0.0
      %1106 = vmatprep.subr.mxu0 0.0
      %1107 = vmatpush1.msra.mxu0 0.0
      %1108 = vmatprep.subr.mxu0 0.0
      %1109 = vmatpush1.msra.mxu0 0.0
      %1110 = vmatprep.subr.mxu0 0.0
      %1111 = vmatpush1.msra.mxu0 0.0
      %1112 = vmatprep.subr.mxu0 0.0
      %1113 = vmatpush1.msra.mxu0 0.0
      %1114 = vmatprep.subr.mxu0 0.0
      %1115 = vmatpush1.msra.mxu0 0.0
      %1116 = vmatprep.subr.mxu0 0.0
      %1117 = vmatpush1.msra.mxu0 0.0
      %1118 = vmatprep.subr.mxu0 0.0
      %1119 = vmatpush1.msra.mxu0 0.0
      %1120 = vmatprep.subr.mxu0 0.0
      %1121 = vmatpush1.msra.mxu0 0.0
      %1122 = vmatprep.subr.mxu0 0.0
      %1123 = vmatpush1.msra.mxu0 0.0
      %1124 = vmatprep.subr.mxu0 0.0
      %1125 = vmatpush1.msra.mxu0 0.0
      %1126 = vmatprep.mubr.f32.mxu0 0.0
      %1127 = vmatmul.mubr.f32.gmra.mrb[0].mxu0 %v1054
      %v1128 = vpop.f32.mrb[0].mxu0
      %v1129 = vadd.f32 0.0, %v1128
      %v1130 = vpop.f32.mrb[0].mxu0
      %1131 = vmatprep.mubr.f32.mxu0 0.0
      %1132 = vmatmul.mubr.f32.gmra.mrb[0].mxu0 %v1057
      %v1133 = vpop.f32.mrb[0].mxu0
      %v1134 = vadd.f32 0.0, %v1133
      %v1135 = vpop.f32.mrb[0].mxu0
      %1136 = vmatprep.mubr.f32.mxu0 0.0
      %1137 = vmatmul.mubr.f32.gmra.mrb[0].mxu0 %v1060
      %v1138 = vpop.f32.mrb[0].mxu0
      %v1139 = vadd.f32 0.0, %v1138
      %v1140 = vpop.f32.mrb[0].mxu0
      %1141 = vdwg.mxu0
      %v1142 = vsub.f32 %v360, -0.3
      %v1143 = vsub.f32 %v365, -0.3
      %v1144 = vsub.f32 %v370, -0.3
      %v1145 = vmul.f32 %v1142, %v1142
      %v1146 = vmul.f32 %v1143, %v1143
      %v1147 = vmul.f32 %v1144, %v1144
      %v1148 = vmul.f32 %v1145, -50.0
      %v1149 = vmul.f32 %v1146, -50.0
      %v1150 = vmul.f32 %v1147, -50.0
      %v1151 = vmul.f32 %v1148, 1.442695
      %v1152 = vpow.pop %v1151
      %v1153 = vmul.f32 %v1149, 1.442695
      %v1154 = vpow.pop %v1153
      %v1155 = vmul.f32 %v1150, 1.442695
      %v1156 = vpow.pop %v1155
      %v1157 = vmul.f32 %v1152, %v378
      %v1158 = vmul.f32 %v1154, %v378
      %v1159 = vmul.f32 %v1156, %v378
      %v1161 = vsel %vm410, %v1157, 0
      %v1164 = vsel %vm410, %v1158, 0
      %v1167 = vsel %vm410, %v1159, 0
      %1169 = vmatprep.subr.mxu0 0.0
      %1170 = vmatpush1.msra.mxu0 %v380
      %1171 = vmatprep.subr.mxu0 0.0
      %1172 = vmatpush1.msra.mxu0 %v381
      %1173 = vmatprep.subr.mxu0 0.0
      %1174 = vmatpush1.msra.mxu0 %v382
      %1175 = vmatprep.subr.mxu0 0.0
      %1176 = vmatpush1.msra.mxu0 %v383
      %1177 = vmatprep.subr.mxu0 0.0
      %1178 = vmatpush1.msra.mxu0 %v384
      %1179 = vmatprep.subr.mxu0 0.0
      %1180 = vmatpush1.msra.mxu0 %v385
      %1181 = vmatprep.subr.mxu0 0.0
      %1182 = vmatpush1.msra.mxu0 %v386
      %1183 = vmatprep.subr.mxu0 0.0
      %1184 = vmatpush1.msra.mxu0 %v387
      %1185 = vmatprep.subr.mxu0 0.0
      %1186 = vmatpush1.msra.mxu0 %v388
      %1187 = vmatprep.subr.mxu0 0.0
      %1188 = vmatpush1.msra.mxu0 %v389
      %1189 = vmatprep.subr.mxu0 0.0
      %1190 = vmatpush1.msra.mxu0 %v390
      %1191 = vmatprep.subr.mxu0 0.0
      %1192 = vmatpush1.msra.mxu0 %v391
      %1193 = vmatprep.subr.mxu0 0.0
      %1194 = vmatpush1.msra.mxu0 0.0
      %1195 = vmatprep.subr.mxu0 0.0
      %1196 = vmatpush1.msra.mxu0 0.0
      %1197 = vmatprep.subr.mxu0 0.0
      %1198 = vmatpush1.msra.mxu0 0.0
      %1199 = vmatprep.subr.mxu0 0.0
      %1200 = vmatpush1.msra.mxu0 0.0
      %1201 = vmatprep.subr.mxu0 0.0
      %1202 = vmatpush1.msra.mxu0 0.0
      %1203 = vmatprep.subr.mxu0 0.0
      %1204 = vmatpush1.msra.mxu0 0.0
      %1205 = vmatprep.subr.mxu0 0.0
      %1206 = vmatpush1.msra.mxu0 0.0
      %1207 = vmatprep.subr.mxu0 0.0
      %1208 = vmatpush1.msra.mxu0 0.0
      %1209 = vmatprep.subr.mxu0 0.0
      %1210 = vmatpush1.msra.mxu0 0.0
      %1211 = vmatprep.subr.mxu0 0.0
      %1212 = vmatpush1.msra.mxu0 0.0
      %1213 = vmatprep.subr.mxu0 0.0
      %1214 = vmatpush1.msra.mxu0 0.0
      %1215 = vmatprep.subr.mxu0 0.0
      %1216 = vmatpush1.msra.mxu0 0.0
      %1217 = vmatprep.subr.mxu0 0.0
      %1218 = vmatpush1.msra.mxu0 0.0
      %1219 = vmatprep.subr.mxu0 0.0
      %1220 = vmatpush1.msra.mxu0 0.0
      %1221 = vmatprep.subr.mxu0 0.0
      %1222 = vmatpush1.msra.mxu0 0.0
      %1223 = vmatprep.subr.mxu0 0.0
      %1224 = vmatpush1.msra.mxu0 0.0
      %1225 = vmatprep.subr.mxu0 0.0
      %1226 = vmatpush1.msra.mxu0 0.0
      %1227 = vmatprep.subr.mxu0 0.0
      %1228 = vmatpush1.msra.mxu0 0.0
      %1229 = vmatprep.subr.mxu0 0.0
      %1230 = vmatpush1.msra.mxu0 0.0
      %1231 = vmatprep.subr.mxu0 0.0
      %1232 = vmatpush1.msra.mxu0 0.0
      %1233 = vmatprep.mubr.f32.mxu0 0.0
      %1234 = vmatmul.mubr.f32.gmra.mrb[0].mxu0 %v1161
      %v1235 = vpop.f32.mrb[0].mxu0
      %v1236 = vadd.f32 0.0, %v1235
      %v1237 = vpop.f32.mrb[0].mxu0
      %1238 = vmatprep.mubr.f32.mxu0 0.0
      %1239 = vmatmul.mubr.f32.gmra.mrb[0].mxu0 %v1164
      %v1240 = vpop.f32.mrb[0].mxu0
      %v1241 = vadd.f32 0.0, %v1240
      %v1242 = vpop.f32.mrb[0].mxu0
      %1243 = vmatprep.mubr.f32.mxu0 0.0
      %1244 = vmatmul.mubr.f32.gmra.mrb[0].mxu0 %v1167
      %v1245 = vpop.f32.mrb[0].mxu0
      %v1246 = vadd.f32 0.0, %v1245
      %v1247 = vpop.f32.mrb[0].mxu0
      %1248 = vdwg.mxu0
      %v1249 = vsub.f32 %v360, -0.5
      %v1250 = vsub.f32 %v365, -0.5
      %v1251 = vsub.f32 %v370, -0.5
      %v1252 = vmul.f32 %v1249, %v1249
      %v1253 = vmul.f32 %v1250, %v1250
      %v1254 = vmul.f32 %v1251, %v1251
      %v1255 = vmul.f32 %v1252, -50.0
      %v1256 = vmul.f32 %v1253, -50.0
      %v1257 = vmul.f32 %v1254, -50.0
      %v1258 = vmul.f32 %v1255, 1.442695
      %v1259 = vpow.pop %v1258
      %v1260 = vmul.f32 %v1256, 1.442695
      %v1261 = vpow.pop %v1260
      %v1262 = vmul.f32 %v1257, 1.442695
      %v1263 = vpow.pop %v1262
      %v1264 = vmul.f32 %v1259, %v378
      %v1265 = vmul.f32 %v1261, %v378
      %v1266 = vmul.f32 %v1263, %v378
      %v1268 = vsel %vm410, %v1264, 0
      %v1271 = vsel %vm410, %v1265, 0
      %v1274 = vsel %vm410, %v1266, 0
      %1276 = vmatprep.subr.mxu0 0.0
      %1277 = vmatpush1.msra.mxu0 %v380
      %1278 = vmatprep.subr.mxu0 0.0
      %1279 = vmatpush1.msra.mxu0 %v381
      %1280 = vmatprep.subr.mxu0 0.0
      %1281 = vmatpush1.msra.mxu0 %v382
      %1282 = vmatprep.subr.mxu0 0.0
      %1283 = vmatpush1.msra.mxu0 %v383
      %1284 = vmatprep.subr.mxu0 0.0
      %1285 = vmatpush1.msra.mxu0 %v384
      %1286 = vmatprep.subr.mxu0 0.0
      %1287 = vmatpush1.msra.mxu0 %v385
      %1288 = vmatprep.subr.mxu0 0.0
      %1289 = vmatpush1.msra.mxu0 %v386
      %1290 = vmatprep.subr.mxu0 0.0
      %1291 = vmatpush1.msra.mxu0 %v387
      %1292 = vmatprep.subr.mxu0 0.0
      %1293 = vmatpush1.msra.mxu0 %v388
      %1294 = vmatprep.subr.mxu0 0.0
      %1295 = vmatpush1.msra.mxu0 %v389
      %1296 = vmatprep.subr.mxu0 0.0
      %1297 = vmatpush1.msra.mxu0 %v390
      %1298 = vmatprep.subr.mxu0 0.0
      %1299 = vmatpush1.msra.mxu0 %v391
      %1300 = vmatprep.subr.mxu0 0.0
      %1301 = vmatpush1.msra.mxu0 0.0
      %1302 = vmatprep.subr.mxu0 0.0
      %1303 = vmatpush1.msra.mxu0 0.0
      %1304 = vmatprep.subr.mxu0 0.0
      %1305 = vmatpush1.msra.mxu0 0.0
      %1306 = vmatprep.subr.mxu0 0.0
      %1307 = vmatpush1.msra.mxu0 0.0
      %1308 = vmatprep.subr.mxu0 0.0
      %1309 = vmatpush1.msra.mxu0 0.0
      %1310 = vmatprep.subr.mxu0 0.0
      %1311 = vmatpush1.msra.mxu0 0.0
      %1312 = vmatprep.subr.mxu0 0.0
      %1313 = vmatpush1.msra.mxu0 0.0
      %1314 = vmatprep.subr.mxu0 0.0
      %1315 = vmatpush1.msra.mxu0 0.0
      %1316 = vmatprep.subr.mxu0 0.0
      %1317 = vmatpush1.msra.mxu0 0.0
      %1318 = vmatprep.subr.mxu0 0.0
      %1319 = vmatpush1.msra.mxu0 0.0
      %1320 = vmatprep.subr.mxu0 0.0
      %1321 = vmatpush1.msra.mxu0 0.0
      %1322 = vmatprep.subr.mxu0 0.0
      %1323 = vmatpush1.msra.mxu0 0.0
      %1324 = vmatprep.subr.mxu0 0.0
      %1325 = vmatpush1.msra.mxu0 0.0
      %1326 = vmatprep.subr.mxu0 0.0
      %1327 = vmatpush1.msra.mxu0 0.0
      %1328 = vmatprep.subr.mxu0 0.0
      %1329 = vmatpush1.msra.mxu0 0.0
      %1330 = vmatprep.subr.mxu0 0.0
      %1331 = vmatpush1.msra.mxu0 0.0
      %1332 = vmatprep.subr.mxu0 0.0
      %1333 = vmatpush1.msra.mxu0 0.0
      %1334 = vmatprep.subr.mxu0 0.0
      %1335 = vmatpush1.msra.mxu0 0.0
      %1336 = vmatprep.subr.mxu0 0.0
      %1337 = vmatpush1.msra.mxu0 0.0
      %1338 = vmatprep.subr.mxu0 0.0
      %1339 = vmatpush1.msra.mxu0 0.0
      %1340 = vmatprep.mubr.f32.mxu0 0.0
      %1341 = vmatmul.mubr.f32.gmra.mrb[0].mxu0 %v1268
      %v1342 = vpop.f32.mrb[0].mxu0
      %v1343 = vadd.f32 0.0, %v1342
      %v1344 = vpop.f32.mrb[0].mxu0
      %1345 = vmatprep.mubr.f32.mxu0 0.0
      %1346 = vmatmul.mubr.f32.gmra.mrb[0].mxu0 %v1271
      %v1347 = vpop.f32.mrb[0].mxu0
      %v1348 = vadd.f32 0.0, %v1347
      %v1349 = vpop.f32.mrb[0].mxu0
      %1350 = vmatprep.mubr.f32.mxu0 0.0
      %1351 = vmatmul.mubr.f32.gmra.mrb[0].mxu0 %v1274
      %v1352 = vpop.f32.mrb[0].mxu0
      %v1353 = vadd.f32 0.0, %v1352
      %v1354 = vpop.f32.mrb[0].mxu0
      %1355 = vdwg.mxu0
      %v1356 = vsub.f32 %v360, -0.7
      %v1357 = vsub.f32 %v365, -0.7
      %v1358 = vsub.f32 %v370, -0.7
      %v1359 = vmul.f32 %v1356, %v1356
      %v1360 = vmul.f32 %v1357, %v1357
      %v1361 = vmul.f32 %v1358, %v1358
      %v1362 = vmul.f32 %v1359, -50.0
      %v1363 = vmul.f32 %v1360, -50.0
      %v1364 = vmul.f32 %v1361, -50.0
      %v1365 = vmul.f32 %v1362, 1.442695
      %v1366 = vpow.pop %v1365
      %v1367 = vmul.f32 %v1363, 1.442695
      %v1368 = vpow.pop %v1367
      %v1369 = vmul.f32 %v1364, 1.442695
      %v1370 = vpow.pop %v1369
      %v1371 = vmul.f32 %v1366, %v378
      %v1372 = vmul.f32 %v1368, %v378
      %v1373 = vmul.f32 %v1370, %v378
      %v1375 = vsel %vm410, %v1371, 0
      %v1378 = vsel %vm410, %v1372, 0
      %v1381 = vsel %vm410, %v1373, 0
      %1383 = vmatprep.subr.mxu0 0.0
      %1384 = vmatpush1.msra.mxu0 %v380
      %1385 = vmatprep.subr.mxu0 0.0
      %1386 = vmatpush1.msra.mxu0 %v381
      %1387 = vmatprep.subr.mxu0 0.0
      %1388 = vmatpush1.msra.mxu0 %v382
      %1389 = vmatprep.subr.mxu0 0.0
      %1390 = vmatpush1.msra.mxu0 %v383
      %1391 = vmatprep.subr.mxu0 0.0
      %1392 = vmatpush1.msra.mxu0 %v384
      %1393 = vmatprep.subr.mxu0 0.0
      %1394 = vmatpush1.msra.mxu0 %v385
      %1395 = vmatprep.subr.mxu0 0.0
      %1396 = vmatpush1.msra.mxu0 %v386
      %1397 = vmatprep.subr.mxu0 0.0
      %1398 = vmatpush1.msra.mxu0 %v387
      %1399 = vmatprep.subr.mxu0 0.0
      %1400 = vmatpush1.msra.mxu0 %v388
      %1401 = vmatprep.subr.mxu0 0.0
      %1402 = vmatpush1.msra.mxu0 %v389
      %1403 = vmatprep.subr.mxu0 0.0
      %1404 = vmatpush1.msra.mxu0 %v390
      %1405 = vmatprep.subr.mxu0 0.0
      %1406 = vmatpush1.msra.mxu0 %v391
      %1407 = vmatprep.subr.mxu0 0.0
      %1408 = vmatpush1.msra.mxu0 0.0
      %1409 = vmatprep.subr.mxu0 0.0
      %1410 = vmatpush1.msra.mxu0 0.0
      %1411 = vmatprep.subr.mxu0 0.0
      %1412 = vmatpush1.msra.mxu0 0.0
      %1413 = vmatprep.subr.mxu0 0.0
      %1414 = vmatpush1.msra.mxu0 0.0
      %1415 = vmatprep.subr.mxu0 0.0
      %1416 = vmatpush1.msra.mxu0 0.0
      %1417 = vmatprep.subr.mxu0 0.0
      %1418 = vmatpush1.msra.mxu0 0.0
      %1419 = vmatprep.subr.mxu0 0.0
      %1420 = vmatpush1.msra.mxu0 0.0
      %1421 = vmatprep.subr.mxu0 0.0
      %1422 = vmatpush1.msra.mxu0 0.0
      %1423 = vmatprep.subr.mxu0 0.0
      %1424 = vmatpush1.msra.mxu0 0.0
      %1425 = vmatprep.subr.mxu0 0.0
      %1426 = vmatpush1.msra.mxu0 0.0
      %1427 = vmatprep.subr.mxu0 0.0
      %1428 = vmatpush1.msra.mxu0 0.0
      %1429 = vmatprep.subr.mxu0 0.0
      %1430 = vmatpush1.msra.mxu0 0.0
      %1431 = vmatprep.subr.mxu0 0.0
      %1432 = vmatpush1.msra.mxu0 0.0
      %1433 = vmatprep.subr.mxu0 0.0
      %1434 = vmatpush1.msra.mxu0 0.0
      %1435 = vmatprep.subr.mxu0 0.0
      %1436 = vmatpush1.msra.mxu0 0.0
      %1437 = vmatprep.subr.mxu0 0.0
      %1438 = vmatpush1.msra.mxu0 0.0
      %1439 = vmatprep.subr.mxu0 0.0
      %1440 = vmatpush1.msra.mxu0 0.0
      %1441 = vmatprep.subr.mxu0 0.0
      %1442 = vmatpush1.msra.mxu0 0.0
      %1443 = vmatprep.subr.mxu0 0.0
      %1444 = vmatpush1.msra.mxu0 0.0
      %1445 = vmatprep.subr.mxu0 0.0
      %1446 = vmatpush1.msra.mxu0 0.0
      %1447 = vmatprep.mubr.f32.mxu0 0.0
      %1448 = vmatmul.mubr.f32.gmra.mrb[0].mxu0 %v1375
      %v1449 = vpop.f32.mrb[0].mxu0
      %v1450 = vadd.f32 0.0, %v1449
      %v1451 = vpop.f32.mrb[0].mxu0
      %1452 = vmatprep.mubr.f32.mxu0 0.0
      %1453 = vmatmul.mubr.f32.gmra.mrb[0].mxu0 %v1378
      %v1454 = vpop.f32.mrb[0].mxu0
      %v1455 = vadd.f32 0.0, %v1454
      %v1456 = vpop.f32.mrb[0].mxu0
      %1457 = vmatprep.mubr.f32.mxu0 0.0
      %1458 = vmatmul.mubr.f32.gmra.mrb[0].mxu0 %v1381
      %v1459 = vpop.f32.mrb[0].mxu0
      %v1460 = vadd.f32 0.0, %v1459
      %v1461 = vpop.f32.mrb[0].mxu0
      %1462 = vdwg.mxu0
      %v1463 = vsub.f32 %v360, -0.9
      %v1464 = vsub.f32 %v365, -0.9
      %v1465 = vsub.f32 %v370, -0.9
      %v1466 = vmul.f32 %v1463, %v1463
      %v1467 = vmul.f32 %v1464, %v1464
      %v1468 = vmul.f32 %v1465, %v1465
      %v1469 = vmul.f32 %v1466, -50.0
      %v1470 = vmul.f32 %v1467, -50.0
      %v1471 = vmul.f32 %v1468, -50.0
      %v1472 = vmul.f32 %v1469, 1.442695
      %v1473 = vpow.pop %v1472
      %v1474 = vmul.f32 %v1470, 1.442695
      %v1475 = vpow.pop %v1474
      %v1476 = vmul.f32 %v1471, 1.442695
      %v1477 = vpow.pop %v1476
      %v1478 = vmul.f32 %v1473, %v378
      %v1479 = vmul.f32 %v1475, %v378
      %v1480 = vmul.f32 %v1477, %v378
      %v1482 = vsel %vm410, %v1478, 0
      %v1485 = vsel %vm410, %v1479, 0
      %v1488 = vsel %vm410, %v1480, 0
      %1490 = vmatprep.subr.mxu0 0.0
      %1491 = vmatpush1.msra.mxu0 %v380
      %1492 = vmatprep.subr.mxu0 0.0
      %1493 = vmatpush1.msra.mxu0 %v381
      %1494 = vmatprep.subr.mxu0 0.0
      %1495 = vmatpush1.msra.mxu0 %v382
      %1496 = vmatprep.subr.mxu0 0.0
      %1497 = vmatpush1.msra.mxu0 %v383
      %1498 = vmatprep.subr.mxu0 0.0
      %1499 = vmatpush1.msra.mxu0 %v384
      %1500 = vmatprep.subr.mxu0 0.0
      %1501 = vmatpush1.msra.mxu0 %v385
      %1502 = vmatprep.subr.mxu0 0.0
      %1503 = vmatpush1.msra.mxu0 %v386
      %1504 = vmatprep.subr.mxu0 0.0
      %1505 = vmatpush1.msra.mxu0 %v387
      %1506 = vmatprep.subr.mxu0 0.0
      %1507 = vmatpush1.msra.mxu0 %v388
      %1508 = vmatprep.subr.mxu0 0.0
      %1509 = vmatpush1.msra.mxu0 %v389
      %1510 = vmatprep.subr.mxu0 0.0
      %1511 = vmatpush1.msra.mxu0 %v390
      %1512 = vmatprep.subr.mxu0 0.0
      %1513 = vmatpush1.msra.mxu0 %v391
      %1514 = vmatprep.subr.mxu0 0.0
      %1515 = vmatpush1.msra.mxu0 0.0
      %1516 = vmatprep.subr.mxu0 0.0
      %1517 = vmatpush1.msra.mxu0 0.0
      %1518 = vmatprep.subr.mxu0 0.0
      %1519 = vmatpush1.msra.mxu0 0.0
      %1520 = vmatprep.subr.mxu0 0.0
      %1521 = vmatpush1.msra.mxu0 0.0
      %1522 = vmatprep.subr.mxu0 0.0
      %1523 = vmatpush1.msra.mxu0 0.0
      %1524 = vmatprep.subr.mxu0 0.0
      %1525 = vmatpush1.msra.mxu0 0.0
      %1526 = vmatprep.subr.mxu0 0.0
      %1527 = vmatpush1.msra.mxu0 0.0
      %1528 = vmatprep.subr.mxu0 0.0
      %1529 = vmatpush1.msra.mxu0 0.0
      %1530 = vmatprep.subr.mxu0 0.0
      %1531 = vmatpush1.msra.mxu0 0.0
      %1532 = vmatprep.subr.mxu0 0.0
      %1533 = vmatpush1.msra.mxu0 0.0
      %1534 = vmatprep.subr.mxu0 0.0
      %1535 = vmatpush1.msra.mxu0 0.0
      %1536 = vmatprep.subr.mxu0 0.0
      %1537 = vmatpush1.msra.mxu0 0.0
      %1538 = vmatprep.subr.mxu0 0.0
      %1539 = vmatpush1.msra.mxu0 0.0
      %1540 = vmatprep.subr.mxu0 0.0
      %1541 = vmatpush1.msra.mxu0 0.0
      %1542 = vmatprep.subr.mxu0 0.0
      %1543 = vmatpush1.msra.mxu0 0.0
      %1544 = vmatprep.subr.mxu0 0.0
      %1545 = vmatpush1.msra.mxu0 0.0
      %1546 = vmatprep.subr.mxu0 0.0
      %1547 = vmatpush1.msra.mxu0 0.0
      %1548 = vmatprep.subr.mxu0 0.0
      %1549 = vmatpush1.msra.mxu0 0.0
      %1550 = vmatprep.subr.mxu0 0.0
      %1551 = vmatpush1.msra.mxu0 0.0
      %1552 = vmatprep.subr.mxu0 0.0
      %1553 = vmatpush1.msra.mxu0 0.0
      %1554 = vmatprep.mubr.f32.mxu0 0.0
      %1555 = vmatmul.mubr.f32.gmra.mrb[0].mxu0 %v1482
      %v1556 = vpop.f32.mrb[0].mxu0
      %v1557 = vadd.f32 0.0, %v1556
      %v1558 = vpop.f32.mrb[0].mxu0
      %1559 = vmatprep.mubr.f32.mxu0 0.0
      %1560 = vmatmul.mubr.f32.gmra.mrb[0].mxu0 %v1485
      %v1561 = vpop.f32.mrb[0].mxu0
      %v1562 = vadd.f32 0.0, %v1561
      %v1563 = vpop.f32.mrb[0].mxu0
      %1564 = vmatprep.mubr.f32.mxu0 0.0
      %1565 = vmatmul.mubr.f32.gmra.mrb[0].mxu0 %v1488
      %v1566 = vpop.f32.mrb[0].mxu0
      %v1567 = vadd.f32 0.0, %v1566
      %v1568 = vpop.f32.mrb[0].mxu0
      %1569 = vdwg.mxu0
      %1573 = vrot.lane.b32.xlu0 %v594, 6
      %v1574 = vpop.permute.xlu0 %1573
      %1575 = vrot.lane.b32.xlu0 %v599, 6
      %v1576 = vpop.permute.xlu0 %1575
      %1577 = vrot.lane.b32.xlu0 %v604, 6
      %v1578 = vpop.permute.xlu0 %1577
      %1585 = vrot.lane.b32.xlu0 %v701, 12
      %v1586 = vpop.permute.xlu0 %1585
      %1587 = vrot.lane.b32.xlu0 %v706, 12
      %v1588 = vpop.permute.xlu0 %1587
      %1589 = vrot.lane.b32.xlu0 %v711, 12
      %v1590 = vpop.permute.xlu0 %1589
      %1597 = vrot.lane.b32.xlu0 %v808, 18
      %v1598 = vpop.permute.xlu0 %1597
      %1599 = vrot.lane.b32.xlu0 %v813, 18
      %v1600 = vpop.permute.xlu0 %1599
      %1601 = vrot.lane.b32.xlu0 %v818, 18
      %v1602 = vpop.permute.xlu0 %1601
      %1609 = vrot.lane.b32.xlu0 %v915, 24
      %v1610 = vpop.permute.xlu0 %1609
      %1611 = vrot.lane.b32.xlu0 %v920, 24
      %v1612 = vpop.permute.xlu0 %1611
      %1613 = vrot.lane.b32.xlu0 %v925, 24
      %v1614 = vpop.permute.xlu0 %1613
      %1621 = vrot.lane.b32.xlu0 %v1022, 30
      %v1622 = vpop.permute.xlu0 %1621
      %1623 = vrot.lane.b32.xlu0 %v1027, 30
      %v1624 = vpop.permute.xlu0 %1623
      %1625 = vrot.lane.b32.xlu0 %v1032, 30
      %v1626 = vpop.permute.xlu0 %1625
      %1633 = vrot.lane.b32.xlu0 %v1129, 36
      %v1634 = vpop.permute.xlu0 %1633
      %1635 = vrot.lane.b32.xlu0 %v1134, 36
      %v1636 = vpop.permute.xlu0 %1635
      %1637 = vrot.lane.b32.xlu0 %v1139, 36
      %v1638 = vpop.permute.xlu0 %1637
      %1645 = vrot.lane.b32.xlu0 %v1236, 42
      %v1646 = vpop.permute.xlu0 %1645
      %1647 = vrot.lane.b32.xlu0 %v1241, 42
      %v1648 = vpop.permute.xlu0 %1647
      %1649 = vrot.lane.b32.xlu0 %v1246, 42
      %v1650 = vpop.permute.xlu0 %1649
      %1657 = vrot.lane.b32.xlu0 %v1343, 48
      %v1658 = vpop.permute.xlu0 %1657
      %1659 = vrot.lane.b32.xlu0 %v1348, 48
      %v1660 = vpop.permute.xlu0 %1659
      %1661 = vrot.lane.b32.xlu0 %v1353, 48
      %v1662 = vpop.permute.xlu0 %1661
      %1669 = vrot.lane.b32.xlu0 %v1450, 54
      %v1670 = vpop.permute.xlu0 %1669
      %1671 = vrot.lane.b32.xlu0 %v1455, 54
      %v1672 = vpop.permute.xlu0 %1671
      %1673 = vrot.lane.b32.xlu0 %v1460, 54
      %v1674 = vpop.permute.xlu0 %1673
      %1681 = vrot.lane.b32.xlu0 %v1557, 60
      %v1682 = vpop.permute.xlu0 %1681
      %1683 = vrot.lane.b32.xlu0 %v1562, 60
      %v1684 = vpop.permute.xlu0 %1683
      %1685 = vrot.lane.b32.xlu0 %v1567, 60
      %v1686 = vpop.permute.xlu0 %1685
      %vm1690 = vcmask 48128
      %v1691 = vsel %vm1690, %v487, %v1574
      %v1692 = vsel %vm1690, %v492, %v1576
      %v1693 = vsel %vm1690, %v497, %v1578
      %vm1694 = vcmask 97280
      %v1695 = vsel %vm1694, %v1691, %v1586
      %v1696 = vsel %vm1694, %v1692, %v1588
      %v1697 = vsel %vm1694, %v1693, %v1590
      %vm1698 = vcmask 146432
      %v1699 = vsel %vm1698, %v1695, %v1598
      %v1700 = vsel %vm1698, %v1696, %v1600
      %v1701 = vsel %vm1698, %v1697, %v1602
      %vm1702 = vcmask 195584
      %v1703 = vsel %vm1702, %v1699, %v1610
      %v1704 = vsel %vm1702, %v1700, %v1612
      %v1705 = vsel %vm1702, %v1701, %v1614
      %vm1706 = vcmask 244736
      %v1707 = vsel %vm1706, %v1703, %v1622
      %v1708 = vsel %vm1706, %v1704, %v1624
      %v1709 = vsel %vm1706, %v1705, %v1626
      %vm1710 = vcmask 293888
      %v1711 = vsel %vm1710, %v1707, %v1634
      %v1712 = vsel %vm1710, %v1708, %v1636
      %v1713 = vsel %vm1710, %v1709, %v1638
      %vm1714 = vcmask 343040
      %v1715 = vsel %vm1714, %v1711, %v1646
      %v1716 = vsel %vm1714, %v1712, %v1648
      %v1717 = vsel %vm1714, %v1713, %v1650
      %vm1718 = vcmask 392192
      %v1719 = vsel %vm1718, %v1715, %v1658
      %v1720 = vsel %vm1718, %v1716, %v1660
      %v1721 = vsel %vm1718, %v1717, %v1662
      %vm1722 = vcmask 441344
      %v1723 = vsel %vm1722, %v1719, %v1670
      %v1724 = vsel %vm1722, %v1720, %v1672
      %v1725 = vsel %vm1722, %v1721, %v1674
      %vm1726 = vcmask 490496
      %v1727 = vsel %vm1726, %v1723, %v1682
      %v1728 = vsel %vm1726, %v1724, %v1684
      %v1729 = vsel %vm1726, %v1725, %v1686
      %v1730 = vmax.f32 %v1727, 1e-10
      %v1731 = vmax.f32 %v1728, 1e-10
      %v1732 = vmax.f32 %v1729, 1e-10
      %v1733 = vlog2.pop %v1730
      %v1734 = vmul.f32 %v1733, 0.6931472
      %v1735 = vlog2.pop %v1731
      %v1736 = vmul.f32 %v1735, 0.6931472
      %v1737 = vlog2.pop %v1732
      %v1738 = vmul.f32 %v1737, 0.6931472
      %v1739 = vld [vmem:[%s266] sm:$0x7]
      %v1741 = vsel %vm1702, %v1739, 0
      %1743 = vmatprep.subr.mxu0 0.0
      %1744 = vmatpush1.msra.mxu0 %v1734
      %1745 = vmatprep.subr.mxu0 0.0
      %1746 = vmatpush1.msra.mxu0 %v1736
      %1747 = vmatprep.subr.mxu0 0.0
      %1748 = vmatpush1.msra.mxu0 %v1738
      %1749 = vmatprep.subr.mxu0 0.0
      %1750 = vmatpush1.msra.mxu0 0.0
      %1751 = vmatprep.subr.mxu0 0.0
      %1752 = vmatpush1.msra.mxu0 0.0
      %1753 = vmatprep.subr.mxu0 0.0
      %1754 = vmatpush1.msra.mxu0 0.0
      %1755 = vmatprep.subr.mxu0 0.0
      %1756 = vmatpush1.msra.mxu0 0.0
      %1757 = vmatprep.subr.mxu0 0.0
      %1758 = vmatpush1.msra.mxu0 0.0
      %1759 = vmatprep.subr.mxu0 0.0
      %1760 = vmatpush1.msra.mxu0 0.0
      %1761 = vmatprep.subr.mxu0 0.0
      %1762 = vmatpush1.msra.mxu0 0.0
      %1763 = vmatprep.subr.mxu0 0.0
      %1764 = vmatpush1.msra.mxu0 0.0
      %1765 = vmatprep.subr.mxu0 0.0
      %1766 = vmatpush1.msra.mxu0 0.0
      %1767 = vmatprep.subr.mxu0 0.0
      %1768 = vmatpush1.msra.mxu0 0.0
      %1769 = vmatprep.subr.mxu0 0.0
      %1770 = vmatpush1.msra.mxu0 0.0
      %1771 = vmatprep.subr.mxu0 0.0
      %1772 = vmatpush1.msra.mxu0 0.0
      %1773 = vmatprep.subr.mxu0 0.0
      %1774 = vmatpush1.msra.mxu0 0.0
      %1775 = vmatprep.subr.mxu0 0.0
      %1776 = vmatpush1.msra.mxu0 0.0
      %1777 = vmatprep.subr.mxu0 0.0
      %1778 = vmatpush1.msra.mxu0 0.0
      %1779 = vmatprep.subr.mxu0 0.0
      %1780 = vmatpush1.msra.mxu0 0.0
      %1781 = vmatprep.subr.mxu0 0.0
      %1782 = vmatpush1.msra.mxu0 0.0
      %1783 = vmatprep.subr.mxu0 0.0
      %1784 = vmatpush1.msra.mxu0 0.0
      %1785 = vmatprep.subr.mxu0 0.0
      %1786 = vmatpush1.msra.mxu0 0.0
      %1787 = vmatprep.subr.mxu0 0.0
      %1788 = vmatpush1.msra.mxu0 0.0
      %1789 = vmatprep.subr.mxu0 0.0
      %1790 = vmatpush1.msra.mxu0 0.0
      %1791 = vmatprep.subr.mxu0 0.0
      %1792 = vmatpush1.msra.mxu0 0.0
      %1793 = vmatprep.subr.mxu0 0.0
      %1794 = vmatpush1.msra.mxu0 0.0
      %1795 = vmatprep.subr.mxu0 0.0
      %1796 = vmatpush1.msra.mxu0 0.0
      %1797 = vmatprep.subr.mxu0 0.0
      %1798 = vmatpush1.msra.mxu0 0.0
      %1799 = vmatprep.subr.mxu0 0.0
      %1800 = vmatpush1.msra.mxu0 0.0
      %1801 = vmatprep.subr.mxu0 0.0
      %1802 = vmatpush1.msra.mxu0 0.0
      %1803 = vmatprep.subr.mxu0 0.0
      %1804 = vmatpush1.msra.mxu0 0.0
      %1805 = vmatprep.subr.mxu0 0.0
      %1806 = vmatpush1.msra.mxu0 0.0
      %1807 = vmatprep.mubr.f32.mxu0 0.0
      %1808 = vmatmul.mubr.f32.gmra.mrb[0].mxu0 %v1741
      %v1809 = vpop.f32.mrb[0].mxu0
      %v1810 = vadd.f32 0.0, %v1809
      %v1811 = vpop.f32.mrb[0].mxu0
      %1812 = vdwg.mxu0
      %vm1813 = vcmask 534528
      %1814 = vst.msk [vmem:[%s273] sm:$0x7] %vm1813, %v1810
      %p1815 = scmp.lt.s32.totalorder %s16, 1
      %s1816 = scalar_select %p1815, %s16, 1
      %s1817 = smul.addr %s1816, 4
      %s1818 = scalar_lea.vmem %s5, %s1817
      // Predicated region
      $region41: #{forward.7} parent=39 // pred_check
        %p1819 = pneg %p159
      $region42: #{forward.7} parent=39 // pred_check_branch
        %1821 = sbr.rel (%p1819) target = $region44
      $region43: #{forward.7} parent=39 // pred_region
        _
      $region44: #{forward.7} parent=39 // pred_fallthru
        _
    $region40: #{forward.7} parent=5 // pred_fallthru
      _
    %p1822 = scmp.le.s32.totalorder 2, %s11
    // Predicated region
    $region45: #{forward.7} parent=5 // pred_check
      %p1823 = pneg %p1822
    $region46: #{forward.7} parent=5 // pred_check_branch
      %1825 = sbr.rel (%p1823) target = $region48
    $region47: #{forward.7} parent=5 // pred_region
      %s1826 = ssub.s32 %s11, 2
      // Predicated region
      $region49: #{forward.7} parent=47 // pred_check
        %p1827 = pneg %p165
      $region50: #{forward.7} parent=47 // pred_check_branch
        %1829 = sbr.rel (%p1827) target = $region52
      $region51: #{forward.7} parent=47 // pred_region
        %p1830 = scmp.lt.s32.totalorder %s17, 1
        %s1831 = scalar_select %p1830, %s17, 1
        %s1832 = smul.addr %s1831, 4
        %s1833 = scalar_lea.vmem %s5, %s1832
      $region52: #{forward.7} parent=47 // pred_fallthru
        _
    $region48: #{forward.7} parent=5 // pred_fallthru
      _
  $region6: #{forward.7} parent=0 // loop_footer
    %s15 = sadd.s32 1, %s11
  $region7: #{forward.7} parent=0 // loop_footer_branch
    %10 = sbr.rel target = $region3
  $region8: #{forward.7} parent=0 // loop_exit
    _

</llo_original>
